<compile_context>
chip_gen: v7x
topology: tpu7x:2x2x1
jax: 0.10.0
libtpu: 0.0.40
codegen_flags: <defaults>
</compile_context>

<pallas_src>
import jax
import jax.numpy as jnp
from jax.experimental import pallas as pl
from jax.experimental.pallas import tpu as pltpu


N_CONVS = 12  # hourglass: 2 (coarse) + 2 (fine) ; tunnel: 4 ResUnits * 2 convs


# --------------------------------------------------------------------------- #
# fused forward kernel — a single grid step processes the whole (packed) batch
# --------------------------------------------------------------------------- #
def _make_kernel(CP, H, W, N):
    HW = H * W
    NHW = N * HW
    pow2 = (H & (H - 1)) == 0 and (W & (W - 1)) == 0

    def kernel(w_ref, b_ref, r_ref, t_ref, ro_ref, to_ref):
        # ---- per-lane (h, w) within each packed sample (built once) -------- #
        p = jax.lax.broadcasted_iota(jnp.int32, (1, NHW), 1)
        if pow2:
            q = p & (HW - 1)
            hh = q >> (W.bit_length() - 1)
            ww = q & (W - 1)
        else:
            q = p % HW
            hh = q // W
            ww = q % W
        even = ((hh & 1) == 0) & ((ww & 1) == 0)          # coarse-grid positions

        def make_masks(d):
            ms = {}
            for k in range(9):
                oy, ox = k // 3 - 1, k % 3 - 1
                if oy == 0 and ox == 0:
                    continue
                yy, xx = hh + d * oy, ww + d * ox
                # in-range mask == zero padding; also kills cross-sample roll wrap
                ms[k] = (yy >= 0) & (yy < H) & (xx >= 0) & (xx < W)
            return ms

        masks = {1: make_masks(1), 2: make_masks(2)}

        # ---- 3x3 "same" conv, dilation d: taps on the VPU/XLU, mix on the MXU
        def conv3x3(x, layer, d, relu, residual=None):
            taps = []
            for k in range(9):
                oy, ox = k // 3 - 1, k % 3 - 1
                off = d * (oy * W + ox)
                if off == 0:
                    taps.append(x)
                else:
                    rolled = pltpu.roll(x, shift=(-off) % NHW, axis=1)
                    taps.append(jnp.where(masks[d][k], rolled, 0.0))
            stacked = jnp.concatenate(taps, axis=0)            # (9*CP, NHW), tile-aligned
            acc = jnp.dot(w_ref[layer], stacked,               # (CP, 9*CP) @ (9*CP, NHW)
                          preferred_element_type=jnp.float32)  # -> MXU, f32 accumulate
            acc = acc + b_ref[layer]                           # (CP, 1) broadcast
            if residual is not None:
                acc = acc + residual
            if relu:
                acc = jnp.maximum(acc, 0.0)
            return acc

        # TODO(synk): ResUnit(inchannels, 3) definition not provided; assumed
        # conv3x3 -> ReLU -> conv3x3 -> (+x) -> ReLU with same channel count.
        def res_unit(x, layer0, d):
            y = conv3x3(x, layer0, d, relu=True)
            return conv3x3(y, layer0 + 1, d, relu=True, residual=x)

        R = r_ref[...]            # (CP, N*HW)
        T = t_ref[...]            # (CP, N*HW)

        # ---- Hourglass on R ----------------------------------------------- #
        # TODO(synk): Hourglass(dense_rate=2) definition not provided; assumed
        # pool -> ResUnit -> nearest-upsample(+skip) -> ResUnit.
        # 2x2 average pool, kept embedded on the fine grid at even (h, w) positions.
        pooled = 0.25 * (R
                         + pltpu.roll(R, shift=NHW - 1, axis=1)
                         + pltpu.roll(R, shift=NHW - W, axis=1)
                         + pltpu.roll(R, shift=NHW - W - 1, axis=1))
        pooled = jnp.where(even, pooled, 0.0)
        # coarse-level ResUnit == dilation-2 convs on the embedded representation
        # (75% of these lanes are zeros; compaction not worth the pack/unpack gathers here)
        coarse = res_unit(pooled, 0, d=2)
        coarse = jnp.where(even, coarse, 0.0)
        # nearest-neighbour 2x upsample (spread each even-position value to its 2x2 block),
        # fused with the hourglass skip connection
        up = (coarse
              + pltpu.roll(coarse, shift=1, axis=1)
              + pltpu.roll(coarse, shift=W, axis=1)
              + pltpu.roll(coarse, shift=W + 1, axis=1))
        R = res_unit(R + up, 2, d=1)

        # ---- tunnel on T (4 x ResUnit) ------------------------------------ #
        for l in range(4):
            T = res_unit(T, 4 + 2 * l, d=1)

        # ---- KronEmbed + residual add, fused ------------------------------ #
        # TODO(synk): KronEmbed definition not provided; assumed channel gating by
        # sigmoid(GAP(R)); fused with "+ T_feat" as (gate + 1) * T, per sample.
        ro_ref[...] = R
        for s in range(N):                                    # N is small & static
            rs = R[:, s * HW:(s + 1) * HW]
            ts = T[:, s * HW:(s + 1) * HW]
            g = jnp.sum(rs, axis=1, keepdims=True) * (1.0 / HW)   # (CP, 1)
            gate = 1.0 / (1.0 + jnp.exp(-g)) + 1.0
            to_ref[:, s * HW:(s + 1) * HW] = ts * gate            # 256-lane aligned store

    return kernel


# --------------------------------------------------------------------------- #
# wrapper: pack batch into lanes, pad channels to the sublane tile, one pallas_call
# --------------------------------------------------------------------------- #
def matching_module(w_all, b_all, R_nchw, T_nchw):
    N, C, H, W = R_nchw.shape
    assert H % 2 == 0 and W % 2 == 0
    HW = H * W
    NHW = N * HW
    CP = ((C + 7) // 8) * 8                      # pad channels to f32 sublane tile
    n_convs = w_all.shape[0]

    def pack_feat(x):
        # (N, C, H, W) -> (CP, N*HW): spatial on lanes, batch packed along lanes,
        # zero rows for padded channels (they stay exactly zero through the network).
        xp = jnp.transpose(x.reshape(N, C, HW).astype(jnp.float32), (1, 0, 2))
        xp = xp.reshape(C, NHW)
        return jnp.pad(xp, ((0, CP - C), (0, 0)))

    # weights: (L, 9, Cin, Cout) -> (L, CP, 9*CP) with column index k*CP + cin
    wt = jnp.transpose(w_all.astype(jnp.float32), (0, 3, 1, 2))     # (L, Cout, 9, Cin)
    wp = jnp.zeros((n_convs, CP, 9, CP), jnp.float32).at[:, :C, :, :C].set(wt)
    wp = wp.reshape(n_convs, CP, 9 * CP)
    bp = jnp.zeros((n_convs, CP, 1), jnp.float32).at[:, :C, 0].set(
        b_all.astype(jnp.float32))

    Rp = pack_feat(R_nchw)
    Tp = pack_feat(T_nchw)

    feat_spec = pl.BlockSpec((CP, NHW), lambda i: (0, 0))
    r_out, t_out = pl.pallas_call(
        _make_kernel(CP, H, W, N),
        grid=(1,),                                   # single step: whole batch packed
        in_specs=[
            pl.BlockSpec((n_convs, CP, 9 * CP), lambda i: (0, 0, 0)),  # conv weights
            pl.BlockSpec((n_convs, CP, 1), lambda i: (0, 0, 0)),       # biases
            feat_spec,                                                  # R packed
            feat_spec,                                                  # T packed
        ],
        out_specs=(feat_spec, feat_spec),
        out_shape=(
            jax.ShapeDtypeStruct((CP, NHW), jnp.float32),
            jax.ShapeDtypeStruct((CP, NHW), jnp.float32),
        ),
    )(wp, bp, Rp, Tp)

    def unpack(x):
        return jnp.transpose(x[:C].reshape(C, N, H, W), (1, 0, 2, 3))

    return unpack(r_out), unpack(t_out)


# --------------------------------------------------------------------------- #
# deterministic parameter init: (n_convs, 9, Cin, Cout) weights + (n_convs, C) biases
# --------------------------------------------------------------------------- #
def init_params(key, C, n_convs=N_CONVS, scale=0.1):
    # TODO(synk): if real PyTorch weights (Cout, Cin, kh, kw) are ever loaded, convert with
    #   w.transpose(2, 3, 1, 0).reshape(9, Cin, Cout) before passing here.
    keys = jax.random.split(key, 2 * n_convs)
    ws, bs = [], []
    for l in range(n_convs):
        ws.append(scale * jax.random.normal(keys[2 * l], (9, C, C), jnp.float32))
        bs.append(scale * jax.random.normal(keys[2 * l + 1], (C,), jnp.float32))
    return jnp.stack(ws, axis=0), jnp.stack(bs, axis=0)


if __name__ == "__main__":
    key = jax.random.PRNGKey(0)
    kR, kT, kP = jax.random.split(key, 3)
    N, C, H, W = 2, 4, 16, 16
    R_feat = jax.random.normal(kR, (N, C, H, W), jnp.float32)
    T_feat = jax.random.normal(kT, (N, C, H, W), jnp.float32)
    w_all, b_all = init_params(kP, C)

    fwd = jax.jit(matching_module)
    R_out, T_masked = fwd(w_all, b_all, R_feat, T_feat)
    jax.block_until_ready((R_out, T_masked))

    assert R_out.shape == (N, C, H, W)
    assert T_masked.shape == (N, C, H, W)
    assert bool(jnp.all(jnp.isfinite(R_out))) and bool(jnp.all(jnp.isfinite(T_masked)))
    print("KERNEL_OK")
</pallas_src>

<mosaic_0001>
module attributes {stable_mosaic.version = 11 : i64} {
  func.func @kernel(%arg0: i32, %arg1: memref<12x8x72xf32, #tpu.memory_space<vmem>>, %arg2: memref<12x8x1xf32, #tpu.memory_space<vmem>>, %arg3: memref<8x512xf32, #tpu.memory_space<vmem>>, %arg4: memref<8x512xf32, #tpu.memory_space<vmem>>, %arg5: memref<8x512xf32, #tpu.memory_space<vmem>>, %arg6: memref<8x512xf32, #tpu.memory_space<vmem>>) attributes {dimension_semantics = [#tpu.dimension_semantics<arbitrary>], iteration_bounds = array<i64: 1>, scalar_prefetch = 0 : i64, scratch_operands = 0 : i64, tpu.core_type = #tpu.core_type<tc>, window_params = [{pipeline_mode = #tpu.pipeline_mode<synchronous>, transform_indices = @transform_0, window_bounds = array<i64: 12, 8, 72>}, {pipeline_mode = #tpu.pipeline_mode<synchronous>, transform_indices = @transform_1, window_bounds = array<i64: 12, 8, 1>}, {pipeline_mode = #tpu.pipeline_mode<synchronous>, transform_indices = @transform_2, window_bounds = array<i64: 8, 512>}, {pipeline_mode = #tpu.pipeline_mode<synchronous>, transform_indices = @transform_3, window_bounds = array<i64: 8, 512>}, {pipeline_mode = #tpu.pipeline_mode<synchronous>, transform_indices = @transform_4, window_bounds = array<i64: 8, 512>}, {pipeline_mode = #tpu.pipeline_mode<synchronous>, transform_indices = @transform_5, window_bounds = array<i64: 8, 512>}]} {
    %0 = tpu.iota {dimensions = array<i32: 1>} : vector<1x512xi32>
    %c255_i32 = arith.constant 255 : i32
    %1 = vector.broadcast %c255_i32 : i32 to vector<1x512xi32>
    %2 = arith.andi %0, %1 : vector<1x512xi32>
    %c4_i32 = arith.constant 4 : i32
    %3 = vector.broadcast %c4_i32 : i32 to vector<1x512xi32>
    %4 = arith.shrsi %2, %3 : vector<1x512xi32>
    %c15_i32 = arith.constant 15 : i32
    %5 = vector.broadcast %c15_i32 : i32 to vector<1x512xi32>
    %6 = arith.andi %2, %5 : vector<1x512xi32>
    %c1_i32 = arith.constant 1 : i32
    %7 = vector.broadcast %c1_i32 : i32 to vector<1x512xi32>
    %8 = arith.andi %4, %7 : vector<1x512xi32>
    %c0_i32 = arith.constant 0 : i32
    %9 = vector.broadcast %c0_i32 : i32 to vector<1x512xi32>
    %10 = arith.cmpi eq, %8, %9 : vector<1x512xi32>
    %c1_i32_0 = arith.constant 1 : i32
    %11 = vector.broadcast %c1_i32_0 : i32 to vector<1x512xi32>
    %12 = arith.andi %6, %11 : vector<1x512xi32>
    %c0_i32_1 = arith.constant 0 : i32
    %13 = vector.broadcast %c0_i32_1 : i32 to vector<1x512xi32>
    %14 = arith.cmpi eq, %12, %13 : vector<1x512xi32>
    %15 = arith.andi %10, %14 : vector<1x512xi1>
    %c-1_i32 = arith.constant -1 : i32
    %16 = vector.broadcast %c-1_i32 : i32 to vector<1x512xi32>
    %17 = arith.addi %4, %16 : vector<1x512xi32>
    %c-1_i32_2 = arith.constant -1 : i32
    %18 = vector.broadcast %c-1_i32_2 : i32 to vector<1x512xi32>
    %19 = arith.addi %6, %18 : vector<1x512xi32>
    %c0_i32_3 = arith.constant 0 : i32
    %20 = vector.broadcast %c0_i32_3 : i32 to vector<1x512xi32>
    %21 = arith.cmpi sge, %17, %20 : vector<1x512xi32>
    %c16_i32 = arith.constant 16 : i32
    %22 = vector.broadcast %c16_i32 : i32 to vector<1x512xi32>
    %23 = arith.cmpi slt, %17, %22 : vector<1x512xi32>
    %24 = arith.andi %21, %23 : vector<1x512xi1>
    %c0_i32_4 = arith.constant 0 : i32
    %25 = vector.broadcast %c0_i32_4 : i32 to vector<1x512xi32>
    %26 = arith.cmpi sge, %19, %25 : vector<1x512xi32>
    %27 = arith.andi %24, %26 : vector<1x512xi1>
    %c16_i32_5 = arith.constant 16 : i32
    %28 = vector.broadcast %c16_i32_5 : i32 to vector<1x512xi32>
    %29 = arith.cmpi slt, %19, %28 : vector<1x512xi32>
    %30 = arith.andi %27, %29 : vector<1x512xi1>
    %c-1_i32_6 = arith.constant -1 : i32
    %31 = vector.broadcast %c-1_i32_6 : i32 to vector<1x512xi32>
    %32 = arith.addi %4, %31 : vector<1x512xi32>
    %c0_i32_7 = arith.constant 0 : i32
    %33 = vector.broadcast %c0_i32_7 : i32 to vector<1x512xi32>
    %34 = arith.addi %6, %33 : vector<1x512xi32>
    %c0_i32_8 = arith.constant 0 : i32
    %35 = vector.broadcast %c0_i32_8 : i32 to vector<1x512xi32>
    %36 = arith.cmpi sge, %32, %35 : vector<1x512xi32>
    %c16_i32_9 = arith.constant 16 : i32
    %37 = vector.broadcast %c16_i32_9 : i32 to vector<1x512xi32>
    %38 = arith.cmpi slt, %32, %37 : vector<1x512xi32>
    %39 = arith.andi %36, %38 : vector<1x512xi1>
    %c0_i32_10 = arith.constant 0 : i32
    %40 = vector.broadcast %c0_i32_10 : i32 to vector<1x512xi32>
    %41 = arith.cmpi sge, %34, %40 : vector<1x512xi32>
    %42 = arith.andi %39, %41 : vector<1x512xi1>
    %c16_i32_11 = arith.constant 16 : i32
    %43 = vector.broadcast %c16_i32_11 : i32 to vector<1x512xi32>
    %44 = arith.cmpi slt, %34, %43 : vector<1x512xi32>
    %45 = arith.andi %42, %44 : vector<1x512xi1>
    %c-1_i32_12 = arith.constant -1 : i32
    %46 = vector.broadcast %c-1_i32_12 : i32 to vector<1x512xi32>
    %47 = arith.addi %4, %46 : vector<1x512xi32>
    %c1_i32_13 = arith.constant 1 : i32
    %48 = vector.broadcast %c1_i32_13 : i32 to vector<1x512xi32>
    %49 = arith.addi %6, %48 : vector<1x512xi32>
    %c0_i32_14 = arith.constant 0 : i32
    %50 = vector.broadcast %c0_i32_14 : i32 to vector<1x512xi32>
    %51 = arith.cmpi sge, %47, %50 : vector<1x512xi32>
    %c16_i32_15 = arith.constant 16 : i32
    %52 = vector.broadcast %c16_i32_15 : i32 to vector<1x512xi32>
    %53 = arith.cmpi slt, %47, %52 : vector<1x512xi32>
    %54 = arith.andi %51, %53 : vector<1x512xi1>
    %c0_i32_16 = arith.constant 0 : i32
    %55 = vector.broadcast %c0_i32_16 : i32 to vector<1x512xi32>
    %56 = arith.cmpi sge, %49, %55 : vector<1x512xi32>
    %57 = arith.andi %54, %56 : vector<1x512xi1>
    %c16_i32_17 = arith.constant 16 : i32
    %58 = vector.broadcast %c16_i32_17 : i32 to vector<1x512xi32>
    %59 = arith.cmpi slt, %49, %58 : vector<1x512xi32>
    %60 = arith.andi %57, %59 : vector<1x512xi1>
    %c0_i32_18 = arith.constant 0 : i32
    %61 = vector.broadcast %c0_i32_18 : i32 to vector<1x512xi32>
    %62 = arith.addi %4, %61 : vector<1x512xi32>
    %c-1_i32_19 = arith.constant -1 : i32
    %63 = vector.broadcast %c-1_i32_19 : i32 to vector<1x512xi32>
    %64 = arith.addi %6, %63 : vector<1x512xi32>
    %c0_i32_20 = arith.constant 0 : i32
    %65 = vector.broadcast %c0_i32_20 : i32 to vector<1x512xi32>
    %66 = arith.cmpi sge, %62, %65 : vector<1x512xi32>
    %c16_i32_21 = arith.constant 16 : i32
    %67 = vector.broadcast %c16_i32_21 : i32 to vector<1x512xi32>
    %68 = arith.cmpi slt, %62, %67 : vector<1x512xi32>
    %69 = arith.andi %66, %68 : vector<1x512xi1>
    %c0_i32_22 = arith.constant 0 : i32
    %70 = vector.broadcast %c0_i32_22 : i32 to vector<1x512xi32>
    %71 = arith.cmpi sge, %64, %70 : vector<1x512xi32>
    %72 = arith.andi %69, %71 : vector<1x512xi1>
    %c16_i32_23 = arith.constant 16 : i32
    %73 = vector.broadcast %c16_i32_23 : i32 to vector<1x512xi32>
    %74 = arith.cmpi slt, %64, %73 : vector<1x512xi32>
    %75 = arith.andi %72, %74 : vector<1x512xi1>
    %c0_i32_24 = arith.constant 0 : i32
    %76 = vector.broadcast %c0_i32_24 : i32 to vector<1x512xi32>
    %77 = arith.addi %4, %76 : vector<1x512xi32>
    %c1_i32_25 = arith.constant 1 : i32
    %78 = vector.broadcast %c1_i32_25 : i32 to vector<1x512xi32>
    %79 = arith.addi %6, %78 : vector<1x512xi32>
    %c0_i32_26 = arith.constant 0 : i32
    %80 = vector.broadcast %c0_i32_26 : i32 to vector<1x512xi32>
    %81 = arith.cmpi sge, %77, %80 : vector<1x512xi32>
    %c16_i32_27 = arith.constant 16 : i32
    %82 = vector.broadcast %c16_i32_27 : i32 to vector<1x512xi32>
    %83 = arith.cmpi slt, %77, %82 : vector<1x512xi32>
    %84 = arith.andi %81, %83 : vector<1x512xi1>
    %c0_i32_28 = arith.constant 0 : i32
    %85 = vector.broadcast %c0_i32_28 : i32 to vector<1x512xi32>
    %86 = arith.cmpi sge, %79, %85 : vector<1x512xi32>
    %87 = arith.andi %84, %86 : vector<1x512xi1>
    %c16_i32_29 = arith.constant 16 : i32
    %88 = vector.broadcast %c16_i32_29 : i32 to vector<1x512xi32>
    %89 = arith.cmpi slt, %79, %88 : vector<1x512xi32>
    %90 = arith.andi %87, %89 : vector<1x512xi1>
    %c1_i32_30 = arith.constant 1 : i32
    %91 = vector.broadcast %c1_i32_30 : i32 to vector<1x512xi32>
    %92 = arith.addi %4, %91 : vector<1x512xi32>
    %c-1_i32_31 = arith.constant -1 : i32
    %93 = vector.broadcast %c-1_i32_31 : i32 to vector<1x512xi32>
    %94 = arith.addi %6, %93 : vector<1x512xi32>
    %c0_i32_32 = arith.constant 0 : i32
    %95 = vector.broadcast %c0_i32_32 : i32 to vector<1x512xi32>
    %96 = arith.cmpi sge, %92, %95 : vector<1x512xi32>
    %c16_i32_33 = arith.constant 16 : i32
    %97 = vector.broadcast %c16_i32_33 : i32 to vector<1x512xi32>
    %98 = arith.cmpi slt, %92, %97 : vector<1x512xi32>
    %99 = arith.andi %96, %98 : vector<1x512xi1>
    %c0_i32_34 = arith.constant 0 : i32
    %100 = vector.broadcast %c0_i32_34 : i32 to vector<1x512xi32>
    %101 = arith.cmpi sge, %94, %100 : vector<1x512xi32>
    %102 = arith.andi %99, %101 : vector<1x512xi1>
    %c16_i32_35 = arith.constant 16 : i32
    %103 = vector.broadcast %c16_i32_35 : i32 to vector<1x512xi32>
    %104 = arith.cmpi slt, %94, %103 : vector<1x512xi32>
    %105 = arith.andi %102, %104 : vector<1x512xi1>
    %c1_i32_36 = arith.constant 1 : i32
    %106 = vector.broadcast %c1_i32_36 : i32 to vector<1x512xi32>
    %107 = arith.addi %4, %106 : vector<1x512xi32>
    %c0_i32_37 = arith.constant 0 : i32
    %108 = vector.broadcast %c0_i32_37 : i32 to vector<1x512xi32>
    %109 = arith.addi %6, %108 : vector<1x512xi32>
    %c0_i32_38 = arith.constant 0 : i32
    %110 = vector.broadcast %c0_i32_38 : i32 to vector<1x512xi32>
    %111 = arith.cmpi sge, %107, %110 : vector<1x512xi32>
    %c16_i32_39 = arith.constant 16 : i32
    %112 = vector.broadcast %c16_i32_39 : i32 to vector<1x512xi32>
    %113 = arith.cmpi slt, %107, %112 : vector<1x512xi32>
    %114 = arith.andi %111, %113 : vector<1x512xi1>
    %c0_i32_40 = arith.constant 0 : i32
    %115 = vector.broadcast %c0_i32_40 : i32 to vector<1x512xi32>
    %116 = arith.cmpi sge, %109, %115 : vector<1x512xi32>
    %117 = arith.andi %114, %116 : vector<1x512xi1>
    %c16_i32_41 = arith.constant 16 : i32
    %118 = vector.broadcast %c16_i32_41 : i32 to vector<1x512xi32>
    %119 = arith.cmpi slt, %109, %118 : vector<1x512xi32>
    %120 = arith.andi %117, %119 : vector<1x512xi1>
    %c1_i32_42 = arith.constant 1 : i32
    %121 = vector.broadcast %c1_i32_42 : i32 to vector<1x512xi32>
    %122 = arith.addi %4, %121 : vector<1x512xi32>
    %c1_i32_43 = arith.constant 1 : i32
    %123 = vector.broadcast %c1_i32_43 : i32 to vector<1x512xi32>
    %124 = arith.addi %6, %123 : vector<1x512xi32>
    %c0_i32_44 = arith.constant 0 : i32
    %125 = vector.broadcast %c0_i32_44 : i32 to vector<1x512xi32>
    %126 = arith.cmpi sge, %122, %125 : vector<1x512xi32>
    %c16_i32_45 = arith.constant 16 : i32
    %127 = vector.broadcast %c16_i32_45 : i32 to vector<1x512xi32>
    %128 = arith.cmpi slt, %122, %127 : vector<1x512xi32>
    %129 = arith.andi %126, %128 : vector<1x512xi1>
    %c0_i32_46 = arith.constant 0 : i32
    %130 = vector.broadcast %c0_i32_46 : i32 to vector<1x512xi32>
    %131 = arith.cmpi sge, %124, %130 : vector<1x512xi32>
    %132 = arith.andi %129, %131 : vector<1x512xi1>
    %c16_i32_47 = arith.constant 16 : i32
    %133 = vector.broadcast %c16_i32_47 : i32 to vector<1x512xi32>
    %134 = arith.cmpi slt, %124, %133 : vector<1x512xi32>
    %135 = arith.andi %132, %134 : vector<1x512xi1>
    %c-2_i32 = arith.constant -2 : i32
    %136 = vector.broadcast %c-2_i32 : i32 to vector<1x512xi32>
    %137 = arith.addi %4, %136 : vector<1x512xi32>
    %c-2_i32_48 = arith.constant -2 : i32
    %138 = vector.broadcast %c-2_i32_48 : i32 to vector<1x512xi32>
    %139 = arith.addi %6, %138 : vector<1x512xi32>
    %c0_i32_49 = arith.constant 0 : i32
    %140 = vector.broadcast %c0_i32_49 : i32 to vector<1x512xi32>
    %141 = arith.cmpi sge, %137, %140 : vector<1x512xi32>
    %c16_i32_50 = arith.constant 16 : i32
    %142 = vector.broadcast %c16_i32_50 : i32 to vector<1x512xi32>
    %143 = arith.cmpi slt, %137, %142 : vector<1x512xi32>
    %144 = arith.andi %141, %143 : vector<1x512xi1>
    %c0_i32_51 = arith.constant 0 : i32
    %145 = vector.broadcast %c0_i32_51 : i32 to vector<1x512xi32>
    %146 = arith.cmpi sge, %139, %145 : vector<1x512xi32>
    %147 = arith.andi %144, %146 : vector<1x512xi1>
    %c16_i32_52 = arith.constant 16 : i32
    %148 = vector.broadcast %c16_i32_52 : i32 to vector<1x512xi32>
    %149 = arith.cmpi slt, %139, %148 : vector<1x512xi32>
    %150 = arith.andi %147, %149 : vector<1x512xi1>
    %c-2_i32_53 = arith.constant -2 : i32
    %151 = vector.broadcast %c-2_i32_53 : i32 to vector<1x512xi32>
    %152 = arith.addi %4, %151 : vector<1x512xi32>
    %c0_i32_54 = arith.constant 0 : i32
    %153 = vector.broadcast %c0_i32_54 : i32 to vector<1x512xi32>
    %154 = arith.addi %6, %153 : vector<1x512xi32>
    %c0_i32_55 = arith.constant 0 : i32
    %155 = vector.broadcast %c0_i32_55 : i32 to vector<1x512xi32>
    %156 = arith.cmpi sge, %152, %155 : vector<1x512xi32>
    %c16_i32_56 = arith.constant 16 : i32
    %157 = vector.broadcast %c16_i32_56 : i32 to vector<1x512xi32>
    %158 = arith.cmpi slt, %152, %157 : vector<1x512xi32>
    %159 = arith.andi %156, %158 : vector<1x512xi1>
    %c0_i32_57 = arith.constant 0 : i32
    %160 = vector.broadcast %c0_i32_57 : i32 to vector<1x512xi32>
    %161 = arith.cmpi sge, %154, %160 : vector<1x512xi32>
    %162 = arith.andi %159, %161 : vector<1x512xi1>
    %c16_i32_58 = arith.constant 16 : i32
    %163 = vector.broadcast %c16_i32_58 : i32 to vector<1x512xi32>
    %164 = arith.cmpi slt, %154, %163 : vector<1x512xi32>
    %165 = arith.andi %162, %164 : vector<1x512xi1>
    %c-2_i32_59 = arith.constant -2 : i32
    %166 = vector.broadcast %c-2_i32_59 : i32 to vector<1x512xi32>
    %167 = arith.addi %4, %166 : vector<1x512xi32>
    %c2_i32 = arith.constant 2 : i32
    %168 = vector.broadcast %c2_i32 : i32 to vector<1x512xi32>
    %169 = arith.addi %6, %168 : vector<1x512xi32>
    %c0_i32_60 = arith.constant 0 : i32
    %170 = vector.broadcast %c0_i32_60 : i32 to vector<1x512xi32>
    %171 = arith.cmpi sge, %167, %170 : vector<1x512xi32>
    %c16_i32_61 = arith.constant 16 : i32
    %172 = vector.broadcast %c16_i32_61 : i32 to vector<1x512xi32>
    %173 = arith.cmpi slt, %167, %172 : vector<1x512xi32>
    %174 = arith.andi %171, %173 : vector<1x512xi1>
    %c0_i32_62 = arith.constant 0 : i32
    %175 = vector.broadcast %c0_i32_62 : i32 to vector<1x512xi32>
    %176 = arith.cmpi sge, %169, %175 : vector<1x512xi32>
    %177 = arith.andi %174, %176 : vector<1x512xi1>
    %c16_i32_63 = arith.constant 16 : i32
    %178 = vector.broadcast %c16_i32_63 : i32 to vector<1x512xi32>
    %179 = arith.cmpi slt, %169, %178 : vector<1x512xi32>
    %180 = arith.andi %177, %179 : vector<1x512xi1>
    %c0_i32_64 = arith.constant 0 : i32
    %181 = vector.broadcast %c0_i32_64 : i32 to vector<1x512xi32>
    %182 = arith.addi %4, %181 : vector<1x512xi32>
    %c-2_i32_65 = arith.constant -2 : i32
    %183 = vector.broadcast %c-2_i32_65 : i32 to vector<1x512xi32>
    %184 = arith.addi %6, %183 : vector<1x512xi32>
    %c0_i32_66 = arith.constant 0 : i32
    %185 = vector.broadcast %c0_i32_66 : i32 to vector<1x512xi32>
    %186 = arith.cmpi sge, %182, %185 : vector<1x512xi32>
    %c16_i32_67 = arith.constant 16 : i32
    %187 = vector.broadcast %c16_i32_67 : i32 to vector<1x512xi32>
    %188 = arith.cmpi slt, %182, %187 : vector<1x512xi32>
    %189 = arith.andi %186, %188 : vector<1x512xi1>
    %c0_i32_68 = arith.constant 0 : i32
    %190 = vector.broadcast %c0_i32_68 : i32 to vector<1x512xi32>
    %191 = arith.cmpi sge, %184, %190 : vector<1x512xi32>
    %192 = arith.andi %189, %191 : vector<1x512xi1>
    %c16_i32_69 = arith.constant 16 : i32
    %193 = vector.broadcast %c16_i32_69 : i32 to vector<1x512xi32>
    %194 = arith.cmpi slt, %184, %193 : vector<1x512xi32>
    %195 = arith.andi %192, %194 : vector<1x512xi1>
    %c0_i32_70 = arith.constant 0 : i32
    %196 = vector.broadcast %c0_i32_70 : i32 to vector<1x512xi32>
    %197 = arith.addi %4, %196 : vector<1x512xi32>
    %c2_i32_71 = arith.constant 2 : i32
    %198 = vector.broadcast %c2_i32_71 : i32 to vector<1x512xi32>
    %199 = arith.addi %6, %198 : vector<1x512xi32>
    %c0_i32_72 = arith.constant 0 : i32
    %200 = vector.broadcast %c0_i32_72 : i32 to vector<1x512xi32>
    %201 = arith.cmpi sge, %197, %200 : vector<1x512xi32>
    %c16_i32_73 = arith.constant 16 : i32
    %202 = vector.broadcast %c16_i32_73 : i32 to vector<1x512xi32>
    %203 = arith.cmpi slt, %197, %202 : vector<1x512xi32>
    %204 = arith.andi %201, %203 : vector<1x512xi1>
    %c0_i32_74 = arith.constant 0 : i32
    %205 = vector.broadcast %c0_i32_74 : i32 to vector<1x512xi32>
    %206 = arith.cmpi sge, %199, %205 : vector<1x512xi32>
    %207 = arith.andi %204, %206 : vector<1x512xi1>
    %c16_i32_75 = arith.constant 16 : i32
    %208 = vector.broadcast %c16_i32_75 : i32 to vector<1x512xi32>
    %209 = arith.cmpi slt, %199, %208 : vector<1x512xi32>
    %210 = arith.andi %207, %209 : vector<1x512xi1>
    %c2_i32_76 = arith.constant 2 : i32
    %211 = vector.broadcast %c2_i32_76 : i32 to vector<1x512xi32>
    %212 = arith.addi %4, %211 : vector<1x512xi32>
    %c-2_i32_77 = arith.constant -2 : i32
    %213 = vector.broadcast %c-2_i32_77 : i32 to vector<1x512xi32>
    %214 = arith.addi %6, %213 : vector<1x512xi32>
    %c0_i32_78 = arith.constant 0 : i32
    %215 = vector.broadcast %c0_i32_78 : i32 to vector<1x512xi32>
    %216 = arith.cmpi sge, %212, %215 : vector<1x512xi32>
    %c16_i32_79 = arith.constant 16 : i32
    %217 = vector.broadcast %c16_i32_79 : i32 to vector<1x512xi32>
    %218 = arith.cmpi slt, %212, %217 : vector<1x512xi32>
    %219 = arith.andi %216, %218 : vector<1x512xi1>
    %c0_i32_80 = arith.constant 0 : i32
    %220 = vector.broadcast %c0_i32_80 : i32 to vector<1x512xi32>
    %221 = arith.cmpi sge, %214, %220 : vector<1x512xi32>
    %222 = arith.andi %219, %221 : vector<1x512xi1>
    %c16_i32_81 = arith.constant 16 : i32
    %223 = vector.broadcast %c16_i32_81 : i32 to vector<1x512xi32>
    %224 = arith.cmpi slt, %214, %223 : vector<1x512xi32>
    %225 = arith.andi %222, %224 : vector<1x512xi1>
    %c2_i32_82 = arith.constant 2 : i32
    %226 = vector.broadcast %c2_i32_82 : i32 to vector<1x512xi32>
    %227 = arith.addi %4, %226 : vector<1x512xi32>
    %c0_i32_83 = arith.constant 0 : i32
    %228 = vector.broadcast %c0_i32_83 : i32 to vector<1x512xi32>
    %229 = arith.addi %6, %228 : vector<1x512xi32>
    %c0_i32_84 = arith.constant 0 : i32
    %230 = vector.broadcast %c0_i32_84 : i32 to vector<1x512xi32>
    %231 = arith.cmpi sge, %227, %230 : vector<1x512xi32>
    %c16_i32_85 = arith.constant 16 : i32
    %232 = vector.broadcast %c16_i32_85 : i32 to vector<1x512xi32>
    %233 = arith.cmpi slt, %227, %232 : vector<1x512xi32>
    %234 = arith.andi %231, %233 : vector<1x512xi1>
    %c0_i32_86 = arith.constant 0 : i32
    %235 = vector.broadcast %c0_i32_86 : i32 to vector<1x512xi32>
    %236 = arith.cmpi sge, %229, %235 : vector<1x512xi32>
    %237 = arith.andi %234, %236 : vector<1x512xi1>
    %c16_i32_87 = arith.constant 16 : i32
    %238 = vector.broadcast %c16_i32_87 : i32 to vector<1x512xi32>
    %239 = arith.cmpi slt, %229, %238 : vector<1x512xi32>
    %240 = arith.andi %237, %239 : vector<1x512xi1>
    %c2_i32_88 = arith.constant 2 : i32
    %241 = vector.broadcast %c2_i32_88 : i32 to vector<1x512xi32>
    %242 = arith.addi %4, %241 : vector<1x512xi32>
    %c2_i32_89 = arith.constant 2 : i32
    %243 = vector.broadcast %c2_i32_89 : i32 to vector<1x512xi32>
    %244 = arith.addi %6, %243 : vector<1x512xi32>
    %c0_i32_90 = arith.constant 0 : i32
    %245 = vector.broadcast %c0_i32_90 : i32 to vector<1x512xi32>
    %246 = arith.cmpi sge, %242, %245 : vector<1x512xi32>
    %c16_i32_91 = arith.constant 16 : i32
    %247 = vector.broadcast %c16_i32_91 : i32 to vector<1x512xi32>
    %248 = arith.cmpi slt, %242, %247 : vector<1x512xi32>
    %249 = arith.andi %246, %248 : vector<1x512xi1>
    %c0_i32_92 = arith.constant 0 : i32
    %250 = vector.broadcast %c0_i32_92 : i32 to vector<1x512xi32>
    %251 = arith.cmpi sge, %244, %250 : vector<1x512xi32>
    %252 = arith.andi %249, %251 : vector<1x512xi1>
    %c16_i32_93 = arith.constant 16 : i32
    %253 = vector.broadcast %c16_i32_93 : i32 to vector<1x512xi32>
    %254 = arith.cmpi slt, %244, %253 : vector<1x512xi32>
    %255 = arith.andi %252, %254 : vector<1x512xi1>
    %c0 = arith.constant 0 : index
    %c0_94 = arith.constant 0 : index
    %256 = vector.load %arg3[%c0, %c0_94] : memref<8x512xf32, #tpu.memory_space<vmem>>, vector<8x512xf32>
    %c0_95 = arith.constant 0 : index
    %c0_96 = arith.constant 0 : index
    %257 = vector.load %arg4[%c0_95, %c0_96] : memref<8x512xf32, #tpu.memory_space<vmem>>, vector<8x512xf32>
    %c511_i32 = arith.constant 511 : i32
    %258 = tpu.dynamic_rotate %256 by %c511_i32 dim 1 : vector<8x512xf32>, i32 -> vector<8x512xf32>
    %259 = arith.addf %256, %258 : vector<8x512xf32>
    %c496_i32 = arith.constant 496 : i32
    %260 = tpu.dynamic_rotate %256 by %c496_i32 dim 1 : vector<8x512xf32>, i32 -> vector<8x512xf32>
    %261 = arith.addf %259, %260 : vector<8x512xf32>
    %c495_i32 = arith.constant 495 : i32
    %262 = tpu.dynamic_rotate %256 by %c495_i32 dim 1 : vector<8x512xf32>, i32 -> vector<8x512xf32>
    %263 = arith.addf %261, %262 : vector<8x512xf32>
    %cst = arith.constant 2.500000e-01 : f32
    %264 = vector.broadcast %cst : f32 to vector<8x512xf32>
    %265 = arith.mulf %264, %263 : vector<8x512xf32>
    %cst_97 = arith.constant 0.000000e+00 : f32
    %266 = vector.shape_cast %15 : vector<1x512xi1> to vector<1x512xi1>
    %267 = vector.broadcast %266 : vector<1x512xi1> to vector<8x512xi1>
    %268 = vector.broadcast %cst_97 : f32 to vector<8x512xf32>
    %269 = arith.select %267, %265, %268 : vector<8x512xi1>, vector<8x512xf32>
    %c34_i32 = arith.constant 34 : i32
    %270 = tpu.dynamic_rotate %269 by %c34_i32 dim 1 : vector<8x512xf32>, i32 -> vector<8x512xf32>
    %cst_98 = arith.constant 0.000000e+00 : f32
    %271 = vector.shape_cast %150 : vector<1x512xi1> to vector<1x512xi1>
    %272 = vector.broadcast %271 : vector<1x512xi1> to vector<8x512xi1>
    %273 = vector.broadcast %cst_98 : f32 to vector<8x512xf32>
    %274 = arith.select %272, %270, %273 : vector<8x512xi1>, vector<8x512xf32>
    %c32_i32 = arith.constant 32 : i32
    %275 = tpu.dynamic_rotate %269 by %c32_i32 dim 1 : vector<8x512xf32>, i32 -> vector<8x512xf32>
    %cst_99 = arith.constant 0.000000e+00 : f32
    %276 = vector.shape_cast %165 : vector<1x512xi1> to vector<1x512xi1>
    %277 = vector.broadcast %276 : vector<1x512xi1> to vector<8x512xi1>
    %278 = vector.broadcast %cst_99 : f32 to vector<8x512xf32>
    %279 = arith.select %277, %275, %278 : vector<8x512xi1>, vector<8x512xf32>
    %c30_i32 = arith.constant 30 : i32
    %280 = tpu.dynamic_rotate %269 by %c30_i32 dim 1 : vector<8x512xf32>, i32 -> vector<8x512xf32>
    %cst_100 = arith.constant 0.000000e+00 : f32
    %281 = vector.shape_cast %180 : vector<1x512xi1> to vector<1x512xi1>
    %282 = vector.broadcast %281 : vector<1x512xi1> to vector<8x512xi1>
    %283 = vector.broadcast %cst_100 : f32 to vector<8x512xf32>
    %284 = arith.select %282, %280, %283 : vector<8x512xi1>, vector<8x512xf32>
    %c2_i32_101 = arith.constant 2 : i32
    %285 = tpu.dynamic_rotate %269 by %c2_i32_101 dim 1 : vector<8x512xf32>, i32 -> vector<8x512xf32>
    %cst_102 = arith.constant 0.000000e+00 : f32
    %286 = vector.shape_cast %195 : vector<1x512xi1> to vector<1x512xi1>
    %287 = vector.broadcast %286 : vector<1x512xi1> to vector<8x512xi1>
    %288 = vector.broadcast %cst_102 : f32 to vector<8x512xf32>
    %289 = arith.select %287, %285, %288 : vector<8x512xi1>, vector<8x512xf32>
    %c510_i32 = arith.constant 510 : i32
    %290 = tpu.dynamic_rotate %269 by %c510_i32 dim 1 : vector<8x512xf32>, i32 -> vector<8x512xf32>
    %cst_103 = arith.constant 0.000000e+00 : f32
    %291 = vector.shape_cast %210 : vector<1x512xi1> to vector<1x512xi1>
    %292 = vector.broadcast %291 : vector<1x512xi1> to vector<8x512xi1>
    %293 = vector.broadcast %cst_103 : f32 to vector<8x512xf32>
    %294 = arith.select %292, %290, %293 : vector<8x512xi1>, vector<8x512xf32>
    %c482_i32 = arith.constant 482 : i32
    %295 = tpu.dynamic_rotate %269 by %c482_i32 dim 1 : vector<8x512xf32>, i32 -> vector<8x512xf32>
    %cst_104 = arith.constant 0.000000e+00 : f32
    %296 = vector.shape_cast %225 : vector<1x512xi1> to vector<1x512xi1>
    %297 = vector.broadcast %296 : vector<1x512xi1> to vector<8x512xi1>
    %298 = vector.broadcast %cst_104 : f32 to vector<8x512xf32>
    %299 = arith.select %297, %295, %298 : vector<8x512xi1>, vector<8x512xf32>
    %c480_i32 = arith.constant 480 : i32
    %300 = tpu.dynamic_rotate %269 by %c480_i32 dim 1 : vector<8x512xf32>, i32 -> vector<8x512xf32>
    %cst_105 = arith.constant 0.000000e+00 : f32
    %301 = vector.shape_cast %240 : vector<1x512xi1> to vector<1x512xi1>
    %302 = vector.broadcast %301 : vector<1x512xi1> to vector<8x512xi1>
    %303 = vector.broadcast %cst_105 : f32 to vector<8x512xf32>
    %304 = arith.select %302, %300, %303 : vector<8x512xi1>, vector<8x512xf32>
    %c478_i32 = arith.constant 478 : i32
    %305 = tpu.dynamic_rotate %269 by %c478_i32 dim 1 : vector<8x512xf32>, i32 -> vector<8x512xf32>
    %cst_106 = arith.constant 0.000000e+00 : f32
    %306 = vector.shape_cast %255 : vector<1x512xi1> to vector<1x512xi1>
    %307 = vector.broadcast %306 : vector<1x512xi1> to vector<8x512xi1>
    %308 = vector.broadcast %cst_106 : f32 to vector<8x512xf32>
    %309 = arith.select %307, %305, %308 : vector<8x512xi1>, vector<8x512xf32>
    %310 = tpu.concatenate %274, %279, %284, %289, %269, %294, %299, %304, %309 in 0 : vector<8x512xf32>, vector<8x512xf32>, vector<8x512xf32>, vector<8x512xf32>, vector<8x512xf32>, vector<8x512xf32>, vector<8x512xf32>, vector<8x512xf32>, vector<8x512xf32> -> vector<72x512xf32>
    %c0_107 = arith.constant 0 : index
    %c0_108 = arith.constant 0 : index
    %c0_109 = arith.constant 0 : index
    %311 = vector.load %arg1[%c0_107, %c0_108, %c0_109] : memref<12x8x72xf32, #tpu.memory_space<vmem>>, vector<1x8x72xf32>
    %312 = vector.shape_cast %311 : vector<1x8x72xf32> to vector<8x72xf32>
    %cst_110 = arith.constant dense<0.000000e+00> : vector<8x512xf32>
    %313 = tpu.matmul %312, %310, %cst_110 {dimension_numbers = #tpu.dot_dimension_numbers<[1], [0], [0], [1], [0, 0, 1, 1], [], []>} : vector<8x72xf32>, vector<72x512xf32>, vector<8x512xf32> -> vector<8x512xf32>
    %c0_111 = arith.constant 0 : index
    %c0_112 = arith.constant 0 : index
    %c0_113 = arith.constant 0 : index
    %314 = vector.load %arg2[%c0_111, %c0_112, %c0_113] : memref<12x8x1xf32, #tpu.memory_space<vmem>>, vector<1x8x1xf32>
    %315 = vector.shape_cast %314 : vector<1x8x1xf32> to vector<8x1xf32>
    %316 = vector.broadcast %315 : vector<8x1xf32> to vector<8x512xf32>
    %317 = arith.addf %313, %316 : vector<8x512xf32>
    %cst_114 = arith.constant 0.000000e+00 : f32
    %318 = vector.broadcast %cst_114 : f32 to vector<8x512xf32>
    %319 = arith.maximumf %317, %318 : vector<8x512xf32>
    %c34_i32_115 = arith.constant 34 : i32
    %320 = tpu.dynamic_rotate %319 by %c34_i32_115 dim 1 : vector<8x512xf32>, i32 -> vector<8x512xf32>
    %cst_116 = arith.constant 0.000000e+00 : f32
    %321 = vector.shape_cast %150 : vector<1x512xi1> to vector<1x512xi1>
    %322 = vector.broadcast %321 : vector<1x512xi1> to vector<8x512xi1>
    %323 = vector.broadcast %cst_116 : f32 to vector<8x512xf32>
    %324 = arith.select %322, %320, %323 : vector<8x512xi1>, vector<8x512xf32>
    %c32_i32_117 = arith.constant 32 : i32
    %325 = tpu.dynamic_rotate %319 by %c32_i32_117 dim 1 : vector<8x512xf32>, i32 -> vector<8x512xf32>
    %cst_118 = arith.constant 0.000000e+00 : f32
    %326 = vector.shape_cast %165 : vector<1x512xi1> to vector<1x512xi1>
    %327 = vector.broadcast %326 : vector<1x512xi1> to vector<8x512xi1>
    %328 = vector.broadcast %cst_118 : f32 to vector<8x512xf32>
    %329 = arith.select %327, %325, %328 : vector<8x512xi1>, vector<8x512xf32>
    %c30_i32_119 = arith.constant 30 : i32
    %330 = tpu.dynamic_rotate %319 by %c30_i32_119 dim 1 : vector<8x512xf32>, i32 -> vector<8x512xf32>
    %cst_120 = arith.constant 0.000000e+00 : f32
    %331 = vector.shape_cast %180 : vector<1x512xi1> to vector<1x512xi1>
    %332 = vector.broadcast %331 : vector<1x512xi1> to vector<8x512xi1>
    %333 = vector.broadcast %cst_120 : f32 to vector<8x512xf32>
    %334 = arith.select %332, %330, %333 : vector<8x512xi1>, vector<8x512xf32>
    %c2_i32_121 = arith.constant 2 : i32
    %335 = tpu.dynamic_rotate %319 by %c2_i32_121 dim 1 : vector<8x512xf32>, i32 -> vector<8x512xf32>
    %cst_122 = arith.constant 0.000000e+00 : f32
    %336 = vector.shape_cast %195 : vector<1x512xi1> to vector<1x512xi1>
    %337 = vector.broadcast %336 : vector<1x512xi1> to vector<8x512xi1>
    %338 = vector.broadcast %cst_122 : f32 to vector<8x512xf32>
    %339 = arith.select %337, %335, %338 : vector<8x512xi1>, vector<8x512xf32>
    %c510_i32_123 = arith.constant 510 : i32
    %340 = tpu.dynamic_rotate %319 by %c510_i32_123 dim 1 : vector<8x512xf32>, i32 -> vector<8x512xf32>
    %cst_124 = arith.constant 0.000000e+00 : f32
    %341 = vector.shape_cast %210 : vector<1x512xi1> to vector<1x512xi1>
    %342 = vector.broadcast %341 : vector<1x512xi1> to vector<8x512xi1>
    %343 = vector.broadcast %cst_124 : f32 to vector<8x512xf32>
    %344 = arith.select %342, %340, %343 : vector<8x512xi1>, vector<8x512xf32>
    %c482_i32_125 = arith.constant 482 : i32
    %345 = tpu.dynamic_rotate %319 by %c482_i32_125 dim 1 : vector<8x512xf32>, i32 -> vector<8x512xf32>
    %cst_126 = arith.constant 0.000000e+00 : f32
    %346 = vector.shape_cast %225 : vector<1x512xi1> to vector<1x512xi1>
    %347 = vector.broadcast %346 : vector<1x512xi1> to vector<8x512xi1>
    %348 = vector.broadcast %cst_126 : f32 to vector<8x512xf32>
    %349 = arith.select %347, %345, %348 : vector<8x512xi1>, vector<8x512xf32>
    %c480_i32_127 = arith.constant 480 : i32
    %350 = tpu.dynamic_rotate %319 by %c480_i32_127 dim 1 : vector<8x512xf32>, i32 -> vector<8x512xf32>
    %cst_128 = arith.constant 0.000000e+00 : f32
    %351 = vector.shape_cast %240 : vector<1x512xi1> to vector<1x512xi1>
    %352 = vector.broadcast %351 : vector<1x512xi1> to vector<8x512xi1>
    %353 = vector.broadcast %cst_128 : f32 to vector<8x512xf32>
    %354 = arith.select %352, %350, %353 : vector<8x512xi1>, vector<8x512xf32>
    %c478_i32_129 = arith.constant 478 : i32
    %355 = tpu.dynamic_rotate %319 by %c478_i32_129 dim 1 : vector<8x512xf32>, i32 -> vector<8x512xf32>
    %cst_130 = arith.constant 0.000000e+00 : f32
    %356 = vector.shape_cast %255 : vector<1x512xi1> to vector<1x512xi1>
    %357 = vector.broadcast %356 : vector<1x512xi1> to vector<8x512xi1>
    %358 = vector.broadcast %cst_130 : f32 to vector<8x512xf32>
    %359 = arith.select %357, %355, %358 : vector<8x512xi1>, vector<8x512xf32>
    %360 = tpu.concatenate %324, %329, %334, %339, %319, %344, %349, %354, %359 in 0 : vector<8x512xf32>, vector<8x512xf32>, vector<8x512xf32>, vector<8x512xf32>, vector<8x512xf32>, vector<8x512xf32>, vector<8x512xf32>, vector<8x512xf32>, vector<8x512xf32> -> vector<72x512xf32>
    %c1 = arith.constant 1 : index
    %c0_131 = arith.constant 0 : index
    %c0_132 = arith.constant 0 : index
    %361 = vector.load %arg1[%c1, %c0_131, %c0_132] : memref<12x8x72xf32, #tpu.memory_space<vmem>>, vector<1x8x72xf32>
    %362 = vector.shape_cast %361 : vector<1x8x72xf32> to vector<8x72xf32>
    %cst_133 = arith.constant dense<0.000000e+00> : vector<8x512xf32>
    %363 = tpu.matmul %362, %360, %cst_133 {dimension_numbers = #tpu.dot_dimension_numbers<[1], [0], [0], [1], [0, 0, 1, 1], [], []>} : vector<8x72xf32>, vector<72x512xf32>, vector<8x512xf32> -> vector<8x512xf32>
    %c1_134 = arith.constant 1 : index
    %c0_135 = arith.constant 0 : index
    %c0_136 = arith.constant 0 : index
    %364 = vector.load %arg2[%c1_134, %c0_135, %c0_136] : memref<12x8x1xf32, #tpu.memory_space<vmem>>, vector<1x8x1xf32>
    %365 = vector.shape_cast %364 : vector<1x8x1xf32> to vector<8x1xf32>
    %366 = vector.broadcast %365 : vector<8x1xf32> to vector<8x512xf32>
    %367 = arith.addf %363, %366 : vector<8x512xf32>
    %368 = arith.addf %367, %269 : vector<8x512xf32>
    %cst_137 = arith.constant 0.000000e+00 : f32
    %369 = vector.broadcast %cst_137 : f32 to vector<8x512xf32>
    %370 = arith.maximumf %368, %369 : vector<8x512xf32>
    %cst_138 = arith.constant 0.000000e+00 : f32
    %371 = vector.shape_cast %15 : vector<1x512xi1> to vector<1x512xi1>
    %372 = vector.broadcast %371 : vector<1x512xi1> to vector<8x512xi1>
    %373 = vector.broadcast %cst_138 : f32 to vector<8x512xf32>
    %374 = arith.select %372, %370, %373 : vector<8x512xi1>, vector<8x512xf32>
    %c1_i32_139 = arith.constant 1 : i32
    %375 = tpu.dynamic_rotate %374 by %c1_i32_139 dim 1 : vector<8x512xf32>, i32 -> vector<8x512xf32>
    %376 = arith.addf %374, %375 : vector<8x512xf32>
    %c16_i32_140 = arith.constant 16 : i32
    %377 = tpu.dynamic_rotate %374 by %c16_i32_140 dim 1 : vector<8x512xf32>, i32 -> vector<8x512xf32>
    %378 = arith.addf %376, %377 : vector<8x512xf32>
    %c17_i32 = arith.constant 17 : i32
    %379 = tpu.dynamic_rotate %374 by %c17_i32 dim 1 : vector<8x512xf32>, i32 -> vector<8x512xf32>
    %380 = arith.addf %378, %379 : vector<8x512xf32>
    %381 = arith.addf %256, %380 : vector<8x512xf32>
    %c17_i32_141 = arith.constant 17 : i32
    %382 = tpu.dynamic_rotate %381 by %c17_i32_141 dim 1 : vector<8x512xf32>, i32 -> vector<8x512xf32>
    %cst_142 = arith.constant 0.000000e+00 : f32
    %383 = vector.shape_cast %30 : vector<1x512xi1> to vector<1x512xi1>
    %384 = vector.broadcast %383 : vector<1x512xi1> to vector<8x512xi1>
    %385 = vector.broadcast %cst_142 : f32 to vector<8x512xf32>
    %386 = arith.select %384, %382, %385 : vector<8x512xi1>, vector<8x512xf32>
    %c16_i32_143 = arith.constant 16 : i32
    %387 = tpu.dynamic_rotate %381 by %c16_i32_143 dim 1 : vector<8x512xf32>, i32 -> vector<8x512xf32>
    %cst_144 = arith.constant 0.000000e+00 : f32
    %388 = vector.shape_cast %45 : vector<1x512xi1> to vector<1x512xi1>
    %389 = vector.broadcast %388 : vector<1x512xi1> to vector<8x512xi1>
    %390 = vector.broadcast %cst_144 : f32 to vector<8x512xf32>
    %391 = arith.select %389, %387, %390 : vector<8x512xi1>, vector<8x512xf32>
    %c15_i32_145 = arith.constant 15 : i32
    %392 = tpu.dynamic_rotate %381 by %c15_i32_145 dim 1 : vector<8x512xf32>, i32 -> vector<8x512xf32>
    %cst_146 = arith.constant 0.000000e+00 : f32
    %393 = vector.shape_cast %60 : vector<1x512xi1> to vector<1x512xi1>
    %394 = vector.broadcast %393 : vector<1x512xi1> to vector<8x512xi1>
    %395 = vector.broadcast %cst_146 : f32 to vector<8x512xf32>
    %396 = arith.select %394, %392, %395 : vector<8x512xi1>, vector<8x512xf32>
    %c1_i32_147 = arith.constant 1 : i32
    %397 = tpu.dynamic_rotate %381 by %c1_i32_147 dim 1 : vector<8x512xf32>, i32 -> vector<8x512xf32>
    %cst_148 = arith.constant 0.000000e+00 : f32
    %398 = vector.shape_cast %75 : vector<1x512xi1> to vector<1x512xi1>
    %399 = vector.broadcast %398 : vector<1x512xi1> to vector<8x512xi1>
    %400 = vector.broadcast %cst_148 : f32 to vector<8x512xf32>
    %401 = arith.select %399, %397, %400 : vector<8x512xi1>, vector<8x512xf32>
    %c511_i32_149 = arith.constant 511 : i32
    %402 = tpu.dynamic_rotate %381 by %c511_i32_149 dim 1 : vector<8x512xf32>, i32 -> vector<8x512xf32>
    %cst_150 = arith.constant 0.000000e+00 : f32
    %403 = vector.shape_cast %90 : vector<1x512xi1> to vector<1x512xi1>
    %404 = vector.broadcast %403 : vector<1x512xi1> to vector<8x512xi1>
    %405 = vector.broadcast %cst_150 : f32 to vector<8x512xf32>
    %406 = arith.select %404, %402, %405 : vector<8x512xi1>, vector<8x512xf32>
    %c497_i32 = arith.constant 497 : i32
    %407 = tpu.dynamic_rotate %381 by %c497_i32 dim 1 : vector<8x512xf32>, i32 -> vector<8x512xf32>
    %cst_151 = arith.constant 0.000000e+00 : f32
    %408 = vector.shape_cast %105 : vector<1x512xi1> to vector<1x512xi1>
    %409 = vector.broadcast %408 : vector<1x512xi1> to vector<8x512xi1>
    %410 = vector.broadcast %cst_151 : f32 to vector<8x512xf32>
    %411 = arith.select %409, %407, %410 : vector<8x512xi1>, vector<8x512xf32>
    %c496_i32_152 = arith.constant 496 : i32
    %412 = tpu.dynamic_rotate %381 by %c496_i32_152 dim 1 : vector<8x512xf32>, i32 -> vector<8x512xf32>
    %cst_153 = arith.constant 0.000000e+00 : f32
    %413 = vector.shape_cast %120 : vector<1x512xi1> to vector<1x512xi1>
    %414 = vector.broadcast %413 : vector<1x512xi1> to vector<8x512xi1>
    %415 = vector.broadcast %cst_153 : f32 to vector<8x512xf32>
    %416 = arith.select %414, %412, %415 : vector<8x512xi1>, vector<8x512xf32>
    %c495_i32_154 = arith.constant 495 : i32
    %417 = tpu.dynamic_rotate %381 by %c495_i32_154 dim 1 : vector<8x512xf32>, i32 -> vector<8x512xf32>
    %cst_155 = arith.constant 0.000000e+00 : f32
    %418 = vector.shape_cast %135 : vector<1x512xi1> to vector<1x512xi1>
    %419 = vector.broadcast %418 : vector<1x512xi1> to vector<8x512xi1>
    %420 = vector.broadcast %cst_155 : f32 to vector<8x512xf32>
    %421 = arith.select %419, %417, %420 : vector<8x512xi1>, vector<8x512xf32>
    %422 = tpu.concatenate %386, %391, %396, %401, %381, %406, %411, %416, %421 in 0 : vector<8x512xf32>, vector<8x512xf32>, vector<8x512xf32>, vector<8x512xf32>, vector<8x512xf32>, vector<8x512xf32>, vector<8x512xf32>, vector<8x512xf32>, vector<8x512xf32> -> vector<72x512xf32>
    %c2 = arith.constant 2 : index
    %c0_156 = arith.constant 0 : index
    %c0_157 = arith.constant 0 : index
    %423 = vector.load %arg1[%c2, %c0_156, %c0_157] : memref<12x8x72xf32, #tpu.memory_space<vmem>>, vector<1x8x72xf32>
    %424 = vector.shape_cast %423 : vector<1x8x72xf32> to vector<8x72xf32>
    %cst_158 = arith.constant dense<0.000000e+00> : vector<8x512xf32>
    %425 = tpu.matmul %424, %422, %cst_158 {dimension_numbers = #tpu.dot_dimension_numbers<[1], [0], [0], [1], [0, 0, 1, 1], [], []>} : vector<8x72xf32>, vector<72x512xf32>, vector<8x512xf32> -> vector<8x512xf32>
    %c2_159 = arith.constant 2 : index
    %c0_160 = arith.constant 0 : index
    %c0_161 = arith.constant 0 : index
    %426 = vector.load %arg2[%c2_159, %c0_160, %c0_161] : memref<12x8x1xf32, #tpu.memory_space<vmem>>, vector<1x8x1xf32>
    %427 = vector.shape_cast %426 : vector<1x8x1xf32> to vector<8x1xf32>
    %428 = vector.broadcast %427 : vector<8x1xf32> to vector<8x512xf32>
    %429 = arith.addf %425, %428 : vector<8x512xf32>
    %cst_162 = arith.constant 0.000000e+00 : f32
    %430 = vector.broadcast %cst_162 : f32 to vector<8x512xf32>
    %431 = arith.maximumf %429, %430 : vector<8x512xf32>
    %c17_i32_163 = arith.constant 17 : i32
    %432 = tpu.dynamic_rotate %431 by %c17_i32_163 dim 1 : vector<8x512xf32>, i32 -> vector<8x512xf32>
    %cst_164 = arith.constant 0.000000e+00 : f32
    %433 = vector.shape_cast %30 : vector<1x512xi1> to vector<1x512xi1>
    %434 = vector.broadcast %433 : vector<1x512xi1> to vector<8x512xi1>
    %435 = vector.broadcast %cst_164 : f32 to vector<8x512xf32>
    %436 = arith.select %434, %432, %435 : vector<8x512xi1>, vector<8x512xf32>
    %c16_i32_165 = arith.constant 16 : i32
    %437 = tpu.dynamic_rotate %431 by %c16_i32_165 dim 1 : vector<8x512xf32>, i32 -> vector<8x512xf32>
    %cst_166 = arith.constant 0.000000e+00 : f32
    %438 = vector.shape_cast %45 : vector<1x512xi1> to vector<1x512xi1>
    %439 = vector.broadcast %438 : vector<1x512xi1> to vector<8x512xi1>
    %440 = vector.broadcast %cst_166 : f32 to vector<8x512xf32>
    %441 = arith.select %439, %437, %440 : vector<8x512xi1>, vector<8x512xf32>
    %c15_i32_167 = arith.constant 15 : i32
    %442 = tpu.dynamic_rotate %431 by %c15_i32_167 dim 1 : vector<8x512xf32>, i32 -> vector<8x512xf32>
    %cst_168 = arith.constant 0.000000e+00 : f32
    %443 = vector.shape_cast %60 : vector<1x512xi1> to vector<1x512xi1>
    %444 = vector.broadcast %443 : vector<1x512xi1> to vector<8x512xi1>
    %445 = vector.broadcast %cst_168 : f32 to vector<8x512xf32>
    %446 = arith.select %444, %442, %445 : vector<8x512xi1>, vector<8x512xf32>
    %c1_i32_169 = arith.constant 1 : i32
    %447 = tpu.dynamic_rotate %431 by %c1_i32_169 dim 1 : vector<8x512xf32>, i32 -> vector<8x512xf32>
    %cst_170 = arith.constant 0.000000e+00 : f32
    %448 = vector.shape_cast %75 : vector<1x512xi1> to vector<1x512xi1>
    %449 = vector.broadcast %448 : vector<1x512xi1> to vector<8x512xi1>
    %450 = vector.broadcast %cst_170 : f32 to vector<8x512xf32>
    %451 = arith.select %449, %447, %450 : vector<8x512xi1>, vector<8x512xf32>
    %c511_i32_171 = arith.constant 511 : i32
    %452 = tpu.dynamic_rotate %431 by %c511_i32_171 dim 1 : vector<8x512xf32>, i32 -> vector<8x512xf32>
    %cst_172 = arith.constant 0.000000e+00 : f32
    %453 = vector.shape_cast %90 : vector<1x512xi1> to vector<1x512xi1>
    %454 = vector.broadcast %453 : vector<1x512xi1> to vector<8x512xi1>
    %455 = vector.broadcast %cst_172 : f32 to vector<8x512xf32>
    %456 = arith.select %454, %452, %455 : vector<8x512xi1>, vector<8x512xf32>
    %c497_i32_173 = arith.constant 497 : i32
    %457 = tpu.dynamic_rotate %431 by %c497_i32_173 dim 1 : vector<8x512xf32>, i32 -> vector<8x512xf32>
    %cst_174 = arith.constant 0.000000e+00 : f32
    %458 = vector.shape_cast %105 : vector<1x512xi1> to vector<1x512xi1>
    %459 = vector.broadcast %458 : vector<1x512xi1> to vector<8x512xi1>
    %460 = vector.broadcast %cst_174 : f32 to vector<8x512xf32>
    %461 = arith.select %459, %457, %460 : vector<8x512xi1>, vector<8x512xf32>
    %c496_i32_175 = arith.constant 496 : i32
    %462 = tpu.dynamic_rotate %431 by %c496_i32_175 dim 1 : vector<8x512xf32>, i32 -> vector<8x512xf32>
    %cst_176 = arith.constant 0.000000e+00 : f32
    %463 = vector.shape_cast %120 : vector<1x512xi1> to vector<1x512xi1>
    %464 = vector.broadcast %463 : vector<1x512xi1> to vector<8x512xi1>
    %465 = vector.broadcast %cst_176 : f32 to vector<8x512xf32>
    %466 = arith.select %464, %462, %465 : vector<8x512xi1>, vector<8x512xf32>
    %c495_i32_177 = arith.constant 495 : i32
    %467 = tpu.dynamic_rotate %431 by %c495_i32_177 dim 1 : vector<8x512xf32>, i32 -> vector<8x512xf32>
    %cst_178 = arith.constant 0.000000e+00 : f32
    %468 = vector.shape_cast %135 : vector<1x512xi1> to vector<1x512xi1>
    %469 = vector.broadcast %468 : vector<1x512xi1> to vector<8x512xi1>
    %470 = vector.broadcast %cst_178 : f32 to vector<8x512xf32>
    %471 = arith.select %469, %467, %470 : vector<8x512xi1>, vector<8x512xf32>
    %472 = tpu.concatenate %436, %441, %446, %451, %431, %456, %461, %466, %471 in 0 : vector<8x512xf32>, vector<8x512xf32>, vector<8x512xf32>, vector<8x512xf32>, vector<8x512xf32>, vector<8x512xf32>, vector<8x512xf32>, vector<8x512xf32>, vector<8x512xf32> -> vector<72x512xf32>
    %c3 = arith.constant 3 : index
    %c0_179 = arith.constant 0 : index
    %c0_180 = arith.constant 0 : index
    %473 = vector.load %arg1[%c3, %c0_179, %c0_180] : memref<12x8x72xf32, #tpu.memory_space<vmem>>, vector<1x8x72xf32>
    %474 = vector.shape_cast %473 : vector<1x8x72xf32> to vector<8x72xf32>
    %cst_181 = arith.constant dense<0.000000e+00> : vector<8x512xf32>
    %475 = tpu.matmul %474, %472, %cst_181 {dimension_numbers = #tpu.dot_dimension_numbers<[1], [0], [0], [1], [0, 0, 1, 1], [], []>} : vector<8x72xf32>, vector<72x512xf32>, vector<8x512xf32> -> vector<8x512xf32>
    %c3_182 = arith.constant 3 : index
    %c0_183 = arith.constant 0 : index
    %c0_184 = arith.constant 0 : index
    %476 = vector.load %arg2[%c3_182, %c0_183, %c0_184] : memref<12x8x1xf32, #tpu.memory_space<vmem>>, vector<1x8x1xf32>
    %477 = vector.shape_cast %476 : vector<1x8x1xf32> to vector<8x1xf32>
    %478 = vector.broadcast %477 : vector<8x1xf32> to vector<8x512xf32>
    %479 = arith.addf %475, %478 : vector<8x512xf32>
    %480 = arith.addf %479, %381 : vector<8x512xf32>
    %cst_185 = arith.constant 0.000000e+00 : f32
    %481 = vector.broadcast %cst_185 : f32 to vector<8x512xf32>
    %482 = arith.maximumf %480, %481 : vector<8x512xf32>
    %c17_i32_186 = arith.constant 17 : i32
    %483 = tpu.dynamic_rotate %257 by %c17_i32_186 dim 1 : vector<8x512xf32>, i32 -> vector<8x512xf32>
    %cst_187 = arith.constant 0.000000e+00 : f32
    %484 = vector.shape_cast %30 : vector<1x512xi1> to vector<1x512xi1>
    %485 = vector.broadcast %484 : vector<1x512xi1> to vector<8x512xi1>
    %486 = vector.broadcast %cst_187 : f32 to vector<8x512xf32>
    %487 = arith.select %485, %483, %486 : vector<8x512xi1>, vector<8x512xf32>
    %c16_i32_188 = arith.constant 16 : i32
    %488 = tpu.dynamic_rotate %257 by %c16_i32_188 dim 1 : vector<8x512xf32>, i32 -> vector<8x512xf32>
    %cst_189 = arith.constant 0.000000e+00 : f32
    %489 = vector.shape_cast %45 : vector<1x512xi1> to vector<1x512xi1>
    %490 = vector.broadcast %489 : vector<1x512xi1> to vector<8x512xi1>
    %491 = vector.broadcast %cst_189 : f32 to vector<8x512xf32>
    %492 = arith.select %490, %488, %491 : vector<8x512xi1>, vector<8x512xf32>
    %c15_i32_190 = arith.constant 15 : i32
    %493 = tpu.dynamic_rotate %257 by %c15_i32_190 dim 1 : vector<8x512xf32>, i32 -> vector<8x512xf32>
    %cst_191 = arith.constant 0.000000e+00 : f32
    %494 = vector.shape_cast %60 : vector<1x512xi1> to vector<1x512xi1>
    %495 = vector.broadcast %494 : vector<1x512xi1> to vector<8x512xi1>
    %496 = vector.broadcast %cst_191 : f32 to vector<8x512xf32>
    %497 = arith.select %495, %493, %496 : vector<8x512xi1>, vector<8x512xf32>
    %c1_i32_192 = arith.constant 1 : i32
    %498 = tpu.dynamic_rotate %257 by %c1_i32_192 dim 1 : vector<8x512xf32>, i32 -> vector<8x512xf32>
    %cst_193 = arith.constant 0.000000e+00 : f32
    %499 = vector.shape_cast %75 : vector<1x512xi1> to vector<1x512xi1>
    %500 = vector.broadcast %499 : vector<1x512xi1> to vector<8x512xi1>
    %501 = vector.broadcast %cst_193 : f32 to vector<8x512xf32>
    %502 = arith.select %500, %498, %501 : vector<8x512xi1>, vector<8x512xf32>
    %c511_i32_194 = arith.constant 511 : i32
    %503 = tpu.dynamic_rotate %257 by %c511_i32_194 dim 1 : vector<8x512xf32>, i32 -> vector<8x512xf32>
    %cst_195 = arith.constant 0.000000e+00 : f32
    %504 = vector.shape_cast %90 : vector<1x512xi1> to vector<1x512xi1>
    %505 = vector.broadcast %504 : vector<1x512xi1> to vector<8x512xi1>
    %506 = vector.broadcast %cst_195 : f32 to vector<8x512xf32>
    %507 = arith.select %505, %503, %506 : vector<8x512xi1>, vector<8x512xf32>
    %c497_i32_196 = arith.constant 497 : i32
    %508 = tpu.dynamic_rotate %257 by %c497_i32_196 dim 1 : vector<8x512xf32>, i32 -> vector<8x512xf32>
    %cst_197 = arith.constant 0.000000e+00 : f32
    %509 = vector.shape_cast %105 : vector<1x512xi1> to vector<1x512xi1>
    %510 = vector.broadcast %509 : vector<1x512xi1> to vector<8x512xi1>
    %511 = vector.broadcast %cst_197 : f32 to vector<8x512xf32>
    %512 = arith.select %510, %508, %511 : vector<8x512xi1>, vector<8x512xf32>
    %c496_i32_198 = arith.constant 496 : i32
    %513 = tpu.dynamic_rotate %257 by %c496_i32_198 dim 1 : vector<8x512xf32>, i32 -> vector<8x512xf32>
    %cst_199 = arith.constant 0.000000e+00 : f32
    %514 = vector.shape_cast %120 : vector<1x512xi1> to vector<1x512xi1>
    %515 = vector.broadcast %514 : vector<1x512xi1> to vector<8x512xi1>
    %516 = vector.broadcast %cst_199 : f32 to vector<8x512xf32>
    %517 = arith.select %515, %513, %516 : vector<8x512xi1>, vector<8x512xf32>
    %c495_i32_200 = arith.constant 495 : i32
    %518 = tpu.dynamic_rotate %257 by %c495_i32_200 dim 1 : vector<8x512xf32>, i32 -> vector<8x512xf32>
    %cst_201 = arith.constant 0.000000e+00 : f32
    %519 = vector.shape_cast %135 : vector<1x512xi1> to vector<1x512xi1>
    %520 = vector.broadcast %519 : vector<1x512xi1> to vector<8x512xi1>
    %521 = vector.broadcast %cst_201 : f32 to vector<8x512xf32>
    %522 = arith.select %520, %518, %521 : vector<8x512xi1>, vector<8x512xf32>
    %523 = tpu.concatenate %487, %492, %497, %502, %257, %507, %512, %517, %522 in 0 : vector<8x512xf32>, vector<8x512xf32>, vector<8x512xf32>, vector<8x512xf32>, vector<8x512xf32>, vector<8x512xf32>, vector<8x512xf32>, vector<8x512xf32>, vector<8x512xf32> -> vector<72x512xf32>
    %c4 = arith.constant 4 : index
    %c0_202 = arith.constant 0 : index
    %c0_203 = arith.constant 0 : index
    %524 = vector.load %arg1[%c4, %c0_202, %c0_203] : memref<12x8x72xf32, #tpu.memory_space<vmem>>, vector<1x8x72xf32>
    %525 = vector.shape_cast %524 : vector<1x8x72xf32> to vector<8x72xf32>
    %cst_204 = arith.constant dense<0.000000e+00> : vector<8x512xf32>
    %526 = tpu.matmul %525, %523, %cst_204 {dimension_numbers = #tpu.dot_dimension_numbers<[1], [0], [0], [1], [0, 0, 1, 1], [], []>} : vector<8x72xf32>, vector<72x512xf32>, vector<8x512xf32> -> vector<8x512xf32>
    %c4_205 = arith.constant 4 : index
    %c0_206 = arith.constant 0 : index
    %c0_207 = arith.constant 0 : index
    %527 = vector.load %arg2[%c4_205, %c0_206, %c0_207] : memref<12x8x1xf32, #tpu.memory_space<vmem>>, vector<1x8x1xf32>
    %528 = vector.shape_cast %527 : vector<1x8x1xf32> to vector<8x1xf32>
    %529 = vector.broadcast %528 : vector<8x1xf32> to vector<8x512xf32>
    %530 = arith.addf %526, %529 : vector<8x512xf32>
    %cst_208 = arith.constant 0.000000e+00 : f32
    %531 = vector.broadcast %cst_208 : f32 to vector<8x512xf32>
    %532 = arith.maximumf %530, %531 : vector<8x512xf32>
    %c17_i32_209 = arith.constant 17 : i32
    %533 = tpu.dynamic_rotate %532 by %c17_i32_209 dim 1 : vector<8x512xf32>, i32 -> vector<8x512xf32>
    %cst_210 = arith.constant 0.000000e+00 : f32
    %534 = vector.shape_cast %30 : vector<1x512xi1> to vector<1x512xi1>
    %535 = vector.broadcast %534 : vector<1x512xi1> to vector<8x512xi1>
    %536 = vector.broadcast %cst_210 : f32 to vector<8x512xf32>
    %537 = arith.select %535, %533, %536 : vector<8x512xi1>, vector<8x512xf32>
    %c16_i32_211 = arith.constant 16 : i32
    %538 = tpu.dynamic_rotate %532 by %c16_i32_211 dim 1 : vector<8x512xf32>, i32 -> vector<8x512xf32>
    %cst_212 = arith.constant 0.000000e+00 : f32
    %539 = vector.shape_cast %45 : vector<1x512xi1> to vector<1x512xi1>
    %540 = vector.broadcast %539 : vector<1x512xi1> to vector<8x512xi1>
    %541 = vector.broadcast %cst_212 : f32 to vector<8x512xf32>
    %542 = arith.select %540, %538, %541 : vector<8x512xi1>, vector<8x512xf32>
    %c15_i32_213 = arith.constant 15 : i32
    %543 = tpu.dynamic_rotate %532 by %c15_i32_213 dim 1 : vector<8x512xf32>, i32 -> vector<8x512xf32>
    %cst_214 = arith.constant 0.000000e+00 : f32
    %544 = vector.shape_cast %60 : vector<1x512xi1> to vector<1x512xi1>
    %545 = vector.broadcast %544 : vector<1x512xi1> to vector<8x512xi1>
    %546 = vector.broadcast %cst_214 : f32 to vector<8x512xf32>
    %547 = arith.select %545, %543, %546 : vector<8x512xi1>, vector<8x512xf32>
    %c1_i32_215 = arith.constant 1 : i32
    %548 = tpu.dynamic_rotate %532 by %c1_i32_215 dim 1 : vector<8x512xf32>, i32 -> vector<8x512xf32>
    %cst_216 = arith.constant 0.000000e+00 : f32
    %549 = vector.shape_cast %75 : vector<1x512xi1> to vector<1x512xi1>
    %550 = vector.broadcast %549 : vector<1x512xi1> to vector<8x512xi1>
    %551 = vector.broadcast %cst_216 : f32 to vector<8x512xf32>
    %552 = arith.select %550, %548, %551 : vector<8x512xi1>, vector<8x512xf32>
    %c511_i32_217 = arith.constant 511 : i32
    %553 = tpu.dynamic_rotate %532 by %c511_i32_217 dim 1 : vector<8x512xf32>, i32 -> vector<8x512xf32>
    %cst_218 = arith.constant 0.000000e+00 : f32
    %554 = vector.shape_cast %90 : vector<1x512xi1> to vector<1x512xi1>
    %555 = vector.broadcast %554 : vector<1x512xi1> to vector<8x512xi1>
    %556 = vector.broadcast %cst_218 : f32 to vector<8x512xf32>
    %557 = arith.select %555, %553, %556 : vector<8x512xi1>, vector<8x512xf32>
    %c497_i32_219 = arith.constant 497 : i32
    %558 = tpu.dynamic_rotate %532 by %c497_i32_219 dim 1 : vector<8x512xf32>, i32 -> vector<8x512xf32>
    %cst_220 = arith.constant 0.000000e+00 : f32
    %559 = vector.shape_cast %105 : vector<1x512xi1> to vector<1x512xi1>
    %560 = vector.broadcast %559 : vector<1x512xi1> to vector<8x512xi1>
    %561 = vector.broadcast %cst_220 : f32 to vector<8x512xf32>
    %562 = arith.select %560, %558, %561 : vector<8x512xi1>, vector<8x512xf32>
    %c496_i32_221 = arith.constant 496 : i32
    %563 = tpu.dynamic_rotate %532 by %c496_i32_221 dim 1 : vector<8x512xf32>, i32 -> vector<8x512xf32>
    %cst_222 = arith.constant 0.000000e+00 : f32
    %564 = vector.shape_cast %120 : vector<1x512xi1> to vector<1x512xi1>
    %565 = vector.broadcast %564 : vector<1x512xi1> to vector<8x512xi1>
    %566 = vector.broadcast %cst_222 : f32 to vector<8x512xf32>
    %567 = arith.select %565, %563, %566 : vector<8x512xi1>, vector<8x512xf32>
    %c495_i32_223 = arith.constant 495 : i32
    %568 = tpu.dynamic_rotate %532 by %c495_i32_223 dim 1 : vector<8x512xf32>, i32 -> vector<8x512xf32>
    %cst_224 = arith.constant 0.000000e+00 : f32
    %569 = vector.shape_cast %135 : vector<1x512xi1> to vector<1x512xi1>
    %570 = vector.broadcast %569 : vector<1x512xi1> to vector<8x512xi1>
    %571 = vector.broadcast %cst_224 : f32 to vector<8x512xf32>
    %572 = arith.select %570, %568, %571 : vector<8x512xi1>, vector<8x512xf32>
    %573 = tpu.concatenate %537, %542, %547, %552, %532, %557, %562, %567, %572 in 0 : vector<8x512xf32>, vector<8x512xf32>, vector<8x512xf32>, vector<8x512xf32>, vector<8x512xf32>, vector<8x512xf32>, vector<8x512xf32>, vector<8x512xf32>, vector<8x512xf32> -> vector<72x512xf32>
    %c5 = arith.constant 5 : index
    %c0_225 = arith.constant 0 : index
    %c0_226 = arith.constant 0 : index
    %574 = vector.load %arg1[%c5, %c0_225, %c0_226] : memref<12x8x72xf32, #tpu.memory_space<vmem>>, vector<1x8x72xf32>
    %575 = vector.shape_cast %574 : vector<1x8x72xf32> to vector<8x72xf32>
    %cst_227 = arith.constant dense<0.000000e+00> : vector<8x512xf32>
    %576 = tpu.matmul %575, %573, %cst_227 {dimension_numbers = #tpu.dot_dimension_numbers<[1], [0], [0], [1], [0, 0, 1, 1], [], []>} : vector<8x72xf32>, vector<72x512xf32>, vector<8x512xf32> -> vector<8x512xf32>
    %c5_228 = arith.constant 5 : index
    %c0_229 = arith.constant 0 : index
    %c0_230 = arith.constant 0 : index
    %577 = vector.load %arg2[%c5_228, %c0_229, %c0_230] : memref<12x8x1xf32, #tpu.memory_space<vmem>>, vector<1x8x1xf32>
    %578 = vector.shape_cast %577 : vector<1x8x1xf32> to vector<8x1xf32>
    %579 = vector.broadcast %578 : vector<8x1xf32> to vector<8x512xf32>
    %580 = arith.addf %576, %579 : vector<8x512xf32>
    %581 = arith.addf %580, %257 : vector<8x512xf32>
    %cst_231 = arith.constant 0.000000e+00 : f32
    %582 = vector.broadcast %cst_231 : f32 to vector<8x512xf32>
    %583 = arith.maximumf %581, %582 : vector<8x512xf32>
    %c17_i32_232 = arith.constant 17 : i32
    %584 = tpu.dynamic_rotate %583 by %c17_i32_232 dim 1 : vector<8x512xf32>, i32 -> vector<8x512xf32>
    %cst_233 = arith.constant 0.000000e+00 : f32
    %585 = vector.shape_cast %30 : vector<1x512xi1> to vector<1x512xi1>
    %586 = vector.broadcast %585 : vector<1x512xi1> to vector<8x512xi1>
    %587 = vector.broadcast %cst_233 : f32 to vector<8x512xf32>
    %588 = arith.select %586, %584, %587 : vector<8x512xi1>, vector<8x512xf32>
    %c16_i32_234 = arith.constant 16 : i32
    %589 = tpu.dynamic_rotate %583 by %c16_i32_234 dim 1 : vector<8x512xf32>, i32 -> vector<8x512xf32>
    %cst_235 = arith.constant 0.000000e+00 : f32
    %590 = vector.shape_cast %45 : vector<1x512xi1> to vector<1x512xi1>
    %591 = vector.broadcast %590 : vector<1x512xi1> to vector<8x512xi1>
    %592 = vector.broadcast %cst_235 : f32 to vector<8x512xf32>
    %593 = arith.select %591, %589, %592 : vector<8x512xi1>, vector<8x512xf32>
    %c15_i32_236 = arith.constant 15 : i32
    %594 = tpu.dynamic_rotate %583 by %c15_i32_236 dim 1 : vector<8x512xf32>, i32 -> vector<8x512xf32>
    %cst_237 = arith.constant 0.000000e+00 : f32
    %595 = vector.shape_cast %60 : vector<1x512xi1> to vector<1x512xi1>
    %596 = vector.broadcast %595 : vector<1x512xi1> to vector<8x512xi1>
    %597 = vector.broadcast %cst_237 : f32 to vector<8x512xf32>
    %598 = arith.select %596, %594, %597 : vector<8x512xi1>, vector<8x512xf32>
    %c1_i32_238 = arith.constant 1 : i32
    %599 = tpu.dynamic_rotate %583 by %c1_i32_238 dim 1 : vector<8x512xf32>, i32 -> vector<8x512xf32>
    %cst_239 = arith.constant 0.000000e+00 : f32
    %600 = vector.shape_cast %75 : vector<1x512xi1> to vector<1x512xi1>
    %601 = vector.broadcast %600 : vector<1x512xi1> to vector<8x512xi1>
    %602 = vector.broadcast %cst_239 : f32 to vector<8x512xf32>
    %603 = arith.select %601, %599, %602 : vector<8x512xi1>, vector<8x512xf32>
    %c511_i32_240 = arith.constant 511 : i32
    %604 = tpu.dynamic_rotate %583 by %c511_i32_240 dim 1 : vector<8x512xf32>, i32 -> vector<8x512xf32>
    %cst_241 = arith.constant 0.000000e+00 : f32
    %605 = vector.shape_cast %90 : vector<1x512xi1> to vector<1x512xi1>
    %606 = vector.broadcast %605 : vector<1x512xi1> to vector<8x512xi1>
    %607 = vector.broadcast %cst_241 : f32 to vector<8x512xf32>
    %608 = arith.select %606, %604, %607 : vector<8x512xi1>, vector<8x512xf32>
    %c497_i32_242 = arith.constant 497 : i32
    %609 = tpu.dynamic_rotate %583 by %c497_i32_242 dim 1 : vector<8x512xf32>, i32 -> vector<8x512xf32>
    %cst_243 = arith.constant 0.000000e+00 : f32
    %610 = vector.shape_cast %105 : vector<1x512xi1> to vector<1x512xi1>
    %611 = vector.broadcast %610 : vector<1x512xi1> to vector<8x512xi1>
    %612 = vector.broadcast %cst_243 : f32 to vector<8x512xf32>
    %613 = arith.select %611, %609, %612 : vector<8x512xi1>, vector<8x512xf32>
    %c496_i32_244 = arith.constant 496 : i32
    %614 = tpu.dynamic_rotate %583 by %c496_i32_244 dim 1 : vector<8x512xf32>, i32 -> vector<8x512xf32>
    %cst_245 = arith.constant 0.000000e+00 : f32
    %615 = vector.shape_cast %120 : vector<1x512xi1> to vector<1x512xi1>
    %616 = vector.broadcast %615 : vector<1x512xi1> to vector<8x512xi1>
    %617 = vector.broadcast %cst_245 : f32 to vector<8x512xf32>
    %618 = arith.select %616, %614, %617 : vector<8x512xi1>, vector<8x512xf32>
    %c495_i32_246 = arith.constant 495 : i32
    %619 = tpu.dynamic_rotate %583 by %c495_i32_246 dim 1 : vector<8x512xf32>, i32 -> vector<8x512xf32>
    %cst_247 = arith.constant 0.000000e+00 : f32
    %620 = vector.shape_cast %135 : vector<1x512xi1> to vector<1x512xi1>
    %621 = vector.broadcast %620 : vector<1x512xi1> to vector<8x512xi1>
    %622 = vector.broadcast %cst_247 : f32 to vector<8x512xf32>
    %623 = arith.select %621, %619, %622 : vector<8x512xi1>, vector<8x512xf32>
    %624 = tpu.concatenate %588, %593, %598, %603, %583, %608, %613, %618, %623 in 0 : vector<8x512xf32>, vector<8x512xf32>, vector<8x512xf32>, vector<8x512xf32>, vector<8x512xf32>, vector<8x512xf32>, vector<8x512xf32>, vector<8x512xf32>, vector<8x512xf32> -> vector<72x512xf32>
    %c6 = arith.constant 6 : index
    %c0_248 = arith.constant 0 : index
    %c0_249 = arith.constant 0 : index
    %625 = vector.load %arg1[%c6, %c0_248, %c0_249] : memref<12x8x72xf32, #tpu.memory_space<vmem>>, vector<1x8x72xf32>
    %626 = vector.shape_cast %625 : vector<1x8x72xf32> to vector<8x72xf32>
    %cst_250 = arith.constant dense<0.000000e+00> : vector<8x512xf32>
    %627 = tpu.matmul %626, %624, %cst_250 {dimension_numbers = #tpu.dot_dimension_numbers<[1], [0], [0], [1], [0, 0, 1, 1], [], []>} : vector<8x72xf32>, vector<72x512xf32>, vector<8x512xf32> -> vector<8x512xf32>
    %c6_251 = arith.constant 6 : index
    %c0_252 = arith.constant 0 : index
    %c0_253 = arith.constant 0 : index
    %628 = vector.load %arg2[%c6_251, %c0_252, %c0_253] : memref<12x8x1xf32, #tpu.memory_space<vmem>>, vector<1x8x1xf32>
    %629 = vector.shape_cast %628 : vector<1x8x1xf32> to vector<8x1xf32>
    %630 = vector.broadcast %629 : vector<8x1xf32> to vector<8x512xf32>
    %631 = arith.addf %627, %630 : vector<8x512xf32>
    %cst_254 = arith.constant 0.000000e+00 : f32
    %632 = vector.broadcast %cst_254 : f32 to vector<8x512xf32>
    %633 = arith.maximumf %631, %632 : vector<8x512xf32>
    %c17_i32_255 = arith.constant 17 : i32
    %634 = tpu.dynamic_rotate %633 by %c17_i32_255 dim 1 : vector<8x512xf32>, i32 -> vector<8x512xf32>
    %cst_256 = arith.constant 0.000000e+00 : f32
    %635 = vector.shape_cast %30 : vector<1x512xi1> to vector<1x512xi1>
    %636 = vector.broadcast %635 : vector<1x512xi1> to vector<8x512xi1>
    %637 = vector.broadcast %cst_256 : f32 to vector<8x512xf32>
    %638 = arith.select %636, %634, %637 : vector<8x512xi1>, vector<8x512xf32>
    %c16_i32_257 = arith.constant 16 : i32
    %639 = tpu.dynamic_rotate %633 by %c16_i32_257 dim 1 : vector<8x512xf32>, i32 -> vector<8x512xf32>
    %cst_258 = arith.constant 0.000000e+00 : f32
    %640 = vector.shape_cast %45 : vector<1x512xi1> to vector<1x512xi1>
    %641 = vector.broadcast %640 : vector<1x512xi1> to vector<8x512xi1>
    %642 = vector.broadcast %cst_258 : f32 to vector<8x512xf32>
    %643 = arith.select %641, %639, %642 : vector<8x512xi1>, vector<8x512xf32>
    %c15_i32_259 = arith.constant 15 : i32
    %644 = tpu.dynamic_rotate %633 by %c15_i32_259 dim 1 : vector<8x512xf32>, i32 -> vector<8x512xf32>
    %cst_260 = arith.constant 0.000000e+00 : f32
    %645 = vector.shape_cast %60 : vector<1x512xi1> to vector<1x512xi1>
    %646 = vector.broadcast %645 : vector<1x512xi1> to vector<8x512xi1>
    %647 = vector.broadcast %cst_260 : f32 to vector<8x512xf32>
    %648 = arith.select %646, %644, %647 : vector<8x512xi1>, vector<8x512xf32>
    %c1_i32_261 = arith.constant 1 : i32
    %649 = tpu.dynamic_rotate %633 by %c1_i32_261 dim 1 : vector<8x512xf32>, i32 -> vector<8x512xf32>
    %cst_262 = arith.constant 0.000000e+00 : f32
    %650 = vector.shape_cast %75 : vector<1x512xi1> to vector<1x512xi1>
    %651 = vector.broadcast %650 : vector<1x512xi1> to vector<8x512xi1>
    %652 = vector.broadcast %cst_262 : f32 to vector<8x512xf32>
    %653 = arith.select %651, %649, %652 : vector<8x512xi1>, vector<8x512xf32>
    %c511_i32_263 = arith.constant 511 : i32
    %654 = tpu.dynamic_rotate %633 by %c511_i32_263 dim 1 : vector<8x512xf32>, i32 -> vector<8x512xf32>
    %cst_264 = arith.constant 0.000000e+00 : f32
    %655 = vector.shape_cast %90 : vector<1x512xi1> to vector<1x512xi1>
    %656 = vector.broadcast %655 : vector<1x512xi1> to vector<8x512xi1>
    %657 = vector.broadcast %cst_264 : f32 to vector<8x512xf32>
    %658 = arith.select %656, %654, %657 : vector<8x512xi1>, vector<8x512xf32>
    %c497_i32_265 = arith.constant 497 : i32
    %659 = tpu.dynamic_rotate %633 by %c497_i32_265 dim 1 : vector<8x512xf32>, i32 -> vector<8x512xf32>
    %cst_266 = arith.constant 0.000000e+00 : f32
    %660 = vector.shape_cast %105 : vector<1x512xi1> to vector<1x512xi1>
    %661 = vector.broadcast %660 : vector<1x512xi1> to vector<8x512xi1>
    %662 = vector.broadcast %cst_266 : f32 to vector<8x512xf32>
    %663 = arith.select %661, %659, %662 : vector<8x512xi1>, vector<8x512xf32>
    %c496_i32_267 = arith.constant 496 : i32
    %664 = tpu.dynamic_rotate %633 by %c496_i32_267 dim 1 : vector<8x512xf32>, i32 -> vector<8x512xf32>
    %cst_268 = arith.constant 0.000000e+00 : f32
    %665 = vector.shape_cast %120 : vector<1x512xi1> to vector<1x512xi1>
    %666 = vector.broadcast %665 : vector<1x512xi1> to vector<8x512xi1>
    %667 = vector.broadcast %cst_268 : f32 to vector<8x512xf32>
    %668 = arith.select %666, %664, %667 : vector<8x512xi1>, vector<8x512xf32>
    %c495_i32_269 = arith.constant 495 : i32
    %669 = tpu.dynamic_rotate %633 by %c495_i32_269 dim 1 : vector<8x512xf32>, i32 -> vector<8x512xf32>
    %cst_270 = arith.constant 0.000000e+00 : f32
    %670 = vector.shape_cast %135 : vector<1x512xi1> to vector<1x512xi1>
    %671 = vector.broadcast %670 : vector<1x512xi1> to vector<8x512xi1>
    %672 = vector.broadcast %cst_270 : f32 to vector<8x512xf32>
    %673 = arith.select %671, %669, %672 : vector<8x512xi1>, vector<8x512xf32>
    %674 = tpu.concatenate %638, %643, %648, %653, %633, %658, %663, %668, %673 in 0 : vector<8x512xf32>, vector<8x512xf32>, vector<8x512xf32>, vector<8x512xf32>, vector<8x512xf32>, vector<8x512xf32>, vector<8x512xf32>, vector<8x512xf32>, vector<8x512xf32> -> vector<72x512xf32>
    %c7 = arith.constant 7 : index
    %c0_271 = arith.constant 0 : index
    %c0_272 = arith.constant 0 : index
    %675 = vector.load %arg1[%c7, %c0_271, %c0_272] : memref<12x8x72xf32, #tpu.memory_space<vmem>>, vector<1x8x72xf32>
    %676 = vector.shape_cast %675 : vector<1x8x72xf32> to vector<8x72xf32>
    %cst_273 = arith.constant dense<0.000000e+00> : vector<8x512xf32>
    %677 = tpu.matmul %676, %674, %cst_273 {dimension_numbers = #tpu.dot_dimension_numbers<[1], [0], [0], [1], [0, 0, 1, 1], [], []>} : vector<8x72xf32>, vector<72x512xf32>, vector<8x512xf32> -> vector<8x512xf32>
    %c7_274 = arith.constant 7 : index
    %c0_275 = arith.constant 0 : index
    %c0_276 = arith.constant 0 : index
    %678 = vector.load %arg2[%c7_274, %c0_275, %c0_276] : memref<12x8x1xf32, #tpu.memory_space<vmem>>, vector<1x8x1xf32>
    %679 = vector.shape_cast %678 : vector<1x8x1xf32> to vector<8x1xf32>
    %680 = vector.broadcast %679 : vector<8x1xf32> to vector<8x512xf32>
    %681 = arith.addf %677, %680 : vector<8x512xf32>
    %682 = arith.addf %681, %583 : vector<8x512xf32>
    %cst_277 = arith.constant 0.000000e+00 : f32
    %683 = vector.broadcast %cst_277 : f32 to vector<8x512xf32>
    %684 = arith.maximumf %682, %683 : vector<8x512xf32>
    %c17_i32_278 = arith.constant 17 : i32
    %685 = tpu.dynamic_rotate %684 by %c17_i32_278 dim 1 : vector<8x512xf32>, i32 -> vector<8x512xf32>
    %cst_279 = arith.constant 0.000000e+00 : f32
    %686 = vector.shape_cast %30 : vector<1x512xi1> to vector<1x512xi1>
    %687 = vector.broadcast %686 : vector<1x512xi1> to vector<8x512xi1>
    %688 = vector.broadcast %cst_279 : f32 to vector<8x512xf32>
    %689 = arith.select %687, %685, %688 : vector<8x512xi1>, vector<8x512xf32>
    %c16_i32_280 = arith.constant 16 : i32
    %690 = tpu.dynamic_rotate %684 by %c16_i32_280 dim 1 : vector<8x512xf32>, i32 -> vector<8x512xf32>
    %cst_281 = arith.constant 0.000000e+00 : f32
    %691 = vector.shape_cast %45 : vector<1x512xi1> to vector<1x512xi1>
    %692 = vector.broadcast %691 : vector<1x512xi1> to vector<8x512xi1>
    %693 = vector.broadcast %cst_281 : f32 to vector<8x512xf32>
    %694 = arith.select %692, %690, %693 : vector<8x512xi1>, vector<8x512xf32>
    %c15_i32_282 = arith.constant 15 : i32
    %695 = tpu.dynamic_rotate %684 by %c15_i32_282 dim 1 : vector<8x512xf32>, i32 -> vector<8x512xf32>
    %cst_283 = arith.constant 0.000000e+00 : f32
    %696 = vector.shape_cast %60 : vector<1x512xi1> to vector<1x512xi1>
    %697 = vector.broadcast %696 : vector<1x512xi1> to vector<8x512xi1>
    %698 = vector.broadcast %cst_283 : f32 to vector<8x512xf32>
    %699 = arith.select %697, %695, %698 : vector<8x512xi1>, vector<8x512xf32>
    %c1_i32_284 = arith.constant 1 : i32
    %700 = tpu.dynamic_rotate %684 by %c1_i32_284 dim 1 : vector<8x512xf32>, i32 -> vector<8x512xf32>
    %cst_285 = arith.constant 0.000000e+00 : f32
    %701 = vector.shape_cast %75 : vector<1x512xi1> to vector<1x512xi1>
    %702 = vector.broadcast %701 : vector<1x512xi1> to vector<8x512xi1>
    %703 = vector.broadcast %cst_285 : f32 to vector<8x512xf32>
    %704 = arith.select %702, %700, %703 : vector<8x512xi1>, vector<8x512xf32>
    %c511_i32_286 = arith.constant 511 : i32
    %705 = tpu.dynamic_rotate %684 by %c511_i32_286 dim 1 : vector<8x512xf32>, i32 -> vector<8x512xf32>
    %cst_287 = arith.constant 0.000000e+00 : f32
    %706 = vector.shape_cast %90 : vector<1x512xi1> to vector<1x512xi1>
    %707 = vector.broadcast %706 : vector<1x512xi1> to vector<8x512xi1>
    %708 = vector.broadcast %cst_287 : f32 to vector<8x512xf32>
    %709 = arith.select %707, %705, %708 : vector<8x512xi1>, vector<8x512xf32>
    %c497_i32_288 = arith.constant 497 : i32
    %710 = tpu.dynamic_rotate %684 by %c497_i32_288 dim 1 : vector<8x512xf32>, i32 -> vector<8x512xf32>
    %cst_289 = arith.constant 0.000000e+00 : f32
    %711 = vector.shape_cast %105 : vector<1x512xi1> to vector<1x512xi1>
    %712 = vector.broadcast %711 : vector<1x512xi1> to vector<8x512xi1>
    %713 = vector.broadcast %cst_289 : f32 to vector<8x512xf32>
    %714 = arith.select %712, %710, %713 : vector<8x512xi1>, vector<8x512xf32>
    %c496_i32_290 = arith.constant 496 : i32
    %715 = tpu.dynamic_rotate %684 by %c496_i32_290 dim 1 : vector<8x512xf32>, i32 -> vector<8x512xf32>
    %cst_291 = arith.constant 0.000000e+00 : f32
    %716 = vector.shape_cast %120 : vector<1x512xi1> to vector<1x512xi1>
    %717 = vector.broadcast %716 : vector<1x512xi1> to vector<8x512xi1>
    %718 = vector.broadcast %cst_291 : f32 to vector<8x512xf32>
    %719 = arith.select %717, %715, %718 : vector<8x512xi1>, vector<8x512xf32>
    %c495_i32_292 = arith.constant 495 : i32
    %720 = tpu.dynamic_rotate %684 by %c495_i32_292 dim 1 : vector<8x512xf32>, i32 -> vector<8x512xf32>
    %cst_293 = arith.constant 0.000000e+00 : f32
    %721 = vector.shape_cast %135 : vector<1x512xi1> to vector<1x512xi1>
    %722 = vector.broadcast %721 : vector<1x512xi1> to vector<8x512xi1>
    %723 = vector.broadcast %cst_293 : f32 to vector<8x512xf32>
    %724 = arith.select %722, %720, %723 : vector<8x512xi1>, vector<8x512xf32>
    %725 = tpu.concatenate %689, %694, %699, %704, %684, %709, %714, %719, %724 in 0 : vector<8x512xf32>, vector<8x512xf32>, vector<8x512xf32>, vector<8x512xf32>, vector<8x512xf32>, vector<8x512xf32>, vector<8x512xf32>, vector<8x512xf32>, vector<8x512xf32> -> vector<72x512xf32>
    %c8 = arith.constant 8 : index
    %c0_294 = arith.constant 0 : index
    %c0_295 = arith.constant 0 : index
    %726 = vector.load %arg1[%c8, %c0_294, %c0_295] : memref<12x8x72xf32, #tpu.memory_space<vmem>>, vector<1x8x72xf32>
    %727 = vector.shape_cast %726 : vector<1x8x72xf32> to vector<8x72xf32>
    %cst_296 = arith.constant dense<0.000000e+00> : vector<8x512xf32>
    %728 = tpu.matmul %727, %725, %cst_296 {dimension_numbers = #tpu.dot_dimension_numbers<[1], [0], [0], [1], [0, 0, 1, 1], [], []>} : vector<8x72xf32>, vector<72x512xf32>, vector<8x512xf32> -> vector<8x512xf32>
    %c8_297 = arith.constant 8 : index
    %c0_298 = arith.constant 0 : index
    %c0_299 = arith.constant 0 : index
    %729 = vector.load %arg2[%c8_297, %c0_298, %c0_299] : memref<12x8x1xf32, #tpu.memory_space<vmem>>, vector<1x8x1xf32>
    %730 = vector.shape_cast %729 : vector<1x8x1xf32> to vector<8x1xf32>
    %731 = vector.broadcast %730 : vector<8x1xf32> to vector<8x512xf32>
    %732 = arith.addf %728, %731 : vector<8x512xf32>
    %cst_300 = arith.constant 0.000000e+00 : f32
    %733 = vector.broadcast %cst_300 : f32 to vector<8x512xf32>
    %734 = arith.maximumf %732, %733 : vector<8x512xf32>
    %c17_i32_301 = arith.constant 17 : i32
    %735 = tpu.dynamic_rotate %734 by %c17_i32_301 dim 1 : vector<8x512xf32>, i32 -> vector<8x512xf32>
    %cst_302 = arith.constant 0.000000e+00 : f32
    %736 = vector.shape_cast %30 : vector<1x512xi1> to vector<1x512xi1>
    %737 = vector.broadcast %736 : vector<1x512xi1> to vector<8x512xi1>
    %738 = vector.broadcast %cst_302 : f32 to vector<8x512xf32>
    %739 = arith.select %737, %735, %738 : vector<8x512xi1>, vector<8x512xf32>
    %c16_i32_303 = arith.constant 16 : i32
    %740 = tpu.dynamic_rotate %734 by %c16_i32_303 dim 1 : vector<8x512xf32>, i32 -> vector<8x512xf32>
    %cst_304 = arith.constant 0.000000e+00 : f32
    %741 = vector.shape_cast %45 : vector<1x512xi1> to vector<1x512xi1>
    %742 = vector.broadcast %741 : vector<1x512xi1> to vector<8x512xi1>
    %743 = vector.broadcast %cst_304 : f32 to vector<8x512xf32>
    %744 = arith.select %742, %740, %743 : vector<8x512xi1>, vector<8x512xf32>
    %c15_i32_305 = arith.constant 15 : i32
    %745 = tpu.dynamic_rotate %734 by %c15_i32_305 dim 1 : vector<8x512xf32>, i32 -> vector<8x512xf32>
    %cst_306 = arith.constant 0.000000e+00 : f32
    %746 = vector.shape_cast %60 : vector<1x512xi1> to vector<1x512xi1>
    %747 = vector.broadcast %746 : vector<1x512xi1> to vector<8x512xi1>
    %748 = vector.broadcast %cst_306 : f32 to vector<8x512xf32>
    %749 = arith.select %747, %745, %748 : vector<8x512xi1>, vector<8x512xf32>
    %c1_i32_307 = arith.constant 1 : i32
    %750 = tpu.dynamic_rotate %734 by %c1_i32_307 dim 1 : vector<8x512xf32>, i32 -> vector<8x512xf32>
    %cst_308 = arith.constant 0.000000e+00 : f32
    %751 = vector.shape_cast %75 : vector<1x512xi1> to vector<1x512xi1>
    %752 = vector.broadcast %751 : vector<1x512xi1> to vector<8x512xi1>
    %753 = vector.broadcast %cst_308 : f32 to vector<8x512xf32>
    %754 = arith.select %752, %750, %753 : vector<8x512xi1>, vector<8x512xf32>
    %c511_i32_309 = arith.constant 511 : i32
    %755 = tpu.dynamic_rotate %734 by %c511_i32_309 dim 1 : vector<8x512xf32>, i32 -> vector<8x512xf32>
    %cst_310 = arith.constant 0.000000e+00 : f32
    %756 = vector.shape_cast %90 : vector<1x512xi1> to vector<1x512xi1>
    %757 = vector.broadcast %756 : vector<1x512xi1> to vector<8x512xi1>
    %758 = vector.broadcast %cst_310 : f32 to vector<8x512xf32>
    %759 = arith.select %757, %755, %758 : vector<8x512xi1>, vector<8x512xf32>
    %c497_i32_311 = arith.constant 497 : i32
    %760 = tpu.dynamic_rotate %734 by %c497_i32_311 dim 1 : vector<8x512xf32>, i32 -> vector<8x512xf32>
    %cst_312 = arith.constant 0.000000e+00 : f32
    %761 = vector.shape_cast %105 : vector<1x512xi1> to vector<1x512xi1>
    %762 = vector.broadcast %761 : vector<1x512xi1> to vector<8x512xi1>
    %763 = vector.broadcast %cst_312 : f32 to vector<8x512xf32>
    %764 = arith.select %762, %760, %763 : vector<8x512xi1>, vector<8x512xf32>
    %c496_i32_313 = arith.constant 496 : i32
    %765 = tpu.dynamic_rotate %734 by %c496_i32_313 dim 1 : vector<8x512xf32>, i32 -> vector<8x512xf32>
    %cst_314 = arith.constant 0.000000e+00 : f32
    %766 = vector.shape_cast %120 : vector<1x512xi1> to vector<1x512xi1>
    %767 = vector.broadcast %766 : vector<1x512xi1> to vector<8x512xi1>
    %768 = vector.broadcast %cst_314 : f32 to vector<8x512xf32>
    %769 = arith.select %767, %765, %768 : vector<8x512xi1>, vector<8x512xf32>
    %c495_i32_315 = arith.constant 495 : i32
    %770 = tpu.dynamic_rotate %734 by %c495_i32_315 dim 1 : vector<8x512xf32>, i32 -> vector<8x512xf32>
    %cst_316 = arith.constant 0.000000e+00 : f32
    %771 = vector.shape_cast %135 : vector<1x512xi1> to vector<1x512xi1>
    %772 = vector.broadcast %771 : vector<1x512xi1> to vector<8x512xi1>
    %773 = vector.broadcast %cst_316 : f32 to vector<8x512xf32>
    %774 = arith.select %772, %770, %773 : vector<8x512xi1>, vector<8x512xf32>
    %775 = tpu.concatenate %739, %744, %749, %754, %734, %759, %764, %769, %774 in 0 : vector<8x512xf32>, vector<8x512xf32>, vector<8x512xf32>, vector<8x512xf32>, vector<8x512xf32>, vector<8x512xf32>, vector<8x512xf32>, vector<8x512xf32>, vector<8x512xf32> -> vector<72x512xf32>
    %c9 = arith.constant 9 : index
    %c0_317 = arith.constant 0 : index
    %c0_318 = arith.constant 0 : index
    %776 = vector.load %arg1[%c9, %c0_317, %c0_318] : memref<12x8x72xf32, #tpu.memory_space<vmem>>, vector<1x8x72xf32>
    %777 = vector.shape_cast %776 : vector<1x8x72xf32> to vector<8x72xf32>
    %cst_319 = arith.constant dense<0.000000e+00> : vector<8x512xf32>
    %778 = tpu.matmul %777, %775, %cst_319 {dimension_numbers = #tpu.dot_dimension_numbers<[1], [0], [0], [1], [0, 0, 1, 1], [], []>} : vector<8x72xf32>, vector<72x512xf32>, vector<8x512xf32> -> vector<8x512xf32>
    %c9_320 = arith.constant 9 : index
    %c0_321 = arith.constant 0 : index
    %c0_322 = arith.constant 0 : index
    %779 = vector.load %arg2[%c9_320, %c0_321, %c0_322] : memref<12x8x1xf32, #tpu.memory_space<vmem>>, vector<1x8x1xf32>
    %780 = vector.shape_cast %779 : vector<1x8x1xf32> to vector<8x1xf32>
    %781 = vector.broadcast %780 : vector<8x1xf32> to vector<8x512xf32>
    %782 = arith.addf %778, %781 : vector<8x512xf32>
    %783 = arith.addf %782, %684 : vector<8x512xf32>
    %cst_323 = arith.constant 0.000000e+00 : f32
    %784 = vector.broadcast %cst_323 : f32 to vector<8x512xf32>
    %785 = arith.maximumf %783, %784 : vector<8x512xf32>
    %c17_i32_324 = arith.constant 17 : i32
    %786 = tpu.dynamic_rotate %785 by %c17_i32_324 dim 1 : vector<8x512xf32>, i32 -> vector<8x512xf32>
    %cst_325 = arith.constant 0.000000e+00 : f32
    %787 = vector.shape_cast %30 : vector<1x512xi1> to vector<1x512xi1>
    %788 = vector.broadcast %787 : vector<1x512xi1> to vector<8x512xi1>
    %789 = vector.broadcast %cst_325 : f32 to vector<8x512xf32>
    %790 = arith.select %788, %786, %789 : vector<8x512xi1>, vector<8x512xf32>
    %c16_i32_326 = arith.constant 16 : i32
    %791 = tpu.dynamic_rotate %785 by %c16_i32_326 dim 1 : vector<8x512xf32>, i32 -> vector<8x512xf32>
    %cst_327 = arith.constant 0.000000e+00 : f32
    %792 = vector.shape_cast %45 : vector<1x512xi1> to vector<1x512xi1>
    %793 = vector.broadcast %792 : vector<1x512xi1> to vector<8x512xi1>
    %794 = vector.broadcast %cst_327 : f32 to vector<8x512xf32>
    %795 = arith.select %793, %791, %794 : vector<8x512xi1>, vector<8x512xf32>
    %c15_i32_328 = arith.constant 15 : i32
    %796 = tpu.dynamic_rotate %785 by %c15_i32_328 dim 1 : vector<8x512xf32>, i32 -> vector<8x512xf32>
    %cst_329 = arith.constant 0.000000e+00 : f32
    %797 = vector.shape_cast %60 : vector<1x512xi1> to vector<1x512xi1>
    %798 = vector.broadcast %797 : vector<1x512xi1> to vector<8x512xi1>
    %799 = vector.broadcast %cst_329 : f32 to vector<8x512xf32>
    %800 = arith.select %798, %796, %799 : vector<8x512xi1>, vector<8x512xf32>
    %c1_i32_330 = arith.constant 1 : i32
    %801 = tpu.dynamic_rotate %785 by %c1_i32_330 dim 1 : vector<8x512xf32>, i32 -> vector<8x512xf32>
    %cst_331 = arith.constant 0.000000e+00 : f32
    %802 = vector.shape_cast %75 : vector<1x512xi1> to vector<1x512xi1>
    %803 = vector.broadcast %802 : vector<1x512xi1> to vector<8x512xi1>
    %804 = vector.broadcast %cst_331 : f32 to vector<8x512xf32>
    %805 = arith.select %803, %801, %804 : vector<8x512xi1>, vector<8x512xf32>
    %c511_i32_332 = arith.constant 511 : i32
    %806 = tpu.dynamic_rotate %785 by %c511_i32_332 dim 1 : vector<8x512xf32>, i32 -> vector<8x512xf32>
    %cst_333 = arith.constant 0.000000e+00 : f32
    %807 = vector.shape_cast %90 : vector<1x512xi1> to vector<1x512xi1>
    %808 = vector.broadcast %807 : vector<1x512xi1> to vector<8x512xi1>
    %809 = vector.broadcast %cst_333 : f32 to vector<8x512xf32>
    %810 = arith.select %808, %806, %809 : vector<8x512xi1>, vector<8x512xf32>
    %c497_i32_334 = arith.constant 497 : i32
    %811 = tpu.dynamic_rotate %785 by %c497_i32_334 dim 1 : vector<8x512xf32>, i32 -> vector<8x512xf32>
    %cst_335 = arith.constant 0.000000e+00 : f32
    %812 = vector.shape_cast %105 : vector<1x512xi1> to vector<1x512xi1>
    %813 = vector.broadcast %812 : vector<1x512xi1> to vector<8x512xi1>
    %814 = vector.broadcast %cst_335 : f32 to vector<8x512xf32>
    %815 = arith.select %813, %811, %814 : vector<8x512xi1>, vector<8x512xf32>
    %c496_i32_336 = arith.constant 496 : i32
    %816 = tpu.dynamic_rotate %785 by %c496_i32_336 dim 1 : vector<8x512xf32>, i32 -> vector<8x512xf32>
    %cst_337 = arith.constant 0.000000e+00 : f32
    %817 = vector.shape_cast %120 : vector<1x512xi1> to vector<1x512xi1>
    %818 = vector.broadcast %817 : vector<1x512xi1> to vector<8x512xi1>
    %819 = vector.broadcast %cst_337 : f32 to vector<8x512xf32>
    %820 = arith.select %818, %816, %819 : vector<8x512xi1>, vector<8x512xf32>
    %c495_i32_338 = arith.constant 495 : i32
    %821 = tpu.dynamic_rotate %785 by %c495_i32_338 dim 1 : vector<8x512xf32>, i32 -> vector<8x512xf32>
    %cst_339 = arith.constant 0.000000e+00 : f32
    %822 = vector.shape_cast %135 : vector<1x512xi1> to vector<1x512xi1>
    %823 = vector.broadcast %822 : vector<1x512xi1> to vector<8x512xi1>
    %824 = vector.broadcast %cst_339 : f32 to vector<8x512xf32>
    %825 = arith.select %823, %821, %824 : vector<8x512xi1>, vector<8x512xf32>
    %826 = tpu.concatenate %790, %795, %800, %805, %785, %810, %815, %820, %825 in 0 : vector<8x512xf32>, vector<8x512xf32>, vector<8x512xf32>, vector<8x512xf32>, vector<8x512xf32>, vector<8x512xf32>, vector<8x512xf32>, vector<8x512xf32>, vector<8x512xf32> -> vector<72x512xf32>
    %c10 = arith.constant 10 : index
    %c0_340 = arith.constant 0 : index
    %c0_341 = arith.constant 0 : index
    %827 = vector.load %arg1[%c10, %c0_340, %c0_341] : memref<12x8x72xf32, #tpu.memory_space<vmem>>, vector<1x8x72xf32>
    %828 = vector.shape_cast %827 : vector<1x8x72xf32> to vector<8x72xf32>
    %cst_342 = arith.constant dense<0.000000e+00> : vector<8x512xf32>
    %829 = tpu.matmul %828, %826, %cst_342 {dimension_numbers = #tpu.dot_dimension_numbers<[1], [0], [0], [1], [0, 0, 1, 1], [], []>} : vector<8x72xf32>, vector<72x512xf32>, vector<8x512xf32> -> vector<8x512xf32>
    %c10_343 = arith.constant 10 : index
    %c0_344 = arith.constant 0 : index
    %c0_345 = arith.constant 0 : index
    %830 = vector.load %arg2[%c10_343, %c0_344, %c0_345] : memref<12x8x1xf32, #tpu.memory_space<vmem>>, vector<1x8x1xf32>
    %831 = vector.shape_cast %830 : vector<1x8x1xf32> to vector<8x1xf32>
    %832 = vector.broadcast %831 : vector<8x1xf32> to vector<8x512xf32>
    %833 = arith.addf %829, %832 : vector<8x512xf32>
    %cst_346 = arith.constant 0.000000e+00 : f32
    %834 = vector.broadcast %cst_346 : f32 to vector<8x512xf32>
    %835 = arith.maximumf %833, %834 : vector<8x512xf32>
    %c17_i32_347 = arith.constant 17 : i32
    %836 = tpu.dynamic_rotate %835 by %c17_i32_347 dim 1 : vector<8x512xf32>, i32 -> vector<8x512xf32>
    %cst_348 = arith.constant 0.000000e+00 : f32
    %837 = vector.shape_cast %30 : vector<1x512xi1> to vector<1x512xi1>
    %838 = vector.broadcast %837 : vector<1x512xi1> to vector<8x512xi1>
    %839 = vector.broadcast %cst_348 : f32 to vector<8x512xf32>
    %840 = arith.select %838, %836, %839 : vector<8x512xi1>, vector<8x512xf32>
    %c16_i32_349 = arith.constant 16 : i32
    %841 = tpu.dynamic_rotate %835 by %c16_i32_349 dim 1 : vector<8x512xf32>, i32 -> vector<8x512xf32>
    %cst_350 = arith.constant 0.000000e+00 : f32
    %842 = vector.shape_cast %45 : vector<1x512xi1> to vector<1x512xi1>
    %843 = vector.broadcast %842 : vector<1x512xi1> to vector<8x512xi1>
    %844 = vector.broadcast %cst_350 : f32 to vector<8x512xf32>
    %845 = arith.select %843, %841, %844 : vector<8x512xi1>, vector<8x512xf32>
    %c15_i32_351 = arith.constant 15 : i32
    %846 = tpu.dynamic_rotate %835 by %c15_i32_351 dim 1 : vector<8x512xf32>, i32 -> vector<8x512xf32>
    %cst_352 = arith.constant 0.000000e+00 : f32
    %847 = vector.shape_cast %60 : vector<1x512xi1> to vector<1x512xi1>
    %848 = vector.broadcast %847 : vector<1x512xi1> to vector<8x512xi1>
    %849 = vector.broadcast %cst_352 : f32 to vector<8x512xf32>
    %850 = arith.select %848, %846, %849 : vector<8x512xi1>, vector<8x512xf32>
    %c1_i32_353 = arith.constant 1 : i32
    %851 = tpu.dynamic_rotate %835 by %c1_i32_353 dim 1 : vector<8x512xf32>, i32 -> vector<8x512xf32>
    %cst_354 = arith.constant 0.000000e+00 : f32
    %852 = vector.shape_cast %75 : vector<1x512xi1> to vector<1x512xi1>
    %853 = vector.broadcast %852 : vector<1x512xi1> to vector<8x512xi1>
    %854 = vector.broadcast %cst_354 : f32 to vector<8x512xf32>
    %855 = arith.select %853, %851, %854 : vector<8x512xi1>, vector<8x512xf32>
    %c511_i32_355 = arith.constant 511 : i32
    %856 = tpu.dynamic_rotate %835 by %c511_i32_355 dim 1 : vector<8x512xf32>, i32 -> vector<8x512xf32>
    %cst_356 = arith.constant 0.000000e+00 : f32
    %857 = vector.shape_cast %90 : vector<1x512xi1> to vector<1x512xi1>
    %858 = vector.broadcast %857 : vector<1x512xi1> to vector<8x512xi1>
    %859 = vector.broadcast %cst_356 : f32 to vector<8x512xf32>
    %860 = arith.select %858, %856, %859 : vector<8x512xi1>, vector<8x512xf32>
    %c497_i32_357 = arith.constant 497 : i32
    %861 = tpu.dynamic_rotate %835 by %c497_i32_357 dim 1 : vector<8x512xf32>, i32 -> vector<8x512xf32>
    %cst_358 = arith.constant 0.000000e+00 : f32
    %862 = vector.shape_cast %105 : vector<1x512xi1> to vector<1x512xi1>
    %863 = vector.broadcast %862 : vector<1x512xi1> to vector<8x512xi1>
    %864 = vector.broadcast %cst_358 : f32 to vector<8x512xf32>
    %865 = arith.select %863, %861, %864 : vector<8x512xi1>, vector<8x512xf32>
    %c496_i32_359 = arith.constant 496 : i32
    %866 = tpu.dynamic_rotate %835 by %c496_i32_359 dim 1 : vector<8x512xf32>, i32 -> vector<8x512xf32>
    %cst_360 = arith.constant 0.000000e+00 : f32
    %867 = vector.shape_cast %120 : vector<1x512xi1> to vector<1x512xi1>
    %868 = vector.broadcast %867 : vector<1x512xi1> to vector<8x512xi1>
    %869 = vector.broadcast %cst_360 : f32 to vector<8x512xf32>
    %870 = arith.select %868, %866, %869 : vector<8x512xi1>, vector<8x512xf32>
    %c495_i32_361 = arith.constant 495 : i32
    %871 = tpu.dynamic_rotate %835 by %c495_i32_361 dim 1 : vector<8x512xf32>, i32 -> vector<8x512xf32>
    %cst_362 = arith.constant 0.000000e+00 : f32
    %872 = vector.shape_cast %135 : vector<1x512xi1> to vector<1x512xi1>
    %873 = vector.broadcast %872 : vector<1x512xi1> to vector<8x512xi1>
    %874 = vector.broadcast %cst_362 : f32 to vector<8x512xf32>
    %875 = arith.select %873, %871, %874 : vector<8x512xi1>, vector<8x512xf32>
    %876 = tpu.concatenate %840, %845, %850, %855, %835, %860, %865, %870, %875 in 0 : vector<8x512xf32>, vector<8x512xf32>, vector<8x512xf32>, vector<8x512xf32>, vector<8x512xf32>, vector<8x512xf32>, vector<8x512xf32>, vector<8x512xf32>, vector<8x512xf32> -> vector<72x512xf32>
    %c11 = arith.constant 11 : index
    %c0_363 = arith.constant 0 : index
    %c0_364 = arith.constant 0 : index
    %877 = vector.load %arg1[%c11, %c0_363, %c0_364] : memref<12x8x72xf32, #tpu.memory_space<vmem>>, vector<1x8x72xf32>
    %878 = vector.shape_cast %877 : vector<1x8x72xf32> to vector<8x72xf32>
    %cst_365 = arith.constant dense<0.000000e+00> : vector<8x512xf32>
    %879 = tpu.matmul %878, %876, %cst_365 {dimension_numbers = #tpu.dot_dimension_numbers<[1], [0], [0], [1], [0, 0, 1, 1], [], []>} : vector<8x72xf32>, vector<72x512xf32>, vector<8x512xf32> -> vector<8x512xf32>
    %c11_366 = arith.constant 11 : index
    %c0_367 = arith.constant 0 : index
    %c0_368 = arith.constant 0 : index
    %880 = vector.load %arg2[%c11_366, %c0_367, %c0_368] : memref<12x8x1xf32, #tpu.memory_space<vmem>>, vector<1x8x1xf32>
    %881 = vector.shape_cast %880 : vector<1x8x1xf32> to vector<8x1xf32>
    %882 = vector.broadcast %881 : vector<8x1xf32> to vector<8x512xf32>
    %883 = arith.addf %879, %882 : vector<8x512xf32>
    %884 = arith.addf %883, %785 : vector<8x512xf32>
    %cst_369 = arith.constant 0.000000e+00 : f32
    %885 = vector.broadcast %cst_369 : f32 to vector<8x512xf32>
    %886 = arith.maximumf %884, %885 : vector<8x512xf32>
    %c0_370 = arith.constant 0 : index
    %c0_371 = arith.constant 0 : index
    %887 = vector.load %arg5[%c0_370, %c0_371] : memref<8x512xf32, #tpu.memory_space<vmem>>, vector<8x512xf32>
    tpu.vector_store %arg5[%c0_370, %c0_371], %482 {strides = array<i32>} : memref<8x512xf32, #tpu.memory_space<vmem>>, vector<8x512xf32>,
    %888 = vector.extract_strided_slice %482 {offsets = [0, 0], sizes = [8, 256], strides = [1, 1]} : vector<8x512xf32> to vector<8x256xf32>
    %889 = vector.extract_strided_slice %886 {offsets = [0, 0], sizes = [8, 256], strides = [1, 1]} : vector<8x512xf32> to vector<8x256xf32>
    %cst_372 = arith.constant dense<0.000000e+00> : vector<8xf32>
    %890 = vector.multi_reduction <add>, %888, %cst_372 [1] : vector<8x256xf32> to vector<8xf32>
    %891 = vector.shape_cast %890 : vector<8xf32> to vector<8x1xf32>
    %cst_373 = arith.constant 3.906250e-03 : f32
    %892 = vector.broadcast %cst_373 : f32 to vector<8x1xf32>
    %893 = arith.mulf %891, %892 : vector<8x1xf32>
    %cst_374 = arith.constant 0.000000e+00 : f32
    %894 = vector.broadcast %cst_374 : f32 to vector<8x1xf32>
    %895 = arith.subf %894, %893 : vector<8x1xf32>
    %896 = math.exp %895 : vector<8x1xf32>
    %cst_375 = arith.constant 1.000000e+00 : f32
    %897 = vector.broadcast %cst_375 : f32 to vector<8x1xf32>
    %898 = arith.addf %897, %896 : vector<8x1xf32>
    %cst_376 = arith.constant 1.000000e+00 : f32
    %899 = vector.broadcast %cst_376 : f32 to vector<8x1xf32>
    %900 = arith.divf %899, %898 : vector<8x1xf32>
    %cst_377 = arith.constant 1.000000e+00 : f32
    %901 = vector.broadcast %cst_377 : f32 to vector<8x1xf32>
    %902 = arith.addf %900, %901 : vector<8x1xf32>
    %903 = vector.broadcast %902 : vector<8x1xf32> to vector<8x256xf32>
    %904 = arith.mulf %889, %903 : vector<8x256xf32>
    %c0_378 = arith.constant 0 : index
    %c0_379 = arith.constant 0 : index
    %905 = vector.load %arg6[%c0_378, %c0_379] : memref<8x512xf32, #tpu.memory_space<vmem>>, vector<8x256xf32>
    tpu.vector_store %arg6[%c0_378, %c0_379], %904 {strides = array<i32>} : memref<8x512xf32, #tpu.memory_space<vmem>>, vector<8x256xf32>,
    %906 = vector.extract_strided_slice %482 {offsets = [0, 256], sizes = [8, 256], strides = [1, 1]} : vector<8x512xf32> to vector<8x256xf32>
    %907 = vector.extract_strided_slice %886 {offsets = [0, 256], sizes = [8, 256], strides = [1, 1]} : vector<8x512xf32> to vector<8x256xf32>
    %cst_380 = arith.constant dense<0.000000e+00> : vector<8xf32>
    %908 = vector.multi_reduction <add>, %906, %cst_380 [1] : vector<8x256xf32> to vector<8xf32>
    %909 = vector.shape_cast %908 : vector<8xf32> to vector<8x1xf32>
    %cst_381 = arith.constant 3.906250e-03 : f32
    %910 = vector.broadcast %cst_381 : f32 to vector<8x1xf32>
    %911 = arith.mulf %909, %910 : vector<8x1xf32>
    %cst_382 = arith.constant 0.000000e+00 : f32
    %912 = vector.broadcast %cst_382 : f32 to vector<8x1xf32>
    %913 = arith.subf %912, %911 : vector<8x1xf32>
    %914 = math.exp %913 : vector<8x1xf32>
    %cst_383 = arith.constant 1.000000e+00 : f32
    %915 = vector.broadcast %cst_383 : f32 to vector<8x1xf32>
    %916 = arith.addf %915, %914 : vector<8x1xf32>
    %cst_384 = arith.constant 1.000000e+00 : f32
    %917 = vector.broadcast %cst_384 : f32 to vector<8x1xf32>
    %918 = arith.divf %917, %916 : vector<8x1xf32>
    %cst_385 = arith.constant 1.000000e+00 : f32
    %919 = vector.broadcast %cst_385 : f32 to vector<8x1xf32>
    %920 = arith.addf %918, %919 : vector<8x1xf32>
    %921 = vector.broadcast %920 : vector<8x1xf32> to vector<8x256xf32>
    %922 = arith.mulf %907, %921 : vector<8x256xf32>
    %c0_386 = arith.constant 0 : index
    %c256 = arith.constant 256 : index
    %923 = vector.load %arg6[%c0_386, %c256] : memref<8x512xf32, #tpu.memory_space<vmem>>, vector<8x256xf32>
    tpu.vector_store %arg6[%c0_386, %c256], %922 {strides = array<i32>} : memref<8x512xf32, #tpu.memory_space<vmem>>, vector<8x256xf32>,
    return
  }
  func.func @transform_0(%arg0: i32) -> (i32, i32, i32) {
    %c0_i32 = arith.constant 0 : i32
    %c0_i32_0 = arith.constant 0 : i32
    %c0_i32_1 = arith.constant 0 : i32
    %c0_i32_2 = arith.constant 0 : i32
    return %c0_i32, %c0_i32_0, %c0_i32_1 : i32, i32, i32
  }
  func.func @transform_1(%arg0: i32) -> (i32, i32, i32) {
    %c0_i32 = arith.constant 0 : i32
    %c0_i32_0 = arith.constant 0 : i32
    %c0_i32_1 = arith.constant 0 : i32
    %c0_i32_2 = arith.constant 0 : i32
    return %c0_i32, %c0_i32_0, %c0_i32_1 : i32, i32, i32
  }
  func.func @transform_2(%arg0: i32) -> (i32, i32) {
    %c0_i32 = arith.constant 0 : i32
    %c0_i32_0 = arith.constant 0 : i32
    %c0_i32_1 = arith.constant 0 : i32
    return %c0_i32, %c0_i32_0 : i32, i32
  }
  func.func @transform_3(%arg0: i32) -> (i32, i32) {
    %c0_i32 = arith.constant 0 : i32
    %c0_i32_0 = arith.constant 0 : i32
    %c0_i32_1 = arith.constant 0 : i32
    return %c0_i32, %c0_i32_0 : i32, i32
  }
  func.func @transform_4(%arg0: i32) -> (i32, i32) {
    %c0_i32 = arith.constant 0 : i32
    %c0_i32_0 = arith.constant 0 : i32
    %c0_i32_1 = arith.constant 0 : i32
    return %c0_i32, %c0_i32_0 : i32, i32
  }
  func.func @transform_5(%arg0: i32) -> (i32, i32) {
    %c0_i32 = arith.constant 0 : i32
    %c0_i32_0 = arith.constant 0 : i32
    %c0_i32_1 = arith.constant 0 : i32
    return %c0_i32, %c0_i32_0 : i32, i32
  }
}

</mosaic_0001>

<llo_original>
// kernel: matching_module.1
$region0: #{matching_module.1}
  #allocation0 [shape = 'u32[]', space=smem, size = 0x4, offset = 0x4, fixed_abs, tag = 'smem constant byte address 0x4 - core index']
  #allocation1 [shape = 'u32[144,128]{1,0:T(1,128)}', space=vmem, size = 0x12000, scoped, tag = 'internal scratch']
  %s0 = inlined_call_operand.vmem [shape: f32[12,8,72], index: 0, kind: input, shape index: {}]
  %s1 = inlined_call_operand.vmem [shape: f32[12,8,1], index: 1, kind: input, shape index: {}]
  %s2 = inlined_call_operand.vmem [shape: f32[8,512], index: 2, kind: input, shape index: {}]
  %s3 = inlined_call_operand.vmem [shape: f32[8,512], index: 3, kind: input, shape index: {}]
  %s4 = inlined_call_operand.vmem [shape: f32[8,512], index: 4, kind: output, shape index: {0}]
  %s5 = inlined_call_operand.vmem [shape: f32[8,512], index: 5, kind: output, shape index: {1}]
  %6 = xla_tuple %s4, %s5
  %s7 = sld [smem:[#allocation0]]
  $region34: #{matching_module.1} parent=0
    _
  %s9 = ssub.s32 1, %s7
  %s10 = scalar_select 0, %s9, %s7
  // Predicated region
  $region2: #{matching_module.1} parent=0 // pred_check
    _
  $region3: #{matching_module.1} parent=0 // pred_check_branch
    %12 = sbr.rel (0) target = $region5
  $region4: #{matching_module.1} parent=0 // pred_region
    _
  $region5: #{matching_module.1} parent=0 // pred_fallthru
    _
  // Predicated region
  $region6: #{matching_module.1} parent=0 // pred_check
    _
  $region7: #{matching_module.1} parent=0 // pred_check_branch
    %14 = sbr.rel (0) target = $region9
  $region8: #{matching_module.1} parent=0 // pred_region
    _
  $region9: #{matching_module.1} parent=0 // pred_fallthru
    _
  // Predicated region
  $region10: #{matching_module.1} parent=0 // pred_check
    _
  $region11: #{matching_module.1} parent=0 // pred_check_branch
    %16 = sbr.rel (0) target = $region13
  $region12: #{matching_module.1} parent=0 // pred_region
    _
  $region13: #{matching_module.1} parent=0 // pred_fallthru
    _
  // Predicated region
  $region14: #{matching_module.1} parent=0 // pred_check
    _
  $region15: #{matching_module.1} parent=0 // pred_check_branch
    %18 = sbr.rel (0) target = $region17
  $region16: #{matching_module.1} parent=0 // pred_region
    _
  $region17: #{matching_module.1} parent=0 // pred_fallthru
    _
  %v19 = vlaneseq
  %v20 = vand.u32 %v19, 127
  %v21 = vadd.s32 %v20, 128
  %v22 = vadd.s32 %v20, 256
  %v23 = vadd.s32 %v20, 384
  %v24 = vand.u32 %v20, 255
  %v25 = vand.u32 %v21, 255
  %v26 = vand.u32 %v22, 255
  %v27 = vand.u32 %v23, 255
  %v28 = vshra.s32 %v24, 4
  %v29 = vshra.s32 %v25, 4
  %v30 = vshra.s32 %v26, 4
  %v31 = vshra.s32 %v27, 4
  %v32 = vand.u32 %v24, 15
  %v33 = vand.u32 %v25, 15
  %v34 = vand.u32 %v26, 15
  %v35 = vand.u32 %v27, 15
  %v36 = vand.u32 %v28, 1
  %v37 = vand.u32 %v29, 1
  %v38 = vand.u32 %v30, 1
  %v39 = vand.u32 %v31, 1
  %vm40 = vcmp.eq.s32.totalorder %v36, 0
  %vm41 = vcmp.eq.s32.totalorder %v37, 0
  %vm42 = vcmp.eq.s32.totalorder %v38, 0
  %vm43 = vcmp.eq.s32.totalorder %v39, 0
  %v44 = vand.u32 %v32, 1
  %v45 = vand.u32 %v33, 1
  %v46 = vand.u32 %v34, 1
  %v47 = vand.u32 %v35, 1
  %vm48 = vcmp.eq.s32.totalorder %v44, 0
  %vm49 = vcmp.eq.s32.totalorder %v45, 0
  %vm50 = vcmp.eq.s32.totalorder %v46, 0
  %vm51 = vcmp.eq.s32.totalorder %v47, 0
  %vm52 = vmand %vm40, %vm48
  %vm53 = vmand %vm41, %vm49
  %vm54 = vmand %vm42, %vm50
  %vm55 = vmand %vm43, %vm51
  %v56 = vadd.s32 %v28, 4294967295
  %v57 = vadd.s32 %v29, 4294967295
  %v58 = vadd.s32 %v30, 4294967295
  %v59 = vadd.s32 %v31, 4294967295
  %v60 = vadd.s32 %v32, 4294967295
  %v61 = vadd.s32 %v33, 4294967295
  %v62 = vadd.s32 %v34, 4294967295
  %v63 = vadd.s32 %v35, 4294967295
  %vm64 = vcmp.ge.s32.totalorder %v56, 0
  %vm65 = vcmp.ge.s32.totalorder %v57, 0
  %vm66 = vcmp.ge.s32.totalorder %v58, 0
  %vm67 = vcmp.ge.s32.totalorder %v59, 0
  %vm68 = vcmp.lt.s32.totalorder %v56, 16
  %vm69 = vcmp.lt.s32.totalorder %v57, 16
  %vm70 = vcmp.lt.s32.totalorder %v58, 16
  %vm71 = vcmp.lt.s32.totalorder %v59, 16
  %vm72 = vmand %vm64, %vm68
  %vm73 = vmand %vm65, %vm69
  %vm74 = vmand %vm66, %vm70
  %vm75 = vmand %vm67, %vm71
  %vm76 = vcmp.ge.s32.totalorder %v60, 0
  %vm77 = vcmp.ge.s32.totalorder %v61, 0
  %vm78 = vcmp.ge.s32.totalorder %v62, 0
  %vm79 = vcmp.ge.s32.totalorder %v63, 0
  %vm80 = vmand %vm72, %vm76
  %vm81 = vmand %vm73, %vm77
  %vm82 = vmand %vm74, %vm78
  %vm83 = vmand %vm75, %vm79
  %vm84 = vcmp.lt.s32.totalorder %v60, 16
  %vm85 = vcmp.lt.s32.totalorder %v61, 16
  %vm86 = vcmp.lt.s32.totalorder %v62, 16
  %vm87 = vcmp.lt.s32.totalorder %v63, 16
  %vm88 = vmand %vm80, %vm84
  %vm89 = vmand %vm81, %vm85
  %vm90 = vmand %vm82, %vm86
  %vm91 = vmand %vm83, %vm87
  %vm92 = vcmp.ge.s32.totalorder %v32, 0
  %vm93 = vcmp.ge.s32.totalorder %v33, 0
  %vm94 = vcmp.ge.s32.totalorder %v34, 0
  %vm95 = vcmp.ge.s32.totalorder %v35, 0
  %vm96 = vmand %vm72, %vm92
  %vm97 = vmand %vm73, %vm93
  %vm98 = vmand %vm74, %vm94
  %vm99 = vmand %vm75, %vm95
  %vm100 = vcmp.lt.s32.totalorder %v32, 16
  %vm101 = vcmp.lt.s32.totalorder %v33, 16
  %vm102 = vcmp.lt.s32.totalorder %v34, 16
  %vm103 = vcmp.lt.s32.totalorder %v35, 16
  %vm104 = vmand %vm96, %vm100
  %vm105 = vmand %vm97, %vm101
  %vm106 = vmand %vm98, %vm102
  %vm107 = vmand %vm99, %vm103
  %v108 = vadd.s32 %v32, 1
  %v109 = vadd.s32 %v33, 1
  %v110 = vadd.s32 %v34, 1
  %v111 = vadd.s32 %v35, 1
  %vm112 = vcmp.ge.s32.totalorder %v108, 0
  %vm113 = vcmp.ge.s32.totalorder %v109, 0
  %vm114 = vcmp.ge.s32.totalorder %v110, 0
  %vm115 = vcmp.ge.s32.totalorder %v111, 0
  %vm116 = vmand %vm72, %vm112
  %vm117 = vmand %vm73, %vm113
  %vm118 = vmand %vm74, %vm114
  %vm119 = vmand %vm75, %vm115
  %vm120 = vcmp.lt.s32.totalorder %v108, 16
  %vm121 = vcmp.lt.s32.totalorder %v109, 16
  %vm122 = vcmp.lt.s32.totalorder %v110, 16
  %vm123 = vcmp.lt.s32.totalorder %v111, 16
  %vm124 = vmand %vm116, %vm120
  %vm125 = vmand %vm117, %vm121
  %vm126 = vmand %vm118, %vm122
  %vm127 = vmand %vm119, %vm123
  %vm128 = vcmp.ge.s32.totalorder %v28, 0
  %vm129 = vcmp.ge.s32.totalorder %v29, 0
  %vm130 = vcmp.ge.s32.totalorder %v30, 0
  %vm131 = vcmp.ge.s32.totalorder %v31, 0
  %vm132 = vcmp.lt.s32.totalorder %v28, 16
  %vm133 = vcmp.lt.s32.totalorder %v29, 16
  %vm134 = vcmp.lt.s32.totalorder %v30, 16
  %vm135 = vcmp.lt.s32.totalorder %v31, 16
  %vm136 = vmand %vm128, %vm132
  %vm137 = vmand %vm129, %vm133
  %vm138 = vmand %vm130, %vm134
  %vm139 = vmand %vm131, %vm135
  %vm140 = vmand %vm136, %vm76
  %vm141 = vmand %vm137, %vm77
  %vm142 = vmand %vm138, %vm78
  %vm143 = vmand %vm139, %vm79
  %vm144 = vmand %vm140, %vm84
  %vm145 = vmand %vm141, %vm85
  %vm146 = vmand %vm142, %vm86
  %vm147 = vmand %vm143, %vm87
  %vm148 = vmand %vm136, %vm112
  %vm149 = vmand %vm137, %vm113
  %vm150 = vmand %vm138, %vm114
  %vm151 = vmand %vm139, %vm115
  %vm152 = vmand %vm148, %vm120
  %vm153 = vmand %vm149, %vm121
  %vm154 = vmand %vm150, %vm122
  %vm155 = vmand %vm151, %vm123
  %v156 = vadd.s32 %v28, 1
  %v157 = vadd.s32 %v29, 1
  %v158 = vadd.s32 %v30, 1
  %v159 = vadd.s32 %v31, 1
  %vm160 = vcmp.ge.s32.totalorder %v156, 0
  %vm161 = vcmp.ge.s32.totalorder %v157, 0
  %vm162 = vcmp.ge.s32.totalorder %v158, 0
  %vm163 = vcmp.ge.s32.totalorder %v159, 0
  %vm164 = vcmp.lt.s32.totalorder %v156, 16
  %vm165 = vcmp.lt.s32.totalorder %v157, 16
  %vm166 = vcmp.lt.s32.totalorder %v158, 16
  %vm167 = vcmp.lt.s32.totalorder %v159, 16
  %vm168 = vmand %vm160, %vm164
  %vm169 = vmand %vm161, %vm165
  %vm170 = vmand %vm162, %vm166
  %vm171 = vmand %vm163, %vm167
  %vm172 = vmand %vm168, %vm76
  %vm173 = vmand %vm169, %vm77
  %vm174 = vmand %vm170, %vm78
  %vm175 = vmand %vm171, %vm79
  %vm176 = vmand %vm172, %vm84
  %vm177 = vmand %vm173, %vm85
  %vm178 = vmand %vm174, %vm86
  %vm179 = vmand %vm175, %vm87
  %vm180 = vmand %vm168, %vm92
  %vm181 = vmand %vm169, %vm93
  %vm182 = vmand %vm170, %vm94
  %vm183 = vmand %vm171, %vm95
  %vm184 = vmand %vm180, %vm100
  %vm185 = vmand %vm181, %vm101
  %vm186 = vmand %vm182, %vm102
  %vm187 = vmand %vm183, %vm103
  %vm188 = vmand %vm168, %vm112
  %vm189 = vmand %vm169, %vm113
  %vm190 = vmand %vm170, %vm114
  %vm191 = vmand %vm171, %vm115
  %vm192 = vmand %vm188, %vm120
  %vm193 = vmand %vm189, %vm121
  %vm194 = vmand %vm190, %vm122
  %vm195 = vmand %vm191, %vm123
  %v196 = vadd.s32 %v28, 4294967294
  %v197 = vadd.s32 %v29, 4294967294
  %v198 = vadd.s32 %v30, 4294967294
  %v199 = vadd.s32 %v31, 4294967294
  %v200 = vadd.s32 %v32, 4294967294
  %v201 = vadd.s32 %v33, 4294967294
  %v202 = vadd.s32 %v34, 4294967294
  %v203 = vadd.s32 %v35, 4294967294
  %vm204 = vcmp.ge.s32.totalorder %v196, 0
  %vm205 = vcmp.ge.s32.totalorder %v197, 0
  %vm206 = vcmp.ge.s32.totalorder %v198, 0
  %vm207 = vcmp.ge.s32.totalorder %v199, 0
  %vm208 = vcmp.lt.s32.totalorder %v196, 16
  %vm209 = vcmp.lt.s32.totalorder %v197, 16
  %vm210 = vcmp.lt.s32.totalorder %v198, 16
  %vm211 = vcmp.lt.s32.totalorder %v199, 16
  %vm212 = vmand %vm204, %vm208
  %vm213 = vmand %vm205, %vm209
  %vm214 = vmand %vm206, %vm210
  %vm215 = vmand %vm207, %vm211
  %vm216 = vcmp.ge.s32.totalorder %v200, 0
  %vm217 = vcmp.ge.s32.totalorder %v201, 0
  %vm218 = vcmp.ge.s32.totalorder %v202, 0
  %vm219 = vcmp.ge.s32.totalorder %v203, 0
  %vm220 = vmand %vm212, %vm216
  %vm221 = vmand %vm213, %vm217
  %vm222 = vmand %vm214, %vm218
  %vm223 = vmand %vm215, %vm219
  %vm224 = vcmp.lt.s32.totalorder %v200, 16
  %vm225 = vcmp.lt.s32.totalorder %v201, 16
  %vm226 = vcmp.lt.s32.totalorder %v202, 16
  %vm227 = vcmp.lt.s32.totalorder %v203, 16
  %vm228 = vmand %vm220, %vm224
  %vm229 = vmand %vm221, %vm225
  %vm230 = vmand %vm222, %vm226
  %vm231 = vmand %vm223, %vm227
  %vm232 = vmand %vm212, %vm92
  %vm233 = vmand %vm213, %vm93
  %vm234 = vmand %vm214, %vm94
  %vm235 = vmand %vm215, %vm95
  %vm236 = vmand %vm232, %vm100
  %vm237 = vmand %vm233, %vm101
  %vm238 = vmand %vm234, %vm102
  %vm239 = vmand %vm235, %vm103
  %v240 = vadd.s32 %v32, 2
  %v241 = vadd.s32 %v33, 2
  %v242 = vadd.s32 %v34, 2
  %v243 = vadd.s32 %v35, 2
  %vm244 = vcmp.ge.s32.totalorder %v240, 0
  %vm245 = vcmp.ge.s32.totalorder %v241, 0
  %vm246 = vcmp.ge.s32.totalorder %v242, 0
  %vm247 = vcmp.ge.s32.totalorder %v243, 0
  %vm248 = vmand %vm212, %vm244
  %vm249 = vmand %vm213, %vm245
  %vm250 = vmand %vm214, %vm246
  %vm251 = vmand %vm215, %vm247
  %vm252 = vcmp.lt.s32.totalorder %v240, 16
  %vm253 = vcmp.lt.s32.totalorder %v241, 16
  %vm254 = vcmp.lt.s32.totalorder %v242, 16
  %vm255 = vcmp.lt.s32.totalorder %v243, 16
  %vm256 = vmand %vm248, %vm252
  %vm257 = vmand %vm249, %vm253
  %vm258 = vmand %vm250, %vm254
  %vm259 = vmand %vm251, %vm255
  %vm260 = vmand %vm136, %vm216
  %vm261 = vmand %vm137, %vm217
  %vm262 = vmand %vm138, %vm218
  %vm263 = vmand %vm139, %vm219
  %vm264 = vmand %vm260, %vm224
  %vm265 = vmand %vm261, %vm225
  %vm266 = vmand %vm262, %vm226
  %vm267 = vmand %vm263, %vm227
  %vm268 = vmand %vm136, %vm244
  %vm269 = vmand %vm137, %vm245
  %vm270 = vmand %vm138, %vm246
  %vm271 = vmand %vm139, %vm247
  %vm272 = vmand %vm268, %vm252
  %vm273 = vmand %vm269, %vm253
  %vm274 = vmand %vm270, %vm254
  %vm275 = vmand %vm271, %vm255
  %v276 = vadd.s32 %v28, 2
  %v277 = vadd.s32 %v29, 2
  %v278 = vadd.s32 %v30, 2
  %v279 = vadd.s32 %v31, 2
  %vm280 = vcmp.ge.s32.totalorder %v276, 0
  %vm281 = vcmp.ge.s32.totalorder %v277, 0
  %vm282 = vcmp.ge.s32.totalorder %v278, 0
  %vm283 = vcmp.ge.s32.totalorder %v279, 0
  %vm284 = vcmp.lt.s32.totalorder %v276, 16
  %vm285 = vcmp.lt.s32.totalorder %v277, 16
  %vm286 = vcmp.lt.s32.totalorder %v278, 16
  %vm287 = vcmp.lt.s32.totalorder %v279, 16
  %vm288 = vmand %vm280, %vm284
  %vm289 = vmand %vm281, %vm285
  %vm290 = vmand %vm282, %vm286
  %vm291 = vmand %vm283, %vm287
  %vm292 = vmand %vm288, %vm216
  %vm293 = vmand %vm289, %vm217
  %vm294 = vmand %vm290, %vm218
  %vm295 = vmand %vm291, %vm219
  %vm296 = vmand %vm292, %vm224
  %vm297 = vmand %vm293, %vm225
  %vm298 = vmand %vm294, %vm226
  %vm299 = vmand %vm295, %vm227
  %vm300 = vmand %vm288, %vm92
  %vm301 = vmand %vm289, %vm93
  %vm302 = vmand %vm290, %vm94
  %vm303 = vmand %vm291, %vm95
  %vm304 = vmand %vm300, %vm100
  %vm305 = vmand %vm301, %vm101
  %vm306 = vmand %vm302, %vm102
  %vm307 = vmand %vm303, %vm103
  %vm308 = vmand %vm288, %vm244
  %vm309 = vmand %vm289, %vm245
  %vm310 = vmand %vm290, %vm246
  %vm311 = vmand %vm291, %vm247
  %vm312 = vmand %vm308, %vm252
  %vm313 = vmand %vm309, %vm253
  %vm314 = vmand %vm310, %vm254
  %vm315 = vmand %vm311, %vm255
  %v316 = vld [vmem:[%s2] sm:$0xff]
  %v317 = vld [vmem:[%s2 + $0x8] sm:$0xff]
  %v318 = vld [vmem:[%s2 + $0x10] sm:$0xff]
  %v319 = vld [vmem:[%s2 + $0x18] sm:$0xff]
  %v320 = vld [vmem:[%s3] sm:$0xff]
  %v321 = vld [vmem:[%s3 + $0x8] sm:$0xff]
  %v322 = vld [vmem:[%s3 + $0x10] sm:$0xff]
  %v323 = vld [vmem:[%s3 + $0x18] sm:$0xff]
  %324 = vrot.lane.b32.xlu0 %v316, 127
  %v325 = vpop.permute.xlu0 %324
  %326 = vrot.lane.b32.xlu0 %v317, 127
  %v327 = vpop.permute.xlu0 %326
  %328 = vrot.lane.b32.xlu0 %v318, 127
  %v329 = vpop.permute.xlu0 %328
  %330 = vrot.lane.b32.xlu0 %v319, 127
  %v331 = vpop.permute.xlu0 %330
  %vm332 = vcmp.lt.s32.totalorder %v20, 127
  %v333 = vsel %vm332, %v329, %v331
  %v334 = vsel %vm332, %v327, %v329
  %v335 = vsel %vm332, %v325, %v327
  %v336 = vsel %vm332, %v331, %v325
  %v337 = vadd.f32 %v316, %v335
  %v338 = vadd.f32 %v317, %v334
  %v339 = vadd.f32 %v318, %v333
  %v340 = vadd.f32 %v319, %v336
  %341 = vrot.lane.b32.xlu0 %v316, 112
  %v342 = vpop.permute.xlu0 %341
  %343 = vrot.lane.b32.xlu0 %v317, 112
  %v344 = vpop.permute.xlu0 %343
  %345 = vrot.lane.b32.xlu0 %v318, 112
  %v346 = vpop.permute.xlu0 %345
  %347 = vrot.lane.b32.xlu0 %v319, 112
  %v348 = vpop.permute.xlu0 %347
  %vm349 = vcmp.lt.s32.totalorder %v20, 112
  %v350 = vsel %vm349, %v346, %v348
  %v351 = vsel %vm349, %v344, %v346
  %v352 = vsel %vm349, %v342, %v344
  %v353 = vsel %vm349, %v348, %v342
  %v354 = vadd.f32 %v337, %v352
  %v355 = vadd.f32 %v338, %v351
  %v356 = vadd.f32 %v339, %v350
  %v357 = vadd.f32 %v340, %v353
  %358 = vrot.lane.b32.xlu0 %v316, 111
  %v359 = vpop.permute.xlu0 %358
  %360 = vrot.lane.b32.xlu0 %v317, 111
  %v361 = vpop.permute.xlu0 %360
  %362 = vrot.lane.b32.xlu0 %v318, 111
  %v363 = vpop.permute.xlu0 %362
  %364 = vrot.lane.b32.xlu0 %v319, 111
  %v365 = vpop.permute.xlu0 %364
  %vm366 = vcmp.lt.s32.totalorder %v20, 111
  %v367 = vsel %vm366, %v363, %v365
  %v368 = vsel %vm366, %v361, %v363
  %v369 = vsel %vm366, %v359, %v361
  %v370 = vsel %vm366, %v365, %v359
  %v371 = vadd.f32 %v354, %v369
  %v372 = vadd.f32 %v355, %v368
  %v373 = vadd.f32 %v356, %v367
  %v374 = vadd.f32 %v357, %v370
  %v375 = vmul.f32 %v371, 0.25
  %v376 = vmul.f32 %v372, 0.25
  %v377 = vmul.f32 %v373, 0.25
  %v378 = vmul.f32 %v374, 0.25
  %v379 = vsel %vm52, 1, 0
  %v380 = vsel %vm53, 1, 0
  %v381 = vsel %vm54, 1, 0
  %v382 = vsel %vm55, 1, 0
  %vm383 = vcmp.eq.s32.totalorder %v379, 1
  %vm384 = vcmp.eq.s32.totalorder %v380, 1
  %vm385 = vcmp.eq.s32.totalorder %v381, 1
  %vm386 = vcmp.eq.s32.totalorder %v382, 1
  %v387 = vsel %vm383, %v375, 0.0
  %v388 = vsel %vm384, %v376, 0.0
  %v389 = vsel %vm385, %v377, 0.0
  %v390 = vsel %vm386, %v378, 0.0
  %391 = vrot.lane.b32.xlu0 %v387, 34
  %v392 = vpop.permute.xlu0 %391
  %393 = vrot.lane.b32.xlu0 %v388, 34
  %v394 = vpop.permute.xlu0 %393
  %395 = vrot.lane.b32.xlu0 %v389, 34
  %v396 = vpop.permute.xlu0 %395
  %397 = vrot.lane.b32.xlu0 %v390, 34
  %v398 = vpop.permute.xlu0 %397
  %vm399 = vcmp.lt.s32.totalorder %v20, 34
  %v400 = vsel %vm399, %v396, %v398
  %v401 = vsel %vm399, %v394, %v396
  %v402 = vsel %vm399, %v392, %v394
  %v403 = vsel %vm399, %v398, %v392
  %v404 = vsel %vm228, 1, 0
  %v405 = vsel %vm229, 1, 0
  %v406 = vsel %vm230, 1, 0
  %v407 = vsel %vm231, 1, 0
  %vm408 = vcmp.eq.s32.totalorder %v404, 1
  %vm409 = vcmp.eq.s32.totalorder %v405, 1
  %vm410 = vcmp.eq.s32.totalorder %v406, 1
  %vm411 = vcmp.eq.s32.totalorder %v407, 1
  %v412 = vsel %vm408, %v403, 0.0
  %v413 = vsel %vm409, %v402, 0.0
  %v414 = vsel %vm410, %v401, 0.0
  %v415 = vsel %vm411, %v400, 0.0
  %416 = vrot.lane.b32.xlu0 %v387, 32
  %v417 = vpop.permute.xlu0 %416
  %418 = vrot.lane.b32.xlu0 %v388, 32
  %v419 = vpop.permute.xlu0 %418
  %420 = vrot.lane.b32.xlu0 %v389, 32
  %v421 = vpop.permute.xlu0 %420
  %422 = vrot.lane.b32.xlu0 %v390, 32
  %v423 = vpop.permute.xlu0 %422
  %vm424 = vcmp.lt.s32.totalorder %v20, 32
  %v425 = vsel %vm424, %v421, %v423
  %v426 = vsel %vm424, %v419, %v421
  %v427 = vsel %vm424, %v417, %v419
  %v428 = vsel %vm424, %v423, %v417
  %v429 = vsel %vm236, 1, 0
  %v430 = vsel %vm237, 1, 0
  %v431 = vsel %vm238, 1, 0
  %v432 = vsel %vm239, 1, 0
  %vm433 = vcmp.eq.s32.totalorder %v429, 1
  %vm434 = vcmp.eq.s32.totalorder %v430, 1
  %vm435 = vcmp.eq.s32.totalorder %v431, 1
  %vm436 = vcmp.eq.s32.totalorder %v432, 1
  %v437 = vsel %vm433, %v428, 0.0
  %v438 = vsel %vm434, %v427, 0.0
  %v439 = vsel %vm435, %v426, 0.0
  %v440 = vsel %vm436, %v425, 0.0
  %441 = vrot.lane.b32.xlu0 %v387, 30
  %v442 = vpop.permute.xlu0 %441
  %443 = vrot.lane.b32.xlu0 %v388, 30
  %v444 = vpop.permute.xlu0 %443
  %445 = vrot.lane.b32.xlu0 %v389, 30
  %v446 = vpop.permute.xlu0 %445
  %447 = vrot.lane.b32.xlu0 %v390, 30
  %v448 = vpop.permute.xlu0 %447
  %vm449 = vcmp.lt.s32.totalorder %v20, 30
  %v450 = vsel %vm449, %v446, %v448
  %v451 = vsel %vm449, %v444, %v446
  %v452 = vsel %vm449, %v442, %v444
  %v453 = vsel %vm449, %v448, %v442
  %v454 = vsel %vm256, 1, 0
  %v455 = vsel %vm257, 1, 0
  %v456 = vsel %vm258, 1, 0
  %v457 = vsel %vm259, 1, 0
  %vm458 = vcmp.eq.s32.totalorder %v454, 1
  %vm459 = vcmp.eq.s32.totalorder %v455, 1
  %vm460 = vcmp.eq.s32.totalorder %v456, 1
  %vm461 = vcmp.eq.s32.totalorder %v457, 1
  %v462 = vsel %vm458, %v453, 0.0
  %v463 = vsel %vm459, %v452, 0.0
  %v464 = vsel %vm460, %v451, 0.0
  %v465 = vsel %vm461, %v450, 0.0
  %466 = vrot.lane.b32.xlu0 %v387, 2
  %v467 = vpop.permute.xlu0 %466
  %468 = vrot.lane.b32.xlu0 %v388, 2
  %v469 = vpop.permute.xlu0 %468
  %470 = vrot.lane.b32.xlu0 %v389, 2
  %v471 = vpop.permute.xlu0 %470
  %472 = vrot.lane.b32.xlu0 %v390, 2
  %v473 = vpop.permute.xlu0 %472
  %vm474 = vcmp.lt.s32.totalorder %v20, 2
  %v475 = vsel %vm474, %v471, %v473
  %v476 = vsel %vm474, %v469, %v471
  %v477 = vsel %vm474, %v467, %v469
  %v478 = vsel %vm474, %v473, %v467
  %v479 = vsel %vm264, 1, 0
  %v480 = vsel %vm265, 1, 0
  %v481 = vsel %vm266, 1, 0
  %v482 = vsel %vm267, 1, 0
  %vm483 = vcmp.eq.s32.totalorder %v479, 1
  %vm484 = vcmp.eq.s32.totalorder %v480, 1
  %vm485 = vcmp.eq.s32.totalorder %v481, 1
  %vm486 = vcmp.eq.s32.totalorder %v482, 1
  %v487 = vsel %vm483, %v478, 0.0
  %v488 = vsel %vm484, %v477, 0.0
  %v489 = vsel %vm485, %v476, 0.0
  %v490 = vsel %vm486, %v475, 0.0
  %491 = vrot.lane.b32.xlu0 %v387, 126
  %v492 = vpop.permute.xlu0 %491
  %493 = vrot.lane.b32.xlu0 %v388, 126
  %v494 = vpop.permute.xlu0 %493
  %495 = vrot.lane.b32.xlu0 %v389, 126
  %v496 = vpop.permute.xlu0 %495
  %497 = vrot.lane.b32.xlu0 %v390, 126
  %v498 = vpop.permute.xlu0 %497
  %vm499 = vcmp.lt.s32.totalorder %v20, 126
  %v500 = vsel %vm499, %v496, %v498
  %v501 = vsel %vm499, %v494, %v496
  %v502 = vsel %vm499, %v492, %v494
  %v503 = vsel %vm499, %v498, %v492
  %v504 = vsel %vm272, 1, 0
  %v505 = vsel %vm273, 1, 0
  %v506 = vsel %vm274, 1, 0
  %v507 = vsel %vm275, 1, 0
  %vm508 = vcmp.eq.s32.totalorder %v504, 1
  %vm509 = vcmp.eq.s32.totalorder %v505, 1
  %vm510 = vcmp.eq.s32.totalorder %v506, 1
  %vm511 = vcmp.eq.s32.totalorder %v507, 1
  %v512 = vsel %vm508, %v502, 0.0
  %v513 = vsel %vm509, %v501, 0.0
  %v514 = vsel %vm510, %v500, 0.0
  %v515 = vsel %vm511, %v503, 0.0
  %516 = vrot.lane.b32.xlu0 %v387, 98
  %v517 = vpop.permute.xlu0 %516
  %518 = vrot.lane.b32.xlu0 %v388, 98
  %v519 = vpop.permute.xlu0 %518
  %520 = vrot.lane.b32.xlu0 %v389, 98
  %v521 = vpop.permute.xlu0 %520
  %522 = vrot.lane.b32.xlu0 %v390, 98
  %v523 = vpop.permute.xlu0 %522
  %vm524 = vcmp.lt.s32.totalorder %v20, 98
  %v525 = vsel %vm524, %v521, %v523
  %v526 = vsel %vm524, %v519, %v521
  %v527 = vsel %vm524, %v517, %v519
  %v528 = vsel %vm524, %v523, %v517
  %v529 = vsel %vm296, 1, 0
  %v530 = vsel %vm297, 1, 0
  %v531 = vsel %vm298, 1, 0
  %v532 = vsel %vm299, 1, 0
  %vm533 = vcmp.eq.s32.totalorder %v529, 1
  %vm534 = vcmp.eq.s32.totalorder %v530, 1
  %vm535 = vcmp.eq.s32.totalorder %v531, 1
  %vm536 = vcmp.eq.s32.totalorder %v532, 1
  %v537 = vsel %vm533, %v527, 0.0
  %v538 = vsel %vm534, %v526, 0.0
  %v539 = vsel %vm535, %v525, 0.0
  %v540 = vsel %vm536, %v528, 0.0
  %541 = vrot.lane.b32.xlu0 %v387, 96
  %v542 = vpop.permute.xlu0 %541
  %543 = vrot.lane.b32.xlu0 %v388, 96
  %v544 = vpop.permute.xlu0 %543
  %545 = vrot.lane.b32.xlu0 %v389, 96
  %v546 = vpop.permute.xlu0 %545
  %547 = vrot.lane.b32.xlu0 %v390, 96
  %v548 = vpop.permute.xlu0 %547
  %vm549 = vcmp.lt.s32.totalorder %v20, 96
  %v550 = vsel %vm549, %v546, %v548
  %v551 = vsel %vm549, %v544, %v546
  %v552 = vsel %vm549, %v542, %v544
  %v553 = vsel %vm549, %v548, %v542
  %v554 = vsel %vm304, 1, 0
  %v555 = vsel %vm305, 1, 0
  %v556 = vsel %vm306, 1, 0
  %v557 = vsel %vm307, 1, 0
  %vm558 = vcmp.eq.s32.totalorder %v554, 1
  %vm559 = vcmp.eq.s32.totalorder %v555, 1
  %vm560 = vcmp.eq.s32.totalorder %v556, 1
  %vm561 = vcmp.eq.s32.totalorder %v557, 1
  %v562 = vsel %vm558, %v552, 0.0
  %v563 = vsel %vm559, %v551, 0.0
  %v564 = vsel %vm560, %v550, 0.0
  %v565 = vsel %vm561, %v553, 0.0
  %566 = vrot.lane.b32.xlu0 %v387, 94
  %v567 = vpop.permute.xlu0 %566
  %568 = vrot.lane.b32.xlu0 %v388, 94
  %v569 = vpop.permute.xlu0 %568
  %570 = vrot.lane.b32.xlu0 %v389, 94
  %v571 = vpop.permute.xlu0 %570
  %572 = vrot.lane.b32.xlu0 %v390, 94
  %v573 = vpop.permute.xlu0 %572
  %vm574 = vcmp.lt.s32.totalorder %v20, 94
  %v575 = vsel %vm574, %v571, %v573
  %v576 = vsel %vm574, %v569, %v571
  %v577 = vsel %vm574, %v567, %v569
  %v578 = vsel %vm574, %v573, %v567
  %v579 = vsel %vm312, 1, 0
  %v580 = vsel %vm313, 1, 0
  %v581 = vsel %vm314, 1, 0
  %v582 = vsel %vm315, 1, 0
  %vm583 = vcmp.eq.s32.totalorder %v579, 1
  %vm584 = vcmp.eq.s32.totalorder %v580, 1
  %vm585 = vcmp.eq.s32.totalorder %v581, 1
  %vm586 = vcmp.eq.s32.totalorder %v582, 1
  %v587 = vsel %vm583, %v577, 0.0
  %v588 = vsel %vm584, %v576, 0.0
  %v589 = vsel %vm585, %v575, 0.0
  %v590 = vsel %vm586, %v578, 0.0
  %v591 = vld [vmem:[%s0] sm:$0xff]
  %v592 = vld [vmem:[%s1] sm:$0xff]
  %594 = vset.pattern.permute.xlu0 0
  %595 = vperm.xlu0 %594, %v592
  %v596 = vpop.permute.xlu0 %595
  %vm598 = vcmask 588800
  %v600 = vsel %vm598, %v591, 0
  %602 = vmatprep.subr.mxu0 %v413
  %603 = vmatpush1.msra.mxu0 %v412
  %604 = vmatprep.subr.mxu0 %v438
  %605 = vmatpush1.msra.mxu0 %v437
  %606 = vmatprep.subr.mxu0 %v463
  %607 = vmatpush1.msra.mxu0 %v462
  %608 = vmatprep.subr.mxu0 %v488
  %609 = vmatpush1.msra.mxu0 %v487
  %610 = vmatprep.subr.mxu0 %v388
  %611 = vmatpush1.msra.mxu0 %v387
  %612 = vmatprep.subr.mxu0 %v513
  %613 = vmatpush1.msra.mxu0 %v512
  %614 = vmatprep.subr.mxu0 %v538
  %615 = vmatpush1.msra.mxu0 %v537
  %616 = vmatprep.subr.mxu0 %v563
  %617 = vmatpush1.msra.mxu0 %v562
  %618 = vmatprep.subr.mxu0 %v588
  %619 = vmatpush1.msra.mxu0 %v587
  %620 = vmatprep.subr.mxu0 0.0
  %621 = vmatpush1.msra.mxu0 0.0
  %622 = vmatprep.subr.mxu0 0.0
  %623 = vmatpush1.msra.mxu0 0.0
  %624 = vmatprep.subr.mxu0 0.0
  %625 = vmatpush1.msra.mxu0 0.0
  %626 = vmatprep.subr.mxu0 0.0
  %627 = vmatpush1.msra.mxu0 0.0
  %628 = vmatprep.subr.mxu0 0.0
  %629 = vmatpush1.msra.mxu0 0.0
  %630 = vmatprep.subr.mxu0 0.0
  %631 = vmatpush1.msra.mxu0 0.0
  %632 = vmatprep.subr.mxu0 0.0
  %633 = vmatpush1.msra.mxu0 0.0
  %634 = vmatprep.subr.mxu0 0.0
  %635 = vmatpush1.msra.mxu0 0.0
  %636 = vmatprep.subr.mxu0 0.0
  %637 = vmatpush1.msra.mxu0 0.0
  %638 = vmatprep.subr.mxu0 0.0
  %639 = vmatpush1.msra.mxu0 0.0
  %640 = vmatprep.subr.mxu0 0.0
  %641 = vmatpush1.msra.mxu0 0.0
  %642 = vmatprep.subr.mxu0 0.0
  %643 = vmatpush1.msra.mxu0 0.0
  %644 = vmatprep.subr.mxu0 0.0
  %645 = vmatpush1.msra.mxu0 0.0
  %646 = vmatprep.subr.mxu0 0.0
  %647 = vmatpush1.msra.mxu0 0.0
  %648 = vmatprep.subr.mxu0 0.0
  %649 = vmatpush1.msra.mxu0 0.0
  %650 = vmatprep.subr.mxu0 0.0
  %651 = vmatpush1.msra.mxu0 0.0
  %652 = vmatprep.subr.mxu0 0.0
  %653 = vmatpush1.msra.mxu0 0.0
  %654 = vmatprep.subr.mxu0 0.0
  %655 = vmatpush1.msra.mxu0 0.0
  %656 = vmatprep.subr.mxu0 0.0
  %657 = vmatpush1.msra.mxu0 0.0
  %658 = vmatprep.subr.mxu0 0.0
  %659 = vmatpush1.msra.mxu0 0.0
  %660 = vmatprep.subr.mxu0 0.0
  %661 = vmatpush1.msra.mxu0 0.0
  %662 = vmatprep.subr.mxu0 0.0
  %663 = vmatpush1.msra.mxu0 0.0
  %664 = vmatprep.subr.mxu0 0.0
  %665 = vmatpush1.msra.mxu0 0.0
  %666 = vmatprep.mubr.f32.mxu0 0.0
  %667 = vmatmul.mubr.f32.gmra.mrb[0].mxu0 %v600
  %v668 = vpop.f32.mrb[0].mxu0
  %v669 = vadd.f32 %v596, %v668
  %v670 = vpop.f32.mrb[0].mxu0
  %v671 = vadd.f32 %v596, %v670
  %672 = vdwg.mxu0
  %673 = vmatprep.subr.mxu0 %v415
  %674 = vmatpush1.msra.mxu0 %v414
  %675 = vmatprep.subr.mxu0 %v440
  %676 = vmatpush1.msra.mxu0 %v439
  %677 = vmatprep.subr.mxu0 %v465
  %678 = vmatpush1.msra.mxu0 %v464
  %679 = vmatprep.subr.mxu0 %v490
  %680 = vmatpush1.msra.mxu0 %v489
  %681 = vmatprep.subr.mxu0 %v390
  %682 = vmatpush1.msra.mxu0 %v389
  %683 = vmatprep.subr.mxu0 %v515
  %684 = vmatpush1.msra.mxu0 %v514
  %685 = vmatprep.subr.mxu0 %v540
  %686 = vmatpush1.msra.mxu0 %v539
  %687 = vmatprep.subr.mxu0 %v565
  %688 = vmatpush1.msra.mxu0 %v564
  %689 = vmatprep.subr.mxu0 %v590
  %690 = vmatpush1.msra.mxu0 %v589
  %691 = vmatprep.subr.mxu0 0.0
  %692 = vmatpush1.msra.mxu0 0.0
  %693 = vmatprep.subr.mxu0 0.0
  %694 = vmatpush1.msra.mxu0 0.0
  %695 = vmatprep.subr.mxu0 0.0
  %696 = vmatpush1.msra.mxu0 0.0
  %697 = vmatprep.subr.mxu0 0.0
  %698 = vmatpush1.msra.mxu0 0.0
  %699 = vmatprep.subr.mxu0 0.0
  %700 = vmatpush1.msra.mxu0 0.0
  %701 = vmatprep.subr.mxu0 0.0
  %702 = vmatpush1.msra.mxu0 0.0
  %703 = vmatprep.subr.mxu0 0.0
  %704 = vmatpush1.msra.mxu0 0.0
  %705 = vmatprep.subr.mxu0 0.0
  %706 = vmatpush1.msra.mxu0 0.0
  %707 = vmatprep.subr.mxu0 0.0
  %708 = vmatpush1.msra.mxu0 0.0
  %709 = vmatprep.subr.mxu0 0.0
  %710 = vmatpush1.msra.mxu0 0.0
  %711 = vmatprep.subr.mxu0 0.0
  %712 = vmatpush1.msra.mxu0 0.0
  %713 = vmatprep.subr.mxu0 0.0
  %714 = vmatpush1.msra.mxu0 0.0
  %715 = vmatprep.subr.mxu0 0.0
  %716 = vmatpush1.msra.mxu0 0.0
  %717 = vmatprep.subr.mxu0 0.0
  %718 = vmatpush1.msra.mxu0 0.0
  %719 = vmatprep.subr.mxu0 0.0
  %720 = vmatpush1.msra.mxu0 0.0
  %721 = vmatprep.subr.mxu0 0.0
  %722 = vmatpush1.msra.mxu0 0.0
  %723 = vmatprep.subr.mxu0 0.0
  %724 = vmatpush1.msra.mxu0 0.0
  %725 = vmatprep.subr.mxu0 0.0
  %726 = vmatpush1.msra.mxu0 0.0
  %727 = vmatprep.subr.mxu0 0.0
  %728 = vmatpush1.msra.mxu0 0.0
  %729 = vmatprep.subr.mxu0 0.0
  %730 = vmatpush1.msra.mxu0 0.0
  %731 = vmatprep.subr.mxu0 0.0
  %732 = vmatpush1.msra.mxu0 0.0
  %733 = vmatprep.subr.mxu0 0.0
  %734 = vmatpush1.msra.mxu0 0.0
  %735 = vmatprep.subr.mxu0 0.0
  %736 = vmatpush1.msra.mxu0 0.0
  %737 = vmatprep.mubr.f32.mxu0 0.0
  %738 = vmatmul.mubr.f32.gmra.mrb[0].mxu0 %v600
  %v739 = vpop.f32.mrb[0].mxu0
  %v740 = vadd.f32 %v596, %v739
  %v741 = vpop.f32.mrb[0].mxu0
  %v742 = vadd.f32 %v596, %v741
  %743 = vdwg.mxu0
  %v744 = vmax.f32 %v669, 0.0
  %v745 = vmax.f32 %v671, 0.0
  %v746 = vmax.f32 %v740, 0.0
  %v747 = vmax.f32 %v742, 0.0
  %748 = vrot.lane.b32.xlu0 %v744, 34
  %v749 = vpop.permute.xlu0 %748
  %750 = vrot.lane.b32.xlu0 %v745, 34
  %v751 = vpop.permute.xlu0 %750
  %752 = vrot.lane.b32.xlu0 %v746, 34
  %v753 = vpop.permute.xlu0 %752
  %754 = vrot.lane.b32.xlu0 %v747, 34
  %v755 = vpop.permute.xlu0 %754
  %v756 = vsel %vm399, %v753, %v755
  %v757 = vsel %vm399, %v751, %v753
  %v758 = vsel %vm399, %v749, %v751
  %v759 = vsel %vm399, %v755, %v749
  %v760 = vsel %vm408, %v759, 0.0
  %v761 = vsel %vm409, %v758, 0.0
  %v762 = vsel %vm410, %v757, 0.0
  %v763 = vsel %vm411, %v756, 0.0
  %764 = vrot.lane.b32.xlu0 %v744, 32
  %v765 = vpop.permute.xlu0 %764
  %766 = vrot.lane.b32.xlu0 %v745, 32
  %v767 = vpop.permute.xlu0 %766
  %768 = vrot.lane.b32.xlu0 %v746, 32
  %v769 = vpop.permute.xlu0 %768
  %770 = vrot.lane.b32.xlu0 %v747, 32
  %v771 = vpop.permute.xlu0 %770
  %v772 = vsel %vm424, %v769, %v771
  %v773 = vsel %vm424, %v767, %v769
  %v774 = vsel %vm424, %v765, %v767
  %v775 = vsel %vm424, %v771, %v765
  %v776 = vsel %vm433, %v775, 0.0
  %v777 = vsel %vm434, %v774, 0.0
  %v778 = vsel %vm435, %v773, 0.0
  %v779 = vsel %vm436, %v772, 0.0
  %780 = vrot.lane.b32.xlu0 %v744, 30
  %v781 = vpop.permute.xlu0 %780
  %782 = vrot.lane.b32.xlu0 %v745, 30
  %v783 = vpop.permute.xlu0 %782
  %784 = vrot.lane.b32.xlu0 %v746, 30
  %v785 = vpop.permute.xlu0 %784
  %786 = vrot.lane.b32.xlu0 %v747, 30
  %v787 = vpop.permute.xlu0 %786
  %v788 = vsel %vm449, %v785, %v787
  %v789 = vsel %vm449, %v783, %v785
  %v790 = vsel %vm449, %v781, %v783
  %v791 = vsel %vm449, %v787, %v781
  %v792 = vsel %vm458, %v791, 0.0
  %v793 = vsel %vm459, %v790, 0.0
  %v794 = vsel %vm460, %v789, 0.0
  %v795 = vsel %vm461, %v788, 0.0
  %796 = vrot.lane.b32.xlu0 %v744, 2
  %v797 = vpop.permute.xlu0 %796
  %798 = vrot.lane.b32.xlu0 %v745, 2
  %v799 = vpop.permute.xlu0 %798
  %800 = vrot.lane.b32.xlu0 %v746, 2
  %v801 = vpop.permute.xlu0 %800
  %802 = vrot.lane.b32.xlu0 %v747, 2
  %v803 = vpop.permute.xlu0 %802
  %v804 = vsel %vm474, %v801, %v803
  %v805 = vsel %vm474, %v799, %v801
  %v806 = vsel %vm474, %v797, %v799
  %v807 = vsel %vm474, %v803, %v797
  %v808 = vsel %vm483, %v807, 0.0
  %v809 = vsel %vm484, %v806, 0.0
  %v810 = vsel %vm485, %v805, 0.0
  %v811 = vsel %vm486, %v804, 0.0
  %812 = vrot.lane.b32.xlu0 %v744, 126
  %v813 = vpop.permute.xlu0 %812
  %814 = vrot.lane.b32.xlu0 %v745, 126
  %v815 = vpop.permute.xlu0 %814
  %816 = vrot.lane.b32.xlu0 %v746, 126
  %v817 = vpop.permute.xlu0 %816
  %818 = vrot.lane.b32.xlu0 %v747, 126
  %v819 = vpop.permute.xlu0 %818
  %v820 = vsel %vm499, %v817, %v819
  %v821 = vsel %vm499, %v815, %v817
  %v822 = vsel %vm499, %v813, %v815
  %v823 = vsel %vm499, %v819, %v813
  %v824 = vsel %vm508, %v822, 0.0
  %v825 = vsel %vm509, %v821, 0.0
  %v826 = vsel %vm510, %v820, 0.0
  %v827 = vsel %vm511, %v823, 0.0
  %828 = vrot.lane.b32.xlu0 %v744, 98
  %v829 = vpop.permute.xlu0 %828
  %830 = vrot.lane.b32.xlu0 %v745, 98
  %v831 = vpop.permute.xlu0 %830
  %832 = vrot.lane.b32.xlu0 %v746, 98
  %v833 = vpop.permute.xlu0 %832
  %834 = vrot.lane.b32.xlu0 %v747, 98
  %v835 = vpop.permute.xlu0 %834
  %v836 = vsel %vm524, %v833, %v835
  %v837 = vsel %vm524, %v831, %v833
  %v838 = vsel %vm524, %v829, %v831
  %v839 = vsel %vm524, %v835, %v829
  %v840 = vsel %vm533, %v838, 0.0
  %v841 = vsel %vm534, %v837, 0.0
  %v842 = vsel %vm535, %v836, 0.0
  %v843 = vsel %vm536, %v839, 0.0
  %844 = vrot.lane.b32.xlu0 %v744, 96
  %v845 = vpop.permute.xlu0 %844
  %846 = vrot.lane.b32.xlu0 %v745, 96
  %v847 = vpop.permute.xlu0 %846
  %848 = vrot.lane.b32.xlu0 %v746, 96
  %v849 = vpop.permute.xlu0 %848
  %850 = vrot.lane.b32.xlu0 %v747, 96
  %v851 = vpop.permute.xlu0 %850
  %v852 = vsel %vm549, %v849, %v851
  %v853 = vsel %vm549, %v847, %v849
  %v854 = vsel %vm549, %v845, %v847
  %v855 = vsel %vm549, %v851, %v845
  %v856 = vsel %vm558, %v854, 0.0
  %v857 = vsel %vm559, %v853, 0.0
  %v858 = vsel %vm560, %v852, 0.0
  %v859 = vsel %vm561, %v855, 0.0
  %860 = vrot.lane.b32.xlu0 %v744, 94
  %v861 = vpop.permute.xlu0 %860
  %862 = vrot.lane.b32.xlu0 %v745, 94
  %v863 = vpop.permute.xlu0 %862
  %864 = vrot.lane.b32.xlu0 %v746, 94
  %v865 = vpop.permute.xlu0 %864
  %866 = vrot.lane.b32.xlu0 %v747, 94
  %v867 = vpop.permute.xlu0 %866
  %v868 = vsel %vm574, %v865, %v867
  %v869 = vsel %vm574, %v863, %v865
  %v870 = vsel %vm574, %v861, %v863
  %v871 = vsel %vm574, %v867, %v861
  %v872 = vsel %vm583, %v870, 0.0
  %v873 = vsel %vm584, %v869, 0.0
  %v874 = vsel %vm585, %v868, 0.0
  %v875 = vsel %vm586, %v871, 0.0
  %s876 = scalar_lea.vmem %s0, 8
  %v877 = vld [vmem:[%s876] sm:$0xff]
  %s878 = scalar_lea.vmem %s1, 8
  %v879 = vld [vmem:[%s878] sm:$0xff]
  %881 = vset.pattern.permute.xlu0 0
  %882 = vperm.xlu0 %881, %v879
  %v883 = vpop.permute.xlu0 %882
  %v886 = vsel %vm598, %v877, 0
  %888 = vmatprep.subr.mxu0 %v761
  %889 = vmatpush1.msra.mxu0 %v760
  %890 = vmatprep.subr.mxu0 %v777
  %891 = vmatpush1.msra.mxu0 %v776
  %892 = vmatprep.subr.mxu0 %v793
  %893 = vmatpush1.msra.mxu0 %v792
  %894 = vmatprep.subr.mxu0 %v809
  %895 = vmatpush1.msra.mxu0 %v808
  %896 = vmatprep.subr.mxu0 %v745
  %897 = vmatpush1.msra.mxu0 %v744
  %898 = vmatprep.subr.mxu0 %v825
  %899 = vmatpush1.msra.mxu0 %v824
  %900 = vmatprep.subr.mxu0 %v841
  %901 = vmatpush1.msra.mxu0 %v840
  %902 = vmatprep.subr.mxu0 %v857
  %903 = vmatpush1.msra.mxu0 %v856
  %904 = vmatprep.subr.mxu0 %v873
  %905 = vmatpush1.msra.mxu0 %v872
  %906 = vmatprep.subr.mxu0 0.0
  %907 = vmatpush1.msra.mxu0 0.0
  %908 = vmatprep.subr.mxu0 0.0
  %909 = vmatpush1.msra.mxu0 0.0
  %910 = vmatprep.subr.mxu0 0.0
  %911 = vmatpush1.msra.mxu0 0.0
  %912 = vmatprep.subr.mxu0 0.0
  %913 = vmatpush1.msra.mxu0 0.0
  %914 = vmatprep.subr.mxu0 0.0
  %915 = vmatpush1.msra.mxu0 0.0
  %916 = vmatprep.subr.mxu0 0.0
  %917 = vmatpush1.msra.mxu0 0.0
  %918 = vmatprep.subr.mxu0 0.0
  %919 = vmatpush1.msra.mxu0 0.0
  %920 = vmatprep.subr.mxu0 0.0
  %921 = vmatpush1.msra.mxu0 0.0
  %922 = vmatprep.subr.mxu0 0.0
  %923 = vmatpush1.msra.mxu0 0.0
  %924 = vmatprep.subr.mxu0 0.0
  %925 = vmatpush1.msra.mxu0 0.0
  %926 = vmatprep.subr.mxu0 0.0
  %927 = vmatpush1.msra.mxu0 0.0
  %928 = vmatprep.subr.mxu0 0.0
  %929 = vmatpush1.msra.mxu0 0.0
  %930 = vmatprep.subr.mxu0 0.0
  %931 = vmatpush1.msra.mxu0 0.0
  %932 = vmatprep.subr.mxu0 0.0
  %933 = vmatpush1.msra.mxu0 0.0
  %934 = vmatprep.subr.mxu0 0.0
  %935 = vmatpush1.msra.mxu0 0.0
  %936 = vmatprep.subr.mxu0 0.0
  %937 = vmatpush1.msra.mxu0 0.0
  %938 = vmatprep.subr.mxu0 0.0
  %939 = vmatpush1.msra.mxu0 0.0
  %940 = vmatprep.subr.mxu0 0.0
  %941 = vmatpush1.msra.mxu0 0.0
  %942 = vmatprep.subr.mxu0 0.0
  %943 = vmatpush1.msra.mxu0 0.0
  %944 = vmatprep.subr.mxu0 0.0
  %945 = vmatpush1.msra.mxu0 0.0
  %946 = vmatprep.subr.mxu0 0.0
  %947 = vmatpush1.msra.mxu0 0.0
  %948 = vmatprep.subr.mxu0 0.0
  %949 = vmatpush1.msra.mxu0 0.0
  %950 = vmatprep.subr.mxu0 0.0
  %951 = vmatpush1.msra.mxu0 0.0
  %952 = vmatprep.mubr.f32.mxu0 0.0
  %953 = vmatmul.mubr.f32.gmra.mrb[0].mxu0 %v886
  %v954 = vpop.f32.mrb[0].mxu0
  %v955 = vadd.f32 %v883, %v954
  %v956 = vpop.f32.mrb[0].mxu0
  %v957 = vadd.f32 %v883, %v956
  %958 = vdwg.mxu0
  %959 = vmatprep.subr.mxu0 %v763
  %960 = vmatpush1.msra.mxu0 %v762
  %961 = vmatprep.subr.mxu0 %v779
  %962 = vmatpush1.msra.mxu0 %v778
  %963 = vmatprep.subr.mxu0 %v795
  %964 = vmatpush1.msra.mxu0 %v794
  %965 = vmatprep.subr.mxu0 %v811
  %966 = vmatpush1.msra.mxu0 %v810
  %967 = vmatprep.subr.mxu0 %v747
  %968 = vmatpush1.msra.mxu0 %v746
  %969 = vmatprep.subr.mxu0 %v827
  %970 = vmatpush1.msra.mxu0 %v826
  %971 = vmatprep.subr.mxu0 %v843
  %972 = vmatpush1.msra.mxu0 %v842
  %973 = vmatprep.subr.mxu0 %v859
  %974 = vmatpush1.msra.mxu0 %v858
  %975 = vmatprep.subr.mxu0 %v875
  %976 = vmatpush1.msra.mxu0 %v874
  %977 = vmatprep.subr.mxu0 0.0
  %978 = vmatpush1.msra.mxu0 0.0
  %979 = vmatprep.subr.mxu0 0.0
  %980 = vmatpush1.msra.mxu0 0.0
  %981 = vmatprep.subr.mxu0 0.0
  %982 = vmatpush1.msra.mxu0 0.0
  %983 = vmatprep.subr.mxu0 0.0
  %984 = vmatpush1.msra.mxu0 0.0
  %985 = vmatprep.subr.mxu0 0.0
  %986 = vmatpush1.msra.mxu0 0.0
  %987 = vmatprep.subr.mxu0 0.0
  %988 = vmatpush1.msra.mxu0 0.0
  %989 = vmatprep.subr.mxu0 0.0
  %990 = vmatpush1.msra.mxu0 0.0
  %991 = vmatprep.subr.mxu0 0.0
  %992 = vmatpush1.msra.mxu0 0.0
  %993 = vmatprep.subr.mxu0 0.0
  %994 = vmatpush1.msra.mxu0 0.0
  %995 = vmatprep.subr.mxu0 0.0
  %996 = vmatpush1.msra.mxu0 0.0
  %997 = vmatprep.subr.mxu0 0.0
  %998 = vmatpush1.msra.mxu0 0.0
  %999 = vmatprep.subr.mxu0 0.0
  %1000 = vmatpush1.msra.mxu0 0.0
  %1001 = vmatprep.subr.mxu0 0.0
  %1002 = vmatpush1.msra.mxu0 0.0
  %1003 = vmatprep.subr.mxu0 0.0
  %1004 = vmatpush1.msra.mxu0 0.0
  %1005 = vmatprep.subr.mxu0 0.0
  %1006 = vmatpush1.msra.mxu0 0.0
  %1007 = vmatprep.subr.mxu0 0.0
  %1008 = vmatpush1.msra.mxu0 0.0
  %1009 = vmatprep.subr.mxu0 0.0
  %1010 = vmatpush1.msra.mxu0 0.0
  %1011 = vmatprep.subr.mxu0 0.0
  %1012 = vmatpush1.msra.mxu0 0.0
  %1013 = vmatprep.subr.mxu0 0.0
  %1014 = vmatpush1.msra.mxu0 0.0
  %1015 = vmatprep.subr.mxu0 0.0
  %1016 = vmatpush1.msra.mxu0 0.0
  %1017 = vmatprep.subr.mxu0 0.0
  %1018 = vmatpush1.msra.mxu0 0.0
  %1019 = vmatprep.subr.mxu0 0.0
  %1020 = vmatpush1.msra.mxu0 0.0
  %1021 = vmatprep.subr.mxu0 0.0
  %1022 = vmatpush1.msra.mxu0 0.0
  %1023 = vmatprep.mubr.f32.mxu0 0.0
  %1024 = vmatmul.mubr.f32.gmra.mrb[0].mxu0 %v886
  %v1025 = vpop.f32.mrb[0].mxu0
  %v1026 = vadd.f32 %v883, %v1025
  %v1027 = vpop.f32.mrb[0].mxu0
  %v1028 = vadd.f32 %v883, %v1027
  %1029 = vdwg.mxu0
  %v1030 = vadd.f32 %v955, %v387
  %v1031 = vadd.f32 %v957, %v388
  %v1032 = vadd.f32 %v1026, %v389
  %v1033 = vadd.f32 %v1028, %v390
  %v1034 = vmax.f32 %v1030, 0.0
  %v1035 = vmax.f32 %v1031, 0.0
  %v1036 = vmax.f32 %v1032, 0.0
  %v1037 = vmax.f32 %v1033, 0.0
  %v1038 = vsel %vm383, %v1034, 0.0
  %v1039 = vsel %vm384, %v1035, 0.0
  %v1040 = vsel %vm385, %v1036, 0.0
  %v1041 = vsel %vm386, %v1037, 0.0
  %1042 = vrot.lane.b32.xlu0 %v1038, 1
  %v1043 = vpop.permute.xlu0 %1042
  %1044 = vrot.lane.b32.xlu0 %v1039, 1
  %v1045 = vpop.permute.xlu0 %1044
  %1046 = vrot.lane.b32.xlu0 %v1040, 1
  %v1047 = vpop.permute.xlu0 %1046
  %1048 = vrot.lane.b32.xlu0 %v1041, 1
  %v1049 = vpop.permute.xlu0 %1048
  %vm1050 = vcmp.lt.s32.totalorder %v20, 1
  %v1051 = vsel %vm1050, %v1047, %v1049
  %v1052 = vsel %vm1050, %v1045, %v1047
  %v1053 = vsel %vm1050, %v1043, %v1045
  %v1054 = vsel %vm1050, %v1049, %v1043
  %v1055 = vadd.f32 %v1038, %v1054
  %v1056 = vadd.f32 %v1039, %v1053
  %v1057 = vadd.f32 %v1040, %v1052
  %v1058 = vadd.f32 %v1041, %v1051
  %1059 = vrot.lane.b32.xlu0 %v1038, 16
  %v1060 = vpop.permute.xlu0 %1059
  %1061 = vrot.lane.b32.xlu0 %v1039, 16
  %v1062 = vpop.permute.xlu0 %1061
  %1063 = vrot.lane.b32.xlu0 %v1040, 16
  %v1064 = vpop.permute.xlu0 %1063
  %1065 = vrot.lane.b32.xlu0 %v1041, 16
  %v1066 = vpop.permute.xlu0 %1065
  %vm1067 = vcmp.lt.s32.totalorder %v20, 16
  %v1068 = vsel %vm1067, %v1064, %v1066
  %v1069 = vsel %vm1067, %v1062, %v1064
  %v1070 = vsel %vm1067, %v1060, %v1062
  %v1071 = vsel %vm1067, %v1066, %v1060
  %v1072 = vadd.f32 %v1055, %v1071
  %v1073 = vadd.f32 %v1056, %v1070
  %v1074 = vadd.f32 %v1057, %v1069
  %v1075 = vadd.f32 %v1058, %v1068
  %1076 = vrot.lane.b32.xlu0 %v1038, 17
  %v1077 = vpop.permute.xlu0 %1076
  %1078 = vrot.lane.b32.xlu0 %v1039, 17
  %v1079 = vpop.permute.xlu0 %1078
  %1080 = vrot.lane.b32.xlu0 %v1040, 17
  %v1081 = vpop.permute.xlu0 %1080
  %1082 = vrot.lane.b32.xlu0 %v1041, 17
  %v1083 = vpop.permute.xlu0 %1082
  %vm1084 = vcmp.lt.s32.totalorder %v20, 17
  %v1085 = vsel %vm1084, %v1081, %v1083
  %v1086 = vsel %vm1084, %v1079, %v1081
  %v1087 = vsel %vm1084, %v1077, %v1079
  %v1088 = vsel %vm1084, %v1083, %v1077
  %v1089 = vadd.f32 %v1072, %v1088
  %v1090 = vadd.f32 %v1073, %v1087
  %v1091 = vadd.f32 %v1074, %v1086
  %v1092 = vadd.f32 %v1075, %v1085
  %v1093 = vadd.f32 %v316, %v1089
  %v1094 = vadd.f32 %v317, %v1090
  %v1095 = vadd.f32 %v318, %v1091
  %v1096 = vadd.f32 %v319, %v1092
  %1097 = vrot.lane.b32.xlu0 %v1093, 17
  %v1098 = vpop.permute.xlu0 %1097
  %1099 = vrot.lane.b32.xlu0 %v1094, 17
  %v1100 = vpop.permute.xlu0 %1099
  %1101 = vrot.lane.b32.xlu0 %v1095, 17
  %v1102 = vpop.permute.xlu0 %1101
  %1103 = vrot.lane.b32.xlu0 %v1096, 17
  %v1104 = vpop.permute.xlu0 %1103
  %v1105 = vsel %vm1084, %v1102, %v1104
  %v1106 = vsel %vm1084, %v1100, %v1102
  %v1107 = vsel %vm1084, %v1098, %v1100
  %v1108 = vsel %vm1084, %v1104, %v1098
  %v1109 = vsel %vm88, 1, 0
  %v1110 = vsel %vm89, 1, 0
  %v1111 = vsel %vm90, 1, 0
  %v1112 = vsel %vm91, 1, 0
  %vm1113 = vcmp.eq.s32.totalorder %v1109, 1
  %vm1114 = vcmp.eq.s32.totalorder %v1110, 1
  %vm1115 = vcmp.eq.s32.totalorder %v1111, 1
  %vm1116 = vcmp.eq.s32.totalorder %v1112, 1
  %v1117 = vsel %vm1113, %v1108, 0.0
  %v1118 = vsel %vm1114, %v1107, 0.0
  %v1119 = vsel %vm1115, %v1106, 0.0
  %v1120 = vsel %vm1116, %v1105, 0.0
  %1121 = vrot.lane.b32.xlu0 %v1093, 16
  %v1122 = vpop.permute.xlu0 %1121
  %1123 = vrot.lane.b32.xlu0 %v1094, 16
  %v1124 = vpop.permute.xlu0 %1123
  %1125 = vrot.lane.b32.xlu0 %v1095, 16
  %v1126 = vpop.permute.xlu0 %1125
  %1127 = vrot.lane.b32.xlu0 %v1096, 16
  %v1128 = vpop.permute.xlu0 %1127
  %v1129 = vsel %vm1067, %v1126, %v1128
  %v1130 = vsel %vm1067, %v1124, %v1126
  %v1131 = vsel %vm1067, %v1122, %v1124
  %v1132 = vsel %vm1067, %v1128, %v1122
  %v1133 = vsel %vm104, 1, 0
  %v1134 = vsel %vm105, 1, 0
  %v1135 = vsel %vm106, 1, 0
  %v1136 = vsel %vm107, 1, 0
  %vm1137 = vcmp.eq.s32.totalorder %v1133, 1
  %vm1138 = vcmp.eq.s32.totalorder %v1134, 1
  %vm1139 = vcmp.eq.s32.totalorder %v1135, 1
  %vm1140 = vcmp.eq.s32.totalorder %v1136, 1
  %v1141 = vsel %vm1137, %v1132, 0.0
  %v1142 = vsel %vm1138, %v1131, 0.0
  %v1143 = vsel %vm1139, %v1130, 0.0
  %v1144 = vsel %vm1140, %v1129, 0.0
  %1145 = vrot.lane.b32.xlu0 %v1093, 15
  %v1146 = vpop.permute.xlu0 %1145
  %1147 = vrot.lane.b32.xlu0 %v1094, 15
  %v1148 = vpop.permute.xlu0 %1147
  %1149 = vrot.lane.b32.xlu0 %v1095, 15
  %v1150 = vpop.permute.xlu0 %1149
  %1151 = vrot.lane.b32.xlu0 %v1096, 15
  %v1152 = vpop.permute.xlu0 %1151
  %vm1153 = vcmp.lt.s32.totalorder %v20, 15
  %v1154 = vsel %vm1153, %v1150, %v1152
  %v1155 = vsel %vm1153, %v1148, %v1150
  %v1156 = vsel %vm1153, %v1146, %v1148
  %v1157 = vsel %vm1153, %v1152, %v1146
  %v1158 = vsel %vm124, 1, 0
  %v1159 = vsel %vm125, 1, 0
  %v1160 = vsel %vm126, 1, 0
  %v1161 = vsel %vm127, 1, 0
  %vm1162 = vcmp.eq.s32.totalorder %v1158, 1
  %vm1163 = vcmp.eq.s32.totalorder %v1159, 1
  %vm1164 = vcmp.eq.s32.totalorder %v1160, 1
  %vm1165 = vcmp.eq.s32.totalorder %v1161, 1
  %v1166 = vsel %vm1162, %v1157, 0.0
  %v1167 = vsel %vm1163, %v1156, 0.0
  %v1168 = vsel %vm1164, %v1155, 0.0
  %v1169 = vsel %vm1165, %v1154, 0.0
  %1170 = vrot.lane.b32.xlu0 %v1093, 1
  %v1171 = vpop.permute.xlu0 %1170
  %1172 = vrot.lane.b32.xlu0 %v1094, 1
  %v1173 = vpop.permute.xlu0 %1172
  %1174 = vrot.lane.b32.xlu0 %v1095, 1
  %v1175 = vpop.permute.xlu0 %1174
  %1176 = vrot.lane.b32.xlu0 %v1096, 1
  %v1177 = vpop.permute.xlu0 %1176
  %v1178 = vsel %vm1050, %v1175, %v1177
  %v1179 = vsel %vm1050, %v1173, %v1175
  %v1180 = vsel %vm1050, %v1171, %v1173
  %v1181 = vsel %vm1050, %v1177, %v1171
  %v1182 = vsel %vm144, 1, 0
  %v1183 = vsel %vm145, 1, 0
  %v1184 = vsel %vm146, 1, 0
  %v1185 = vsel %vm147, 1, 0
  %vm1186 = vcmp.eq.s32.totalorder %v1182, 1
  %vm1187 = vcmp.eq.s32.totalorder %v1183, 1
  %vm1188 = vcmp.eq.s32.totalorder %v1184, 1
  %vm1189 = vcmp.eq.s32.totalorder %v1185, 1
  %v1190 = vsel %vm1186, %v1181, 0.0
  %v1191 = vsel %vm1187, %v1180, 0.0
  %v1192 = vsel %vm1188, %v1179, 0.0
  %v1193 = vsel %vm1189, %v1178, 0.0
  %1194 = vrot.lane.b32.xlu0 %v1093, 127
  %v1195 = vpop.permute.xlu0 %1194
  %1196 = vrot.lane.b32.xlu0 %v1094, 127
  %v1197 = vpop.permute.xlu0 %1196
  %1198 = vrot.lane.b32.xlu0 %v1095, 127
  %v1199 = vpop.permute.xlu0 %1198
  %1200 = vrot.lane.b32.xlu0 %v1096, 127
  %v1201 = vpop.permute.xlu0 %1200
  %v1202 = vsel %vm332, %v1199, %v1201
  %v1203 = vsel %vm332, %v1197, %v1199
  %v1204 = vsel %vm332, %v1195, %v1197
  %v1205 = vsel %vm332, %v1201, %v1195
  %v1206 = vsel %vm152, 1, 0
  %v1207 = vsel %vm153, 1, 0
  %v1208 = vsel %vm154, 1, 0
  %v1209 = vsel %vm155, 1, 0
  %vm1210 = vcmp.eq.s32.totalorder %v1206, 1
  %vm1211 = vcmp.eq.s32.totalorder %v1207, 1
  %vm1212 = vcmp.eq.s32.totalorder %v1208, 1
  %vm1213 = vcmp.eq.s32.totalorder %v1209, 1
  %v1214 = vsel %vm1210, %v1204, 0.0
  %v1215 = vsel %vm1211, %v1203, 0.0
  %v1216 = vsel %vm1212, %v1202, 0.0
  %v1217 = vsel %vm1213, %v1205, 0.0
  %1218 = vrot.lane.b32.xlu0 %v1093, 113
  %v1219 = vpop.permute.xlu0 %1218
  %1220 = vrot.lane.b32.xlu0 %v1094, 113
  %v1221 = vpop.permute.xlu0 %1220
  %1222 = vrot.lane.b32.xlu0 %v1095, 113
  %v1223 = vpop.permute.xlu0 %1222
  %1224 = vrot.lane.b32.xlu0 %v1096, 113
  %v1225 = vpop.permute.xlu0 %1224
  %vm1226 = vcmp.lt.s32.totalorder %v20, 113
  %v1227 = vsel %vm1226, %v1223, %v1225
  %v1228 = vsel %vm1226, %v1221, %v1223
  %v1229 = vsel %vm1226, %v1219, %v1221
  %v1230 = vsel %vm1226, %v1225, %v1219
  %v1231 = vsel %vm176, 1, 0
  %v1232 = vsel %vm177, 1, 0
  %v1233 = vsel %vm178, 1, 0
  %v1234 = vsel %vm179, 1, 0
  %vm1235 = vcmp.eq.s32.totalorder %v1231, 1
  %vm1236 = vcmp.eq.s32.totalorder %v1232, 1
  %vm1237 = vcmp.eq.s32.totalorder %v1233, 1
  %vm1238 = vcmp.eq.s32.totalorder %v1234, 1
  %v1239 = vsel %vm1235, %v1229, 0.0
  %v1240 = vsel %vm1236, %v1228, 0.0
  %v1241 = vsel %vm1237, %v1227, 0.0
  %v1242 = vsel %vm1238, %v1230, 0.0
  %1243 = vrot.lane.b32.xlu0 %v1093, 112
  %v1244 = vpop.permute.xlu0 %1243
  %1245 = vrot.lane.b32.xlu0 %v1094, 112
  %v1246 = vpop.permute.xlu0 %1245
  %1247 = vrot.lane.b32.xlu0 %v1095, 112
  %v1248 = vpop.permute.xlu0 %1247
  %1249 = vrot.lane.b32.xlu0 %v1096, 112
  %v1250 = vpop.permute.xlu0 %1249
  %v1251 = vsel %vm349, %v1248, %v1250
  %v1252 = vsel %vm349, %v1246, %v1248
  %v1253 = vsel %vm349, %v1244, %v1246
  %v1254 = vsel %vm349, %v1250, %v1244
  %v1255 = vsel %vm184, 1, 0
  %v1256 = vsel %vm185, 1, 0
  %v1257 = vsel %vm186, 1, 0
  %v1258 = vsel %vm187, 1, 0
  %vm1259 = vcmp.eq.s32.totalorder %v1255, 1
  %vm1260 = vcmp.eq.s32.totalorder %v1256, 1
  %vm1261 = vcmp.eq.s32.totalorder %v1257, 1
  %vm1262 = vcmp.eq.s32.totalorder %v1258, 1
  %v1263 = vsel %vm1259, %v1253, 0.0
  %v1264 = vsel %vm1260, %v1252, 0.0
  %v1265 = vsel %vm1261, %v1251, 0.0
  %v1266 = vsel %vm1262, %v1254, 0.0
  %1267 = vrot.lane.b32.xlu0 %v1093, 111
  %v1268 = vpop.permute.xlu0 %1267
  %1269 = vrot.lane.b32.xlu0 %v1094, 111
  %v1270 = vpop.permute.xlu0 %1269
  %1271 = vrot.lane.b32.xlu0 %v1095, 111
  %v1272 = vpop.permute.xlu0 %1271
  %1273 = vrot.lane.b32.xlu0 %v1096, 111
  %v1274 = vpop.permute.xlu0 %1273
  %v1275 = vsel %vm366, %v1272, %v1274
  %v1276 = vsel %vm366, %v1270, %v1272
  %v1277 = vsel %vm366, %v1268, %v1270
  %v1278 = vsel %vm366, %v1274, %v1268
  %v1279 = vsel %vm192, 1, 0
  %v1280 = vsel %vm193, 1, 0
  %v1281 = vsel %vm194, 1, 0
  %v1282 = vsel %vm195, 1, 0
  %vm1283 = vcmp.eq.s32.totalorder %v1279, 1
  %vm1284 = vcmp.eq.s32.totalorder %v1280, 1
  %vm1285 = vcmp.eq.s32.totalorder %v1281, 1
  %vm1286 = vcmp.eq.s32.totalorder %v1282, 1
  %v1287 = vsel %vm1283, %v1277, 0.0
  %v1288 = vsel %vm1284, %v1276, 0.0
  %v1289 = vsel %vm1285, %v1275, 0.0
  %v1290 = vsel %vm1286, %v1278, 0.0
  %s1291 = scalar_lea.vmem %s0, 16
  %v1292 = vld [vmem:[%s1291] sm:$0xff]
  %s1293 = scalar_lea.vmem %s1, 16
  %v1294 = vld [vmem:[%s1293] sm:$0xff]
  %1296 = vset.pattern.permute.xlu0 0
  %1297 = vperm.xlu0 %1296, %v1294
  %v1298 = vpop.permute.xlu0 %1297
  %v1301 = vsel %vm598, %v1292, 0
  %1303 = vmatprep.subr.mxu0 %v1118
  %1304 = vmatpush1.msra.mxu0 %v1117
  %1305 = vmatprep.subr.mxu0 %v1142
  %1306 = vmatpush1.msra.mxu0 %v1141
  %1307 = vmatprep.subr.mxu0 %v1167
  %1308 = vmatpush1.msra.mxu0 %v1166
  %1309 = vmatprep.subr.mxu0 %v1191
  %1310 = vmatpush1.msra.mxu0 %v1190
  %1311 = vmatprep.subr.mxu0 %v1094
  %1312 = vmatpush1.msra.mxu0 %v1093
  %1313 = vmatprep.subr.mxu0 %v1215
  %1314 = vmatpush1.msra.mxu0 %v1214
  %1315 = vmatprep.subr.mxu0 %v1240
  %1316 = vmatpush1.msra.mxu0 %v1239
  %1317 = vmatprep.subr.mxu0 %v1264
  %1318 = vmatpush1.msra.mxu0 %v1263
  %1319 = vmatprep.subr.mxu0 %v1288
  %1320 = vmatpush1.msra.mxu0 %v1287
  %1321 = vmatprep.subr.mxu0 0.0
  %1322 = vmatpush1.msra.mxu0 0.0
  %1323 = vmatprep.subr.mxu0 0.0
  %1324 = vmatpush1.msra.mxu0 0.0
  %1325 = vmatprep.subr.mxu0 0.0
  %1326 = vmatpush1.msra.mxu0 0.0
  %1327 = vmatprep.subr.mxu0 0.0
  %1328 = vmatpush1.msra.mxu0 0.0
  %1329 = vmatprep.subr.mxu0 0.0
  %1330 = vmatpush1.msra.mxu0 0.0
  %1331 = vmatprep.subr.mxu0 0.0
  %1332 = vmatpush1.msra.mxu0 0.0
  %1333 = vmatprep.subr.mxu0 0.0
  %1334 = vmatpush1.msra.mxu0 0.0
  %1335 = vmatprep.subr.mxu0 0.0
  %1336 = vmatpush1.msra.mxu0 0.0
  %1337 = vmatprep.subr.mxu0 0.0
  %1338 = vmatpush1.msra.mxu0 0.0
  %1339 = vmatprep.subr.mxu0 0.0
  %1340 = vmatpush1.msra.mxu0 0.0
  %1341 = vmatprep.subr.mxu0 0.0
  %1342 = vmatpush1.msra.mxu0 0.0
  %1343 = vmatprep.subr.mxu0 0.0
  %1344 = vmatpush1.msra.mxu0 0.0
  %1345 = vmatprep.subr.mxu0 0.0
  %1346 = vmatpush1.msra.mxu0 0.0
  %1347 = vmatprep.subr.mxu0 0.0
  %1348 = vmatpush1.msra.mxu0 0.0
  %1349 = vmatprep.subr.mxu0 0.0
  %1350 = vmatpush1.msra.mxu0 0.0
  %1351 = vmatprep.subr.mxu0 0.0
  %1352 = vmatpush1.msra.mxu0 0.0
  %1353 = vmatprep.subr.mxu0 0.0
  %1354 = vmatpush1.msra.mxu0 0.0
  %1355 = vmatprep.subr.mxu0 0.0
  %1356 = vmatpush1.msra.mxu0 0.0
  %1357 = vmatprep.subr.mxu0 0.0
  %1358 = vmatpush1.msra.mxu0 0.0
  %1359 = vmatprep.subr.mxu0 0.0
  %1360 = vmatpush1.msra.mxu0 0.0
  %1361 = vmatprep.subr.mxu0 0.0
  %1362 = vmatpush1.msra.mxu0 0.0
  %1363 = vmatprep.subr.mxu0 0.0
  %1364 = vmatpush1.msra.mxu0 0.0
  %1365 = vmatprep.subr.mxu0 0.0
  %1366 = vmatpush1.msra.mxu0 0.0
  %1367 = vmatprep.mubr.f32.mxu0 0.0
  %1368 = vmatmul.mubr.f32.gmra.mrb[0].mxu0 %v1301
  %v1369 = vpop.f32.mrb[0].mxu0
  %v1370 = vadd.f32 %v1298, %v1369
  %v1371 = vpop.f32.mrb[0].mxu0
  %v1372 = vadd.f32 %v1298, %v1371
  %1373 = vdwg.mxu0
  %1374 = vmatprep.subr.mxu0 %v1120
  %1375 = vmatpush1.msra.mxu0 %v1119
  %1376 = vmatprep.subr.mxu0 %v1144
  %1377 = vmatpush1.msra.mxu0 %v1143
  %1378 = vmatprep.subr.mxu0 %v1169
  %1379 = vmatpush1.msra.mxu0 %v1168
  %1380 = vmatprep.subr.mxu0 %v1193
  %1381 = vmatpush1.msra.mxu0 %v1192
  %1382 = vmatprep.subr.mxu0 %v1096
  %1383 = vmatpush1.msra.mxu0 %v1095
  %1384 = vmatprep.subr.mxu0 %v1217
  %1385 = vmatpush1.msra.mxu0 %v1216
  %1386 = vmatprep.subr.mxu0 %v1242
  %1387 = vmatpush1.msra.mxu0 %v1241
  %1388 = vmatprep.subr.mxu0 %v1266
  %1389 = vmatpush1.msra.mxu0 %v1265
  %1390 = vmatprep.subr.mxu0 %v1290
  %1391 = vmatpush1.msra.mxu0 %v1289
  %1392 = vmatprep.subr.mxu0 0.0
  %1393 = vmatpush1.msra.mxu0 0.0
  %1394 = vmatprep.subr.mxu0 0.0
  %1395 = vmatpush1.msra.mxu0 0.0
  %1396 = vmatprep.subr.mxu0 0.0
  %1397 = vmatpush1.msra.mxu0 0.0
  %1398 = vmatprep.subr.mxu0 0.0
  %1399 = vmatpush1.msra.mxu0 0.0
  %1400 = vmatprep.subr.mxu0 0.0
  %1401 = vmatpush1.msra.mxu0 0.0
  %1402 = vmatprep.subr.mxu0 0.0
  %1403 = vmatpush1.msra.mxu0 0.0
  %1404 = vmatprep.subr.mxu0 0.0
  %1405 = vmatpush1.msra.mxu0 0.0
  %1406 = vmatprep.subr.mxu0 0.0
  %1407 = vmatpush1.msra.mxu0 0.0
  %1408 = vmatprep.subr.mxu0 0.0
  %1409 = vmatpush1.msra.mxu0 0.0
  %1410 = vmatprep.subr.mxu0 0.0
  %1411 = vmatpush1.msra.mxu0 0.0
  %1412 = vmatprep.subr.mxu0 0.0
  %1413 = vmatpush1.msra.mxu0 0.0
  %1414 = vmatprep.subr.mxu0 0.0
  %1415 = vmatpush1.msra.mxu0 0.0
  %1416 = vmatprep.subr.mxu0 0.0
  %1417 = vmatpush1.msra.mxu0 0.0
  %1418 = vmatprep.subr.mxu0 0.0
  %1419 = vmatpush1.msra.mxu0 0.0
  %1420 = vmatprep.subr.mxu0 0.0
  %1421 = vmatpush1.msra.mxu0 0.0
  %1422 = vmatprep.subr.mxu0 0.0
  %1423 = vmatpush1.msra.mxu0 0.0
  %1424 = vmatprep.subr.mxu0 0.0
  %1425 = vmatpush1.msra.mxu0 0.0
  %1426 = vmatprep.subr.mxu0 0.0
  %1427 = vmatpush1.msra.mxu0 0.0
  %1428 = vmatprep.subr.mxu0 0.0
  %1429 = vmatpush1.msra.mxu0 0.0
  %1430 = vmatprep.subr.mxu0 0.0
  %1431 = vmatpush1.msra.mxu0 0.0
  %1432 = vmatprep.subr.mxu0 0.0
  %1433 = vmatpush1.msra.mxu0 0.0
  %1434 = vmatprep.subr.mxu0 0.0
  %1435 = vmatpush1.msra.mxu0 0.0
  %1436 = vmatprep.subr.mxu0 0.0
  %1437 = vmatpush1.msra.mxu0 0.0
  %1438 = vmatprep.mubr.f32.mxu0 0.0
  %1439 = vmatmul.mubr.f32.gmra.mrb[0].mxu0 %v1301
  %v1440 = vpop.f32.mrb[0].mxu0
  %v1441 = vadd.f32 %v1298, %v1440
  %v1442 = vpop.f32.mrb[0].mxu0
  %v1443 = vadd.f32 %v1298, %v1442
  %1444 = vdwg.mxu0
  %v1445 = vmax.f32 %v1370, 0.0
  %v1446 = vmax.f32 %v1372, 0.0
  %v1447 = vmax.f32 %v1441, 0.0
  %v1448 = vmax.f32 %v1443, 0.0
  %1449 = vrot.lane.b32.xlu0 %v1445, 17
  %v1450 = vpop.permute.xlu0 %1449
  %1451 = vrot.lane.b32.xlu0 %v1446, 17
  %v1452 = vpop.permute.xlu0 %1451
  %1453 = vrot.lane.b32.xlu0 %v1447, 17
  %v1454 = vpop.permute.xlu0 %1453
  %1455 = vrot.lane.b32.xlu0 %v1448, 17
  %v1456 = vpop.permute.xlu0 %1455
  %v1457 = vsel %vm1084, %v1454, %v1456
  %v1458 = vsel %vm1084, %v1452, %v1454
  %v1459 = vsel %vm1084, %v1450, %v1452
  %v1460 = vsel %vm1084, %v1456, %v1450
  %v1461 = vsel %vm1113, %v1460, 0.0
  %v1462 = vsel %vm1114, %v1459, 0.0
  %v1463 = vsel %vm1115, %v1458, 0.0
  %v1464 = vsel %vm1116, %v1457, 0.0
  %1465 = vrot.lane.b32.xlu0 %v1445, 16
  %v1466 = vpop.permute.xlu0 %1465
  %1467 = vrot.lane.b32.xlu0 %v1446, 16
  %v1468 = vpop.permute.xlu0 %1467
  %1469 = vrot.lane.b32.xlu0 %v1447, 16
  %v1470 = vpop.permute.xlu0 %1469
  %1471 = vrot.lane.b32.xlu0 %v1448, 16
  %v1472 = vpop.permute.xlu0 %1471
  %v1473 = vsel %vm1067, %v1470, %v1472
  %v1474 = vsel %vm1067, %v1468, %v1470
  %v1475 = vsel %vm1067, %v1466, %v1468
  %v1476 = vsel %vm1067, %v1472, %v1466
  %v1477 = vsel %vm1137, %v1476, 0.0
  %v1478 = vsel %vm1138, %v1475, 0.0
  %v1479 = vsel %vm1139, %v1474, 0.0
  %v1480 = vsel %vm1140, %v1473, 0.0
  %1481 = vrot.lane.b32.xlu0 %v1445, 15
  %v1482 = vpop.permute.xlu0 %1481
  %1483 = vrot.lane.b32.xlu0 %v1446, 15
  %v1484 = vpop.permute.xlu0 %1483
  %1485 = vrot.lane.b32.xlu0 %v1447, 15
  %v1486 = vpop.permute.xlu0 %1485
  %1487 = vrot.lane.b32.xlu0 %v1448, 15
  %v1488 = vpop.permute.xlu0 %1487
  %v1489 = vsel %vm1153, %v1486, %v1488
  %v1490 = vsel %vm1153, %v1484, %v1486
  %v1491 = vsel %vm1153, %v1482, %v1484
  %v1492 = vsel %vm1153, %v1488, %v1482
  %v1493 = vsel %vm1162, %v1492, 0.0
  %v1494 = vsel %vm1163, %v1491, 0.0
  %v1495 = vsel %vm1164, %v1490, 0.0
  %v1496 = vsel %vm1165, %v1489, 0.0
  %1497 = vrot.lane.b32.xlu0 %v1445, 1
  %v1498 = vpop.permute.xlu0 %1497
  %1499 = vrot.lane.b32.xlu0 %v1446, 1
  %v1500 = vpop.permute.xlu0 %1499
  %1501 = vrot.lane.b32.xlu0 %v1447, 1
  %v1502 = vpop.permute.xlu0 %1501
  %1503 = vrot.lane.b32.xlu0 %v1448, 1
  %v1504 = vpop.permute.xlu0 %1503
  %v1505 = vsel %vm1050, %v1502, %v1504
  %v1506 = vsel %vm1050, %v1500, %v1502
  %v1507 = vsel %vm1050, %v1498, %v1500
  %v1508 = vsel %vm1050, %v1504, %v1498
  %v1509 = vsel %vm1186, %v1508, 0.0
  %v1510 = vsel %vm1187, %v1507, 0.0
  %v1511 = vsel %vm1188, %v1506, 0.0
  %v1512 = vsel %vm1189, %v1505, 0.0
  %1513 = vrot.lane.b32.xlu0 %v1445, 127
  %v1514 = vpop.permute.xlu0 %1513
  %1515 = vrot.lane.b32.xlu0 %v1446, 127
  %v1516 = vpop.permute.xlu0 %1515
  %1517 = vrot.lane.b32.xlu0 %v1447, 127
  %v1518 = vpop.permute.xlu0 %1517
  %1519 = vrot.lane.b32.xlu0 %v1448, 127
  %v1520 = vpop.permute.xlu0 %1519
  %v1521 = vsel %vm332, %v1518, %v1520
  %v1522 = vsel %vm332, %v1516, %v1518
  %v1523 = vsel %vm332, %v1514, %v1516
  %v1524 = vsel %vm332, %v1520, %v1514
  %v1525 = vsel %vm1210, %v1523, 0.0
  %v1526 = vsel %vm1211, %v1522, 0.0
  %v1527 = vsel %vm1212, %v1521, 0.0
  %v1528 = vsel %vm1213, %v1524, 0.0
  %1529 = vrot.lane.b32.xlu0 %v1445, 113
  %v1530 = vpop.permute.xlu0 %1529
  %1531 = vrot.lane.b32.xlu0 %v1446, 113
  %v1532 = vpop.permute.xlu0 %1531
  %1533 = vrot.lane.b32.xlu0 %v1447, 113
  %v1534 = vpop.permute.xlu0 %1533
  %1535 = vrot.lane.b32.xlu0 %v1448, 113
  %v1536 = vpop.permute.xlu0 %1535
  %v1537 = vsel %vm1226, %v1534, %v1536
  %v1538 = vsel %vm1226, %v1532, %v1534
  %v1539 = vsel %vm1226, %v1530, %v1532
  %v1540 = vsel %vm1226, %v1536, %v1530
  %v1541 = vsel %vm1235, %v1539, 0.0
  %v1542 = vsel %vm1236, %v1538, 0.0
  %v1543 = vsel %vm1237, %v1537, 0.0
  %v1544 = vsel %vm1238, %v1540, 0.0
  %1545 = vrot.lane.b32.xlu0 %v1445, 112
  %v1546 = vpop.permute.xlu0 %1545
  %1547 = vrot.lane.b32.xlu0 %v1446, 112
  %v1548 = vpop.permute.xlu0 %1547
  %1549 = vrot.lane.b32.xlu0 %v1447, 112
  %v1550 = vpop.permute.xlu0 %1549
  %1551 = vrot.lane.b32.xlu0 %v1448, 112
  %v1552 = vpop.permute.xlu0 %1551
  %v1553 = vsel %vm349, %v1550, %v1552
  %v1554 = vsel %vm349, %v1548, %v1550
  %v1555 = vsel %vm349, %v1546, %v1548
  %v1556 = vsel %vm349, %v1552, %v1546
  %v1557 = vsel %vm1259, %v1555, 0.0
  %v1558 = vsel %vm1260, %v1554, 0.0
  %v1559 = vsel %vm1261, %v1553, 0.0
  %v1560 = vsel %vm1262, %v1556, 0.0
  %1561 = vrot.lane.b32.xlu0 %v1445, 111
  %v1562 = vpop.permute.xlu0 %1561
  %1563 = vrot.lane.b32.xlu0 %v1446, 111
  %v1564 = vpop.permute.xlu0 %1563
  %1565 = vrot.lane.b32.xlu0 %v1447, 111
  %v1566 = vpop.permute.xlu0 %1565
  %1567 = vrot.lane.b32.xlu0 %v1448, 111
  %v1568 = vpop.permute.xlu0 %1567
  %v1569 = vsel %vm366, %v1566, %v1568
  %v1570 = vsel %vm366, %v1564, %v1566
  %v1571 = vsel %vm366, %v1562, %v1564
  %v1572 = vsel %vm366, %v1568, %v1562
  %v1573 = vsel %vm1283, %v1571, 0.0
  %v1574 = vsel %vm1284, %v1570, 0.0
  %v1575 = vsel %vm1285, %v1569, 0.0
  %v1576 = vsel %vm1286, %v1572, 0.0
  %s1577 = scalar_lea.vmem %s0, 24
  %v1578 = vld [vmem:[%s1577] sm:$0xff]
  %s1579 = scalar_lea.vmem %s1, 24
  %v1580 = vld [vmem:[%s1579] sm:$0xff]
  %1582 = vset.pattern.permute.xlu0 0
  %1583 = vperm.xlu0 %1582, %v1580
  %v1584 = vpop.permute.xlu0 %1583
  %v1587 = vsel %vm598, %v1578, 0
  %1589 = vmatprep.subr.mxu0 %v1462
  %1590 = vmatpush1.msra.mxu0 %v1461
  %1591 = vmatprep.subr.mxu0 %v1478
  %1592 = vmatpush1.msra.mxu0 %v1477
  %1593 = vmatprep.subr.mxu0 %v1494
  %1594 = vmatpush1.msra.mxu0 %v1493
  %1595 = vmatprep.subr.mxu0 %v1510
  %1596 = vmatpush1.msra.mxu0 %v1509
  %1597 = vmatprep.subr.mxu0 %v1446
  %1598 = vmatpush1.msra.mxu0 %v1445
  %1599 = vmatprep.subr.mxu0 %v1526
  %1600 = vmatpush1.msra.mxu0 %v1525
  %1601 = vmatprep.subr.mxu0 %v1542
  %1602 = vmatpush1.msra.mxu0 %v1541
  %1603 = vmatprep.subr.mxu0 %v1558
  %1604 = vmatpush1.msra.mxu0 %v1557
  %1605 = vmatprep.subr.mxu0 %v1574
  %1606 = vmatpush1.msra.mxu0 %v1573
  %1607 = vmatprep.subr.mxu0 0.0
  %1608 = vmatpush1.msra.mxu0 0.0
  %1609 = vmatprep.subr.mxu0 0.0
  %1610 = vmatpush1.msra.mxu0 0.0
  %1611 = vmatprep.subr.mxu0 0.0
  %1612 = vmatpush1.msra.mxu0 0.0
  %1613 = vmatprep.subr.mxu0 0.0
  %1614 = vmatpush1.msra.mxu0 0.0
  %1615 = vmatprep.subr.mxu0 0.0
  %1616 = vmatpush1.msra.mxu0 0.0
  %1617 = vmatprep.subr.mxu0 0.0
  %1618 = vmatpush1.msra.mxu0 0.0
  %1619 = vmatprep.subr.mxu0 0.0
  %1620 = vmatpush1.msra.mxu0 0.0
  %1621 = vmatprep.subr.mxu0 0.0
  %1622 = vmatpush1.msra.mxu0 0.0
  %1623 = vmatprep.subr.mxu0 0.0
  %1624 = vmatpush1.msra.mxu0 0.0
  %1625 = vmatprep.subr.mxu0 0.0
  %1626 = vmatpush1.msra.mxu0 0.0
  %1627 = vmatprep.subr.mxu0 0.0
  %1628 = vmatpush1.msra.mxu0 0.0
  %1629 = vmatprep.subr.mxu0 0.0
  %1630 = vmatpush1.msra.mxu0 0.0
  %1631 = vmatprep.subr.mxu0 0.0
  %1632 = vmatpush1.msra.mxu0 0.0
  %1633 = vmatprep.subr.mxu0 0.0
  %1634 = vmatpush1.msra.mxu0 0.0
  %1635 = vmatprep.subr.mxu0 0.0
  %1636 = vmatpush1.msra.mxu0 0.0
  %1637 = vmatprep.subr.mxu0 0.0
  %1638 = vmatpush1.msra.mxu0 0.0
  %1639 = vmatprep.subr.mxu0 0.0
  %1640 = vmatpush1.msra.mxu0 0.0
  %1641 = vmatprep.subr.mxu0 0.0
  %1642 = vmatpush1.msra.mxu0 0.0
  %1643 = vmatprep.subr.mxu0 0.0
  %1644 = vmatpush1.msra.mxu0 0.0
  %1645 = vmatprep.subr.mxu0 0.0
  %1646 = vmatpush1.msra.mxu0 0.0
  %1647 = vmatprep.subr.mxu0 0.0
  %1648 = vmatpush1.msra.mxu0 0.0
  %1649 = vmatprep.subr.mxu0 0.0
  %1650 = vmatpush1.msra.mxu0 0.0
  %1651 = vmatprep.subr.mxu0 0.0
  %1652 = vmatpush1.msra.mxu0 0.0
  %1653 = vmatprep.mubr.f32.mxu0 0.0
  %1654 = vmatmul.mubr.f32.gmra.mrb[0].mxu0 %v1587
  %v1655 = vpop.f32.mrb[0].mxu0
  %v1656 = vadd.f32 %v1584, %v1655
  %v1657 = vpop.f32.mrb[0].mxu0
  %v1658 = vadd.f32 %v1584, %v1657
  %1659 = vdwg.mxu0
  %1660 = vmatprep.subr.mxu0 %v1464
  %1661 = vmatpush1.msra.mxu0 %v1463
  %1662 = vmatprep.subr.mxu0 %v1480
  %1663 = vmatpush1.msra.mxu0 %v1479
  %1664 = vmatprep.subr.mxu0 %v1496
  %1665 = vmatpush1.msra.mxu0 %v1495
  %1666 = vmatprep.subr.mxu0 %v1512
  %1667 = vmatpush1.msra.mxu0 %v1511
  %1668 = vmatprep.subr.mxu0 %v1448
  %1669 = vmatpush1.msra.mxu0 %v1447
  %1670 = vmatprep.subr.mxu0 %v1528
  %1671 = vmatpush1.msra.mxu0 %v1527
  %1672 = vmatprep.subr.mxu0 %v1544
  %1673 = vmatpush1.msra.mxu0 %v1543
  %1674 = vmatprep.subr.mxu0 %v1560
  %1675 = vmatpush1.msra.mxu0 %v1559
  %1676 = vmatprep.subr.mxu0 %v1576
  %1677 = vmatpush1.msra.mxu0 %v1575
  %1678 = vmatprep.subr.mxu0 0.0
  %1679 = vmatpush1.msra.mxu0 0.0
  %1680 = vmatprep.subr.mxu0 0.0
  %1681 = vmatpush1.msra.mxu0 0.0
  %1682 = vmatprep.subr.mxu0 0.0
  %1683 = vmatpush1.msra.mxu0 0.0
  %1684 = vmatprep.subr.mxu0 0.0
  %1685 = vmatpush1.msra.mxu0 0.0
  %1686 = vmatprep.subr.mxu0 0.0
  %1687 = vmatpush1.msra.mxu0 0.0
  %1688 = vmatprep.subr.mxu0 0.0
  %1689 = vmatpush1.msra.mxu0 0.0
  %1690 = vmatprep.subr.mxu0 0.0
  %1691 = vmatpush1.msra.mxu0 0.0
  %1692 = vmatprep.subr.mxu0 0.0
  %1693 = vmatpush1.msra.mxu0 0.0
  %1694 = vmatprep.subr.mxu0 0.0
  %1695 = vmatpush1.msra.mxu0 0.0
  %1696 = vmatprep.subr.mxu0 0.0
  %1697 = vmatpush1.msra.mxu0 0.0
  %1698 = vmatprep.subr.mxu0 0.0
  %1699 = vmatpush1.msra.mxu0 0.0
  %1700 = vmatprep.subr.mxu0 0.0
  %1701 = vmatpush1.msra.mxu0 0.0
  %1702 = vmatprep.subr.mxu0 0.0
  %1703 = vmatpush1.msra.mxu0 0.0
  %1704 = vmatprep.subr.mxu0 0.0
  %1705 = vmatpush1.msra.mxu0 0.0
  %1706 = vmatprep.subr.mxu0 0.0
  %1707 = vmatpush1.msra.mxu0 0.0
  %1708 = vmatprep.subr.mxu0 0.0
  %1709 = vmatpush1.msra.mxu0 0.0
  %1710 = vmatprep.subr.mxu0 0.0
  %1711 = vmatpush1.msra.mxu0 0.0
  %1712 = vmatprep.subr.mxu0 0.0
  %1713 = vmatpush1.msra.mxu0 0.0
  %1714 = vmatprep.subr.mxu0 0.0
  %1715 = vmatpush1.msra.mxu0 0.0
  %1716 = vmatprep.subr.mxu0 0.0
  %1717 = vmatpush1.msra.mxu0 0.0
  %1718 = vmatprep.subr.mxu0 0.0
  %1719 = vmatpush1.msra.mxu0 0.0
  %1720 = vmatprep.subr.mxu0 0.0
  %1721 = vmatpush1.msra.mxu0 0.0
  %1722 = vmatprep.subr.mxu0 0.0
  %1723 = vmatpush1.msra.mxu0 0.0
  %1724 = vmatprep.mubr.f32.mxu0 0.0
  %1725 = vmatmul.mubr.f32.gmra.mrb[0].mxu0 %v1587
  %v1726 = vpop.f32.mrb[0].mxu0
  %v1727 = vadd.f32 %v1584, %v1726
  %v1728 = vpop.f32.mrb[0].mxu0
  %v1729 = vadd.f32 %v1584, %v1728
  %1730 = vdwg.mxu0
  %v1731 = vadd.f32 %v1656, %v1093
  %v1732 = vadd.f32 %v1658, %v1094
  %v1733 = vadd.f32 %v1727, %v1095
  %v1734 = vadd.f32 %v1729, %v1096
  %v1735 = vmax.f32 %v1731, 0.0
  %v1736 = vmax.f32 %v1732, 0.0
  %v1737 = vmax.f32 %v1733, 0.0
  %v1738 = vmax.f32 %v1734, 0.0
  %1739 = vrot.lane.b32.xlu0 %v320, 17
  %v1740 = vpop.permute.xlu0 %1739
  %1741 = vrot.lane.b32.xlu0 %v321, 17
  %v1742 = vpop.permute.xlu0 %1741
  %1743 = vrot.lane.b32.xlu0 %v322, 17
  %v1744 = vpop.permute.xlu0 %1743
  %1745 = vrot.lane.b32.xlu0 %v323, 17
  %v1746 = vpop.permute.xlu0 %1745
  %v1747 = vsel %vm1084, %v1744, %v1746
  %v1748 = vsel %vm1084, %v1742, %v1744
  %v1749 = vsel %vm1084, %v1740, %v1742
  %v1750 = vsel %vm1084, %v1746, %v1740
  %v1751 = vsel %vm1113, %v1750, 0.0
  %v1752 = vsel %vm1114, %v1749, 0.0
  %v1753 = vsel %vm1115, %v1748, 0.0
  %v1754 = vsel %vm1116, %v1747, 0.0
  %1755 = vrot.lane.b32.xlu0 %v320, 16
  %v1756 = vpop.permute.xlu0 %1755
  %1757 = vrot.lane.b32.xlu0 %v321, 16
  %v1758 = vpop.permute.xlu0 %1757
  %1759 = vrot.lane.b32.xlu0 %v322, 16
  %v1760 = vpop.permute.xlu0 %1759
  %1761 = vrot.lane.b32.xlu0 %v323, 16
  %v1762 = vpop.permute.xlu0 %1761
  %v1763 = vsel %vm1067, %v1760, %v1762
  %v1764 = vsel %vm1067, %v1758, %v1760
  %v1765 = vsel %vm1067, %v1756, %v1758
  %v1766 = vsel %vm1067, %v1762, %v1756
  %v1767 = vsel %vm1137, %v1766, 0.0
  %v1768 = vsel %vm1138, %v1765, 0.0
  %v1769 = vsel %vm1139, %v1764, 0.0
  %v1770 = vsel %vm1140, %v1763, 0.0
  %1771 = vrot.lane.b32.xlu0 %v320, 15
  %v1772 = vpop.permute.xlu0 %1771
  %1773 = vrot.lane.b32.xlu0 %v321, 15
  %v1774 = vpop.permute.xlu0 %1773
  %1775 = vrot.lane.b32.xlu0 %v322, 15
  %v1776 = vpop.permute.xlu0 %1775
  %1777 = vrot.lane.b32.xlu0 %v323, 15
  %v1778 = vpop.permute.xlu0 %1777
  %v1779 = vsel %vm1153, %v1776, %v1778
  %v1780 = vsel %vm1153, %v1774, %v1776
  %v1781 = vsel %vm1153, %v1772, %v1774
  %v1782 = vsel %vm1153, %v1778, %v1772
  %v1783 = vsel %vm1162, %v1782, 0.0
  %v1784 = vsel %vm1163, %v1781, 0.0
  %v1785 = vsel %vm1164, %v1780, 0.0
  %v1786 = vsel %vm1165, %v1779, 0.0
  %1787 = vrot.lane.b32.xlu0 %v320, 1
  %v1788 = vpop.permute.xlu0 %1787
  %1789 = vrot.lane.b32.xlu0 %v321, 1
  %v1790 = vpop.permute.xlu0 %1789
  %1791 = vrot.lane.b32.xlu0 %v322, 1
  %v1792 = vpop.permute.xlu0 %1791
  %1793 = vrot.lane.b32.xlu0 %v323, 1
  %v1794 = vpop.permute.xlu0 %1793
  %v1795 = vsel %vm1050, %v1792, %v1794
  %v1796 = vsel %vm1050, %v1790, %v1792
  %v1797 = vsel %vm1050, %v1788, %v1790
  %v1798 = vsel %vm1050, %v1794, %v1788
  %v1799 = vsel %vm1186, %v1798, 0.0
  %v1800 = vsel %vm1187, %v1797, 0.0
  %v1801 = vsel %vm1188, %v1796, 0.0
  %v1802 = vsel %vm1189, %v1795, 0.0
  %1803 = vrot.lane.b32.xlu0 %v320, 127
  %v1804 = vpop.permute.xlu0 %1803
  %1805 = vrot.lane.b32.xlu0 %v321, 127
  %v1806 = vpop.permute.xlu0 %1805
  %1807 = vrot.lane.b32.xlu0 %v322, 127
  %v1808 = vpop.permute.xlu0 %1807
  %1809 = vrot.lane.b32.xlu0 %v323, 127
  %v1810 = vpop.permute.xlu0 %1809
  %v1811 = vsel %vm332, %v1808, %v1810
  %v1812 = vsel %vm332, %v1806, %v1808
  %v1813 = vsel %vm332, %v1804, %v1806
  %v1814 = vsel %vm332, %v1810, %v1804
  %v1815 = vsel %vm1210, %v1813, 0.0
  %v1816 = vsel %vm1211, %v1812, 0.0
  %v1817 = vsel %vm1212, %v1811, 0.0
  %v1818 = vsel %vm1213, %v1814, 0.0
  %1819 = vrot.lane.b32.xlu0 %v320, 113
  %v1820 = vpop.permute.xlu0 %1819
  %1821 = vrot.lane.b32.xlu0 %v321, 113
  %v1822 = vpop.permute.xlu0 %1821
  %1823 = vrot.lane.b32.xlu0 %v322, 113
  %v1824 = vpop.permute.xlu0 %1823
  %1825 = vrot.lane.b32.xlu0 %v323, 113
  %v1826 = vpop.permute.xlu0 %1825
  %v1827 = vsel %vm1226, %v1824, %v1826
  %v1828 = vsel %vm1226, %v1822, %v1824
  %v1829 = vsel %vm1226, %v1820, %v1822
  %v1830 = vsel %vm1226, %v1826, %v1820
  %v1831 = vsel %vm1235, %v1829, 0.0
  %v1832 = vsel %vm1236, %v1828, 0.0
  %v1833 = vsel %vm1237, %v1827, 0.0
  %v1834 = vsel %vm1238, %v1830, 0.0
  %1835 = vrot.lane.b32.xlu0 %v320, 112
  %v1836 = vpop.permute.xlu0 %1835
  %1837 = vrot.lane.b32.xlu0 %v321, 112
  %v1838 = vpop.permute.xlu0 %1837
  %1839 = vrot.lane.b32.xlu0 %v322, 112
  %v1840 = vpop.permute.xlu0 %1839
  %1841 = vrot.lane.b32.xlu0 %v323, 112
  %v1842 = vpop.permute.xlu0 %1841
  %v1843 = vsel %vm349, %v1840, %v1842
  %v1844 = vsel %vm349, %v1838, %v1840
  %v1845 = vsel %vm349, %v1836, %v1838
  %v1846 = vsel %vm349, %v1842, %v1836
  %v1847 = vsel %vm1259, %v1845, 0.0
  %v1848 = vsel %vm1260, %v1844, 0.0
  %v1849 = vsel %vm1261, %v1843, 0.0
  %v1850 = vsel %vm1262, %v1846, 0.0
  %1851 = vrot.lane.b32.xlu0 %v320, 111
  %v1852 = vpop.permute.xlu0 %1851
  %1853 = vrot.lane.b32.xlu0 %v321, 111
  %v1854 = vpop.permute.xlu0 %1853
  %1855 = vrot.lane.b32.xlu0 %v322, 111
  %v1856 = vpop.permute.xlu0 %1855
  %1857 = vrot.lane.b32.xlu0 %v323, 111
  %v1858 = vpop.permute.xlu0 %1857
  %v1859 = vsel %vm366, %v1856, %v1858
  %v1860 = vsel %vm366, %v1854, %v1856
  %v1861 = vsel %vm366, %v1852, %v1854
  %v1862 = vsel %vm366, %v1858, %v1852
  %v1863 = vsel %vm1283, %v1861, 0.0
  %v1864 = vsel %vm1284, %v1860, 0.0
  %v1865 = vsel %vm1285, %v1859, 0.0
  %v1866 = vsel %vm1286, %v1862, 0.0
  %s1867 = scalar_lea.vmem %s0, 32
  %v1868 = vld [vmem:[%s1867] sm:$0xff]
  %s1869 = scalar_lea.vmem %s1, 32
  %v1870 = vld [vmem:[%s1869] sm:$0xff]
  %1872 = vset.pattern.permute.xlu0 0
  %1873 = vperm.xlu0 %1872, %v1870
  %v1874 = vpop.permute.xlu0 %1873
  %v1877 = vsel %vm598, %v1868, 0
  %1879 = vmatprep.subr.mxu0 %v1752
  %1880 = vmatpush1.msra.mxu0 %v1751
  %1881 = vmatprep.subr.mxu0 %v1768
  %1882 = vmatpush1.msra.mxu0 %v1767
  %1883 = vmatprep.subr.mxu0 %v1784
  %1884 = vmatpush1.msra.mxu0 %v1783
  %1885 = vmatprep.subr.mxu0 %v1800
  %1886 = vmatpush1.msra.mxu0 %v1799
  %1887 = vmatprep.subr.mxu0 %v321
  %1888 = vmatpush1.msra.mxu0 %v320
  %1889 = vmatprep.subr.mxu0 %v1816
  %1890 = vmatpush1.msra.mxu0 %v1815
  %1891 = vmatprep.subr.mxu0 %v1832
  %1892 = vmatpush1.msra.mxu0 %v1831
  %1893 = vmatprep.subr.mxu0 %v1848
  %1894 = vmatpush1.msra.mxu0 %v1847
  %1895 = vmatprep.subr.mxu0 %v1864
  %1896 = vmatpush1.msra.mxu0 %v1863
  %1897 = vmatprep.subr.mxu0 0.0
  %1898 = vmatpush1.msra.mxu0 0.0
  %1899 = vmatprep.subr.mxu0 0.0
  %1900 = vmatpush1.msra.mxu0 0.0
  %1901 = vmatprep.subr.mxu0 0.0
  %1902 = vmatpush1.msra.mxu0 0.0
  %1903 = vmatprep.subr.mxu0 0.0
  %1904 = vmatpush1.msra.mxu0 0.0
  %1905 = vmatprep.subr.mxu0 0.0
  %1906 = vmatpush1.msra.mxu0 0.0
  %1907 = vmatprep.subr.mxu0 0.0
  %1908 = vmatpush1.msra.mxu0 0.0
  %1909 = vmatprep.subr.mxu0 0.0
  %1910 = vmatpush1.msra.mxu0 0.0
  %1911 = vmatprep.subr.mxu0 0.0
  %1912 = vmatpush1.msra.mxu0 0.0
  %1913 = vmatprep.subr.mxu0 0.0
  %1914 = vmatpush1.msra.mxu0 0.0
  %1915 = vmatprep.subr.mxu0 0.0
  %1916 = vmatpush1.msra.mxu0 0.0
  %1917 = vmatprep.subr.mxu0 0.0
  %1918 = vmatpush1.msra.mxu0 0.0
  %1919 = vmatprep.subr.mxu0 0.0
  %1920 = vmatpush1.msra.mxu0 0.0
  %1921 = vmatprep.subr.mxu0 0.0
  %1922 = vmatpush1.msra.mxu0 0.0
  %1923 = vmatprep.subr.mxu0 0.0
  %1924 = vmatpush1.msra.mxu0 0.0
  %1925 = vmatprep.subr.mxu0 0.0
  %1926 = vmatpush1.msra.mxu0 0.0
  %1927 = vmatprep.subr.mxu0 0.0
  %1928 = vmatpush1.msra.mxu0 0.0
  %1929 = vmatprep.subr.mxu0 0.0
  %1930 = vmatpush1.msra.mxu0 0.0
  %1931 = vmatprep.subr.mxu0 0.0
  %1932 = vmatpush1.msra.mxu0 0.0
  %1933 = vmatprep.subr.mxu0 0.0
  %1934 = vmatpush1.msra.mxu0 0.0
  %1935 = vmatprep.subr.mxu0 0.0
  %1936 = vmatpush1.msra.mxu0 0.0
  %1937 = vmatprep.subr.mxu0 0.0
  %1938 = vmatpush1.msra.mxu0 0.0
  %1939 = vmatprep.subr.mxu0 0.0
  %1940 = vmatpush1.msra.mxu0 0.0
  %1941 = vmatprep.subr.mxu0 0.0
  %1942 = vmatpush1.msra.mxu0 0.0
  %1943 = vmatprep.mubr.f32.mxu0 0.0
  %1944 = vmatmul.mubr.f32.gmra.mrb[0].mxu0 %v1877
  %v1945 = vpop.f32.mrb[0].mxu0
  %v1946 = vadd.f32 %v1874, %v1945
  %v1947 = vpop.f32.mrb[0].mxu0
  %v1948 = vadd.f32 %v1874, %v1947
  %1949 = vdwg.mxu0
  %1950 = vmatprep.subr.mxu0 %v1754
  %1951 = vmatpush1.msra.mxu0 %v1753
  %1952 = vmatprep.subr.mxu0 %v1770
  %1953 = vmatpush1.msra.mxu0 %v1769
  %1954 = vmatprep.subr.mxu0 %v1786
  %1955 = vmatpush1.msra.mxu0 %v1785
  %1956 = vmatprep.subr.mxu0 %v1802
  %1957 = vmatpush1.msra.mxu0 %v1801
  %1958 = vmatprep.subr.mxu0 %v323
  %1959 = vmatpush1.msra.mxu0 %v322
  %1960 = vmatprep.subr.mxu0 %v1818
  %1961 = vmatpush1.msra.mxu0 %v1817
  %1962 = vmatprep.subr.mxu0 %v1834
  %1963 = vmatpush1.msra.mxu0 %v1833
  %1964 = vmatprep.subr.mxu0 %v1850
  %1965 = vmatpush1.msra.mxu0 %v1849
  %1966 = vmatprep.subr.mxu0 %v1866
  %1967 = vmatpush1.msra.mxu0 %v1865
  %1968 = vmatprep.subr.mxu0 0.0
  %1969 = vmatpush1.msra.mxu0 0.0
  %1970 = vmatprep.subr.mxu0 0.0
  %1971 = vmatpush1.msra.mxu0 0.0
  %1972 = vmatprep.subr.mxu0 0.0
  %1973 = vmatpush1.msra.mxu0 0.0
  %1974 = vmatprep.subr.mxu0 0.0
  %1975 = vmatpush1.msra.mxu0 0.0
  %1976 = vmatprep.subr.mxu0 0.0
  %1977 = vmatpush1.msra.mxu0 0.0
  %1978 = vmatprep.subr.mxu0 0.0
  %1979 = vmatpush1.msra.mxu0 0.0
  %1980 = vmatprep.subr.mxu0 0.0
  %1981 = vmatpush1.msra.mxu0 0.0
  %1982 = vmatprep.subr.mxu0 0.0
  %1983 = vmatpush1.msra.mxu0 0.0
  %1984 = vmatprep.subr.mxu0 0.0
  %1985 = vmatpush1.msra.mxu0 0.0
  %1986 = vmatprep.subr.mxu0 0.0
  %1987 = vmatpush1.msra.mxu0 0.0
  %1988 = vmatprep.subr.mxu0 0.0
  %1989 = vmatpush1.msra.mxu0 0.0
  %1990 = vmatprep.subr.mxu0 0.0
  %1991 = vmatpush1.msra.mxu0 0.0
  %1992 = vmatprep.subr.mxu0 0.0
  %1993 = vmatpush1.msra.mxu0 0.0
  %1994 = vmatprep.subr.mxu0 0.0
  %1995 = vmatpush1.msra.mxu0 0.0
  %1996 = vmatprep.subr.mxu0 0.0
  %1997 = vmatpush1.msra.mxu0 0.0
  %1998 = vmatprep.subr.mxu0 0.0
  %1999 = vmatpush1.msra.mxu0 0.0
  %2000 = vmatprep.subr.mxu0 0.0
  %2001 = vmatpush1.msra.mxu0 0.0
  %2002 = vmatprep.subr.mxu0 0.0
  %2003 = vmatpush1.msra.mxu0 0.0
  %2004 = vmatprep.subr.mxu0 0.0
  %2005 = vmatpush1.msra.mxu0 0.0
  %2006 = vmatprep.subr.mxu0 0.0
  %2007 = vmatpush1.msra.mxu0 0.0
  %2008 = vmatprep.subr.mxu0 0.0
  %2009 = vmatpush1.msra.mxu0 0.0
  %2010 = vmatprep.subr.mxu0 0.0
  %2011 = vmatpush1.msra.mxu0 0.0
  %2012 = vmatprep.subr.mxu0 0.0
  %2013 = vmatpush1.msra.mxu0 0.0
  %2014 = vmatprep.mubr.f32.mxu0 0.0
  %2015 = vmatmul.mubr.f32.gmra.mrb[0].mxu0 %v1877
  %v2016 = vpop.f32.mrb[0].mxu0
  %v2017 = vadd.f32 %v1874, %v2016
  %v2018 = vpop.f32.mrb[0].mxu0
  %v2019 = vadd.f32 %v1874, %v2018
  %2020 = vdwg.mxu0
  %v2021 = vmax.f32 %v1946, 0.0
  %v2022 = vmax.f32 %v1948, 0.0
  %v2023 = vmax.f32 %v2017, 0.0
  %v2024 = vmax.f32 %v2019, 0.0
  %2025 = vrot.lane.b32.xlu0 %v2021, 17
  %v2026 = vpop.permute.xlu0 %2025
  %2027 = vrot.lane.b32.xlu0 %v2022, 17
  %v2028 = vpop.permute.xlu0 %2027
  %2029 = vrot.lane.b32.xlu0 %v2023, 17
  %v2030 = vpop.permute.xlu0 %2029
  %2031 = vrot.lane.b32.xlu0 %v2024, 17
  %v2032 = vpop.permute.xlu0 %2031
  %v2033 = vsel %vm1084, %v2030, %v2032
  %v2034 = vsel %vm1084, %v2028, %v2030
  %v2035 = vsel %vm1084, %v2026, %v2028
  %v2036 = vsel %vm1084, %v2032, %v2026
  %v2037 = vsel %vm1113, %v2036, 0.0
  %v2038 = vsel %vm1114, %v2035, 0.0
  %v2039 = vsel %vm1115, %v2034, 0.0
  %v2040 = vsel %vm1116, %v2033, 0.0
  %2041 = vrot.lane.b32.xlu0 %v2021, 16
  %v2042 = vpop.permute.xlu0 %2041
  %2043 = vrot.lane.b32.xlu0 %v2022, 16
  %v2044 = vpop.permute.xlu0 %2043
  %2045 = vrot.lane.b32.xlu0 %v2023, 16
  %v2046 = vpop.permute.xlu0 %2045
  %2047 = vrot.lane.b32.xlu0 %v2024, 16
  %v2048 = vpop.permute.xlu0 %2047
  %v2049 = vsel %vm1067, %v2046, %v2048
  %v2050 = vsel %vm1067, %v2044, %v2046
  %v2051 = vsel %vm1067, %v2042, %v2044
  %v2052 = vsel %vm1067, %v2048, %v2042
  %v2053 = vsel %vm1137, %v2052, 0.0
  %v2054 = vsel %vm1138, %v2051, 0.0
  %v2055 = vsel %vm1139, %v2050, 0.0
  %v2056 = vsel %vm1140, %v2049, 0.0
  %2057 = vrot.lane.b32.xlu0 %v2021, 15
  %v2058 = vpop.permute.xlu0 %2057
  %2059 = vrot.lane.b32.xlu0 %v2022, 15
  %v2060 = vpop.permute.xlu0 %2059
  %2061 = vrot.lane.b32.xlu0 %v2023, 15
  %v2062 = vpop.permute.xlu0 %2061
  %2063 = vrot.lane.b32.xlu0 %v2024, 15
  %v2064 = vpop.permute.xlu0 %2063
  %v2065 = vsel %vm1153, %v2062, %v2064
  %v2066 = vsel %vm1153, %v2060, %v2062
  %v2067 = vsel %vm1153, %v2058, %v2060
  %v2068 = vsel %vm1153, %v2064, %v2058
  %v2069 = vsel %vm1162, %v2068, 0.0
  %v2070 = vsel %vm1163, %v2067, 0.0
  %v2071 = vsel %vm1164, %v2066, 0.0
  %v2072 = vsel %vm1165, %v2065, 0.0
  %2073 = vrot.lane.b32.xlu0 %v2021, 1
  %v2074 = vpop.permute.xlu0 %2073
  %2075 = vrot.lane.b32.xlu0 %v2022, 1
  %v2076 = vpop.permute.xlu0 %2075
  %2077 = vrot.lane.b32.xlu0 %v2023, 1
  %v2078 = vpop.permute.xlu0 %2077
  %2079 = vrot.lane.b32.xlu0 %v2024, 1
  %v2080 = vpop.permute.xlu0 %2079
  %v2081 = vsel %vm1050, %v2078, %v2080
  %v2082 = vsel %vm1050, %v2076, %v2078
  %v2083 = vsel %vm1050, %v2074, %v2076
  %v2084 = vsel %vm1050, %v2080, %v2074
  %v2085 = vsel %vm1186, %v2084, 0.0
  %v2086 = vsel %vm1187, %v2083, 0.0
  %v2087 = vsel %vm1188, %v2082, 0.0
  %v2088 = vsel %vm1189, %v2081, 0.0
  %2089 = vrot.lane.b32.xlu0 %v2021, 127
  %v2090 = vpop.permute.xlu0 %2089
  %2091 = vrot.lane.b32.xlu0 %v2022, 127
  %v2092 = vpop.permute.xlu0 %2091
  %2093 = vrot.lane.b32.xlu0 %v2023, 127
  %v2094 = vpop.permute.xlu0 %2093
  %2095 = vrot.lane.b32.xlu0 %v2024, 127
  %v2096 = vpop.permute.xlu0 %2095
  %v2097 = vsel %vm332, %v2094, %v2096
  %v2098 = vsel %vm332, %v2092, %v2094
  %v2099 = vsel %vm332, %v2090, %v2092
  %v2100 = vsel %vm332, %v2096, %v2090
  %v2101 = vsel %vm1210, %v2099, 0.0
  %v2102 = vsel %vm1211, %v2098, 0.0
  %v2103 = vsel %vm1212, %v2097, 0.0
  %v2104 = vsel %vm1213, %v2100, 0.0
  %2105 = vrot.lane.b32.xlu0 %v2021, 113
  %v2106 = vpop.permute.xlu0 %2105
  %2107 = vrot.lane.b32.xlu0 %v2022, 113
  %v2108 = vpop.permute.xlu0 %2107
  %2109 = vrot.lane.b32.xlu0 %v2023, 113
  %v2110 = vpop.permute.xlu0 %2109
  %2111 = vrot.lane.b32.xlu0 %v2024, 113
  %v2112 = vpop.permute.xlu0 %2111
  %v2113 = vsel %vm1226, %v2110, %v2112
  %v2114 = vsel %vm1226, %v2108, %v2110
  %v2115 = vsel %vm1226, %v2106, %v2108
  %v2116 = vsel %vm1226, %v2112, %v2106
  %v2117 = vsel %vm1235, %v2115, 0.0
  %v2118 = vsel %vm1236, %v2114, 0.0
  %v2119 = vsel %vm1237, %v2113, 0.0
  %v2120 = vsel %vm1238, %v2116, 0.0
  %2121 = vrot.lane.b32.xlu0 %v2021, 112
  %v2122 = vpop.permute.xlu0 %2121
  %2123 = vrot.lane.b32.xlu0 %v2022, 112
  %v2124 = vpop.permute.xlu0 %2123
  %2125 = vrot.lane.b32.xlu0 %v2023, 112
  %v2126 = vpop.permute.xlu0 %2125
  %2127 = vrot.lane.b32.xlu0 %v2024, 112
  %v2128 = vpop.permute.xlu0 %2127
  %v2129 = vsel %vm349, %v2126, %v2128
  %v2130 = vsel %vm349, %v2124, %v2126
  %v2131 = vsel %vm349, %v2122, %v2124
  %v2132 = vsel %vm349, %v2128, %v2122
  %v2133 = vsel %vm1259, %v2131, 0.0
  %v2134 = vsel %vm1260, %v2130, 0.0
  %v2135 = vsel %vm1261, %v2129, 0.0
  %v2136 = vsel %vm1262, %v2132, 0.0
  %2137 = vrot.lane.b32.xlu0 %v2021, 111
  %v2138 = vpop.permute.xlu0 %2137
  %2139 = vrot.lane.b32.xlu0 %v2022, 111
  %v2140 = vpop.permute.xlu0 %2139
  %2141 = vrot.lane.b32.xlu0 %v2023, 111
  %v2142 = vpop.permute.xlu0 %2141
  %2143 = vrot.lane.b32.xlu0 %v2024, 111
  %v2144 = vpop.permute.xlu0 %2143
  %v2145 = vsel %vm366, %v2142, %v2144
  %v2146 = vsel %vm366, %v2140, %v2142
  %v2147 = vsel %vm366, %v2138, %v2140
  %v2148 = vsel %vm366, %v2144, %v2138
  %v2149 = vsel %vm1283, %v2147, 0.0
  %v2150 = vsel %vm1284, %v2146, 0.0
  %v2151 = vsel %vm1285, %v2145, 0.0
  %v2152 = vsel %vm1286, %v2148, 0.0
  %s2153 = scalar_lea.vmem %s0, 40
  %v2154 = vld [vmem:[%s2153] sm:$0xff]
  %s2155 = scalar_lea.vmem %s1, 40
  %v2156 = vld [vmem:[%s2155] sm:$0xff]
  %2158 = vset.pattern.permute.xlu0 0
  %2159 = vperm.xlu0 %2158, %v2156
  %v2160 = vpop.permute.xlu0 %2159
  %v2163 = vsel %vm598, %v2154, 0
  %2165 = vmatprep.subr.mxu0 %v2038
  %2166 = vmatpush1.msra.mxu0 %v2037
  %2167 = vmatprep.subr.mxu0 %v2054
  %2168 = vmatpush1.msra.mxu0 %v2053
  %2169 = vmatprep.subr.mxu0 %v2070
  %2170 = vmatpush1.msra.mxu0 %v2069
  %2171 = vmatprep.subr.mxu0 %v2086
  %2172 = vmatpush1.msra.mxu0 %v2085
  %2173 = vmatprep.subr.mxu0 %v2022
  %2174 = vmatpush1.msra.mxu0 %v2021
  %2175 = vmatprep.subr.mxu0 %v2102
  %2176 = vmatpush1.msra.mxu0 %v2101
  %2177 = vmatprep.subr.mxu0 %v2118
  %2178 = vmatpush1.msra.mxu0 %v2117
  %2179 = vmatprep.subr.mxu0 %v2134
  %2180 = vmatpush1.msra.mxu0 %v2133
  %2181 = vmatprep.subr.mxu0 %v2150
  %2182 = vmatpush1.msra.mxu0 %v2149
  %2183 = vmatprep.subr.mxu0 0.0
  %2184 = vmatpush1.msra.mxu0 0.0
  %2185 = vmatprep.subr.mxu0 0.0
  %2186 = vmatpush1.msra.mxu0 0.0
  %2187 = vmatprep.subr.mxu0 0.0
  %2188 = vmatpush1.msra.mxu0 0.0
  %2189 = vmatprep.subr.mxu0 0.0
  %2190 = vmatpush1.msra.mxu0 0.0
  %2191 = vmatprep.subr.mxu0 0.0
  %2192 = vmatpush1.msra.mxu0 0.0
  %2193 = vmatprep.subr.mxu0 0.0
  %2194 = vmatpush1.msra.mxu0 0.0
  %2195 = vmatprep.subr.mxu0 0.0
  %2196 = vmatpush1.msra.mxu0 0.0
  %2197 = vmatprep.subr.mxu0 0.0
  %2198 = vmatpush1.msra.mxu0 0.0
  %2199 = vmatprep.subr.mxu0 0.0
  %2200 = vmatpush1.msra.mxu0 0.0
  %2201 = vmatprep.subr.mxu0 0.0
  %2202 = vmatpush1.msra.mxu0 0.0
  %2203 = vmatprep.subr.mxu0 0.0
  %2204 = vmatpush1.msra.mxu0 0.0
  %2205 = vmatprep.subr.mxu0 0.0
  %2206 = vmatpush1.msra.mxu0 0.0
  %2207 = vmatprep.subr.mxu0 0.0
  %2208 = vmatpush1.msra.mxu0 0.0
  %2209 = vmatprep.subr.mxu0 0.0
  %2210 = vmatpush1.msra.mxu0 0.0
  %2211 = vmatprep.subr.mxu0 0.0
  %2212 = vmatpush1.msra.mxu0 0.0
  %2213 = vmatprep.subr.mxu0 0.0
  %2214 = vmatpush1.msra.mxu0 0.0
  %2215 = vmatprep.subr.mxu0 0.0
  %2216 = vmatpush1.msra.mxu0 0.0
  %2217 = vmatprep.subr.mxu0 0.0
  %2218 = vmatpush1.msra.mxu0 0.0
  %2219 = vmatprep.subr.mxu0 0.0
  %2220 = vmatpush1.msra.mxu0 0.0
  %2221 = vmatprep.subr.mxu0 0.0
  %2222 = vmatpush1.msra.mxu0 0.0
  %2223 = vmatprep.subr.mxu0 0.0
  %2224 = vmatpush1.msra.mxu0 0.0
  %2225 = vmatprep.subr.mxu0 0.0
  %2226 = vmatpush1.msra.mxu0 0.0
  %2227 = vmatprep.subr.mxu0 0.0
  %2228 = vmatpush1.msra.mxu0 0.0
  %2229 = vmatprep.mubr.f32.mxu0 0.0
  %2230 = vmatmul.mubr.f32.gmra.mrb[0].mxu0 %v2163
  %v2231 = vpop.f32.mrb[0].mxu0
  %v2232 = vadd.f32 %v2160, %v2231
  %v2233 = vpop.f32.mrb[0].mxu0
  %v2234 = vadd.f32 %v2160, %v2233
  %2235 = vdwg.mxu0
  %2236 = vmatprep.subr.mxu0 %v2040
  %2237 = vmatpush1.msra.mxu0 %v2039
  %2238 = vmatprep.subr.mxu0 %v2056
  %2239 = vmatpush1.msra.mxu0 %v2055
  %2240 = vmatprep.subr.mxu0 %v2072
  %2241 = vmatpush1.msra.mxu0 %v2071
  %2242 = vmatprep.subr.mxu0 %v2088
  %2243 = vmatpush1.msra.mxu0 %v2087
  %2244 = vmatprep.subr.mxu0 %v2024
  %2245 = vmatpush1.msra.mxu0 %v2023
  %2246 = vmatprep.subr.mxu0 %v2104
  %2247 = vmatpush1.msra.mxu0 %v2103
  %2248 = vmatprep.subr.mxu0 %v2120
  %2249 = vmatpush1.msra.mxu0 %v2119
  %2250 = vmatprep.subr.mxu0 %v2136
  %2251 = vmatpush1.msra.mxu0 %v2135
  %2252 = vmatprep.subr.mxu0 %v2152
  %2253 = vmatpush1.msra.mxu0 %v2151
  %2254 = vmatprep.subr.mxu0 0.0
  %2255 = vmatpush1.msra.mxu0 0.0
  %2256 = vmatprep.subr.mxu0 0.0
  %2257 = vmatpush1.msra.mxu0 0.0
  %2258 = vmatprep.subr.mxu0 0.0
  %2259 = vmatpush1.msra.mxu0 0.0
  %2260 = vmatprep.subr.mxu0 0.0
  %2261 = vmatpush1.msra.mxu0 0.0
  %2262 = vmatprep.subr.mxu0 0.0
  %2263 = vmatpush1.msra.mxu0 0.0
  %2264 = vmatprep.subr.mxu0 0.0
  %2265 = vmatpush1.msra.mxu0 0.0
  %2266 = vmatprep.subr.mxu0 0.0
  %2267 = vmatpush1.msra.mxu0 0.0
  %2268 = vmatprep.subr.mxu0 0.0
  %2269 = vmatpush1.msra.mxu0 0.0
  %2270 = vmatprep.subr.mxu0 0.0
  %2271 = vmatpush1.msra.mxu0 0.0
  %2272 = vmatprep.subr.mxu0 0.0
  %2273 = vmatpush1.msra.mxu0 0.0
  %2274 = vmatprep.subr.mxu0 0.0
  %2275 = vmatpush1.msra.mxu0 0.0
  %2276 = vmatprep.subr.mxu0 0.0
  %2277 = vmatpush1.msra.mxu0 0.0
  %2278 = vmatprep.subr.mxu0 0.0
  %2279 = vmatpush1.msra.mxu0 0.0
  %2280 = vmatprep.subr.mxu0 0.0
  %2281 = vmatpush1.msra.mxu0 0.0
  %2282 = vmatprep.subr.mxu0 0.0
  %2283 = vmatpush1.msra.mxu0 0.0
  %2284 = vmatprep.subr.mxu0 0.0
  %2285 = vmatpush1.msra.mxu0 0.0
  %2286 = vmatprep.subr.mxu0 0.0
  %2287 = vmatpush1.msra.mxu0 0.0
  %2288 = vmatprep.subr.mxu0 0.0
  %2289 = vmatpush1.msra.mxu0 0.0
  %2290 = vmatprep.subr.mxu0 0.0
  %2291 = vmatpush1.msra.mxu0 0.0
  %2292 = vmatprep.subr.mxu0 0.0
  %2293 = vmatpush1.msra.mxu0 0.0
  %2294 = vmatprep.subr.mxu0 0.0
  %2295 = vmatpush1.msra.mxu0 0.0
  %2296 = vmatprep.subr.mxu0 0.0
  %2297 = vmatpush1.msra.mxu0 0.0
  %2298 = vmatprep.subr.mxu0 0.0
  %2299 = vmatpush1.msra.mxu0 0.0
  %2300 = vmatprep.mubr.f32.mxu0 0.0
  %2301 = vmatmul.mubr.f32.gmra.mrb[0].mxu0 %v2163
  %v2302 = vpop.f32.mrb[0].mxu0
  %v2303 = vadd.f32 %v2160, %v2302
  %v2304 = vpop.f32.mrb[0].mxu0
  %v2305 = vadd.f32 %v2160, %v2304
  %2306 = vdwg.mxu0
  %v2307 = vadd.f32 %v2232, %v320
  %v2308 = vadd.f32 %v2234, %v321
  %v2309 = vadd.f32 %v2303, %v322
  %v2310 = vadd.f32 %v2305, %v323
  %v2311 = vmax.f32 %v2307, 0.0
  %v2312 = vmax.f32 %v2308, 0.0
  %v2313 = vmax.f32 %v2309, 0.0
  %v2314 = vmax.f32 %v2310, 0.0
  %2315 = vrot.lane.b32.xlu0 %v2311, 17
  %v2316 = vpop.permute.xlu0 %2315
  %2317 = vrot.lane.b32.xlu0 %v2312, 17
  %v2318 = vpop.permute.xlu0 %2317
  %2319 = vrot.lane.b32.xlu0 %v2313, 17
  %v2320 = vpop.permute.xlu0 %2319
  %2321 = vrot.lane.b32.xlu0 %v2314, 17
  %v2322 = vpop.permute.xlu0 %2321
  %v2323 = vsel %vm1084, %v2320, %v2322
  %v2324 = vsel %vm1084, %v2318, %v2320
  %v2325 = vsel %vm1084, %v2316, %v2318
  %v2326 = vsel %vm1084, %v2322, %v2316
  %v2327 = vsel %vm1113, %v2326, 0.0
  %v2328 = vsel %vm1114, %v2325, 0.0
  %v2329 = vsel %vm1115, %v2324, 0.0
  %v2330 = vsel %vm1116, %v2323, 0.0
  %2331 = vrot.lane.b32.xlu0 %v2311, 16
  %v2332 = vpop.permute.xlu0 %2331
  %2333 = vrot.lane.b32.xlu0 %v2312, 16
  %v2334 = vpop.permute.xlu0 %2333
  %2335 = vrot.lane.b32.xlu0 %v2313, 16
  %v2336 = vpop.permute.xlu0 %2335
  %2337 = vrot.lane.b32.xlu0 %v2314, 16
  %v2338 = vpop.permute.xlu0 %2337
  %v2339 = vsel %vm1067, %v2336, %v2338
  %v2340 = vsel %vm1067, %v2334, %v2336
  %v2341 = vsel %vm1067, %v2332, %v2334
  %v2342 = vsel %vm1067, %v2338, %v2332
  %v2343 = vsel %vm1137, %v2342, 0.0
  %v2344 = vsel %vm1138, %v2341, 0.0
  %v2345 = vsel %vm1139, %v2340, 0.0
  %v2346 = vsel %vm1140, %v2339, 0.0
  %2347 = vrot.lane.b32.xlu0 %v2311, 15
  %v2348 = vpop.permute.xlu0 %2347
  %2349 = vrot.lane.b32.xlu0 %v2312, 15
  %v2350 = vpop.permute.xlu0 %2349
  %2351 = vrot.lane.b32.xlu0 %v2313, 15
  %v2352 = vpop.permute.xlu0 %2351
  %2353 = vrot.lane.b32.xlu0 %v2314, 15
  %v2354 = vpop.permute.xlu0 %2353
  %v2355 = vsel %vm1153, %v2352, %v2354
  %v2356 = vsel %vm1153, %v2350, %v2352
  %v2357 = vsel %vm1153, %v2348, %v2350
  %v2358 = vsel %vm1153, %v2354, %v2348
  %v2359 = vsel %vm1162, %v2358, 0.0
  %v2360 = vsel %vm1163, %v2357, 0.0
  %v2361 = vsel %vm1164, %v2356, 0.0
  %v2362 = vsel %vm1165, %v2355, 0.0
  %2363 = vrot.lane.b32.xlu0 %v2311, 1
  %v2364 = vpop.permute.xlu0 %2363
  %2365 = vrot.lane.b32.xlu0 %v2312, 1
  %v2366 = vpop.permute.xlu0 %2365
  %2367 = vrot.lane.b32.xlu0 %v2313, 1
  %v2368 = vpop.permute.xlu0 %2367
  %2369 = vrot.lane.b32.xlu0 %v2314, 1
  %v2370 = vpop.permute.xlu0 %2369
  %v2371 = vsel %vm1050, %v2368, %v2370
  %v2372 = vsel %vm1050, %v2366, %v2368
  %v2373 = vsel %vm1050, %v2364, %v2366
  %v2374 = vsel %vm1050, %v2370, %v2364
  %v2375 = vsel %vm1186, %v2374, 0.0
  %v2376 = vsel %vm1187, %v2373, 0.0
  %v2377 = vsel %vm1188, %v2372, 0.0
  %v2378 = vsel %vm1189, %v2371, 0.0
  %2379 = vrot.lane.b32.xlu0 %v2311, 127
  %v2380 = vpop.permute.xlu0 %2379
  %2381 = vrot.lane.b32.xlu0 %v2312, 127
  %v2382 = vpop.permute.xlu0 %2381
  %2383 = vrot.lane.b32.xlu0 %v2313, 127
  %v2384 = vpop.permute.xlu0 %2383
  %2385 = vrot.lane.b32.xlu0 %v2314, 127
  %v2386 = vpop.permute.xlu0 %2385
  %v2387 = vsel %vm332, %v2384, %v2386
  %v2388 = vsel %vm332, %v2382, %v2384
  %v2389 = vsel %vm332, %v2380, %v2382
  %v2390 = vsel %vm332, %v2386, %v2380
  %v2391 = vsel %vm1210, %v2389, 0.0
  %v2392 = vsel %vm1211, %v2388, 0.0
  %v2393 = vsel %vm1212, %v2387, 0.0
  %v2394 = vsel %vm1213, %v2390, 0.0
  %2395 = vrot.lane.b32.xlu0 %v2311, 113
  %v2396 = vpop.permute.xlu0 %2395
  %2397 = vrot.lane.b32.xlu0 %v2312, 113
  %v2398 = vpop.permute.xlu0 %2397
  %2399 = vrot.lane.b32.xlu0 %v2313, 113
  %v2400 = vpop.permute.xlu0 %2399
  %2401 = vrot.lane.b32.xlu0 %v2314, 113
  %v2402 = vpop.permute.xlu0 %2401
  %v2403 = vsel %vm1226, %v2400, %v2402
  %v2404 = vsel %vm1226, %v2398, %v2400
  %v2405 = vsel %vm1226, %v2396, %v2398
  %v2406 = vsel %vm1226, %v2402, %v2396
  %v2407 = vsel %vm1235, %v2405, 0.0
  %v2408 = vsel %vm1236, %v2404, 0.0
  %v2409 = vsel %vm1237, %v2403, 0.0
  %v2410 = vsel %vm1238, %v2406, 0.0
  %2411 = vrot.lane.b32.xlu0 %v2311, 112
  %v2412 = vpop.permute.xlu0 %2411
  %2413 = vrot.lane.b32.xlu0 %v2312, 112
  %v2414 = vpop.permute.xlu0 %2413
  %2415 = vrot.lane.b32.xlu0 %v2313, 112
  %v2416 = vpop.permute.xlu0 %2415
  %2417 = vrot.lane.b32.xlu0 %v2314, 112
  %v2418 = vpop.permute.xlu0 %2417
  %v2419 = vsel %vm349, %v2416, %v2418
  %v2420 = vsel %vm349, %v2414, %v2416
  %v2421 = vsel %vm349, %v2412, %v2414
  %v2422 = vsel %vm349, %v2418, %v2412
  %v2423 = vsel %vm1259, %v2421, 0.0
  %v2424 = vsel %vm1260, %v2420, 0.0
  %v2425 = vsel %vm1261, %v2419, 0.0
  %v2426 = vsel %vm1262, %v2422, 0.0
  %2427 = vrot.lane.b32.xlu0 %v2311, 111
  %v2428 = vpop.permute.xlu0 %2427
  %2429 = vrot.lane.b32.xlu0 %v2312, 111
  %v2430 = vpop.permute.xlu0 %2429
  %2431 = vrot.lane.b32.xlu0 %v2313, 111
  %v2432 = vpop.permute.xlu0 %2431
  %2433 = vrot.lane.b32.xlu0 %v2314, 111
  %v2434 = vpop.permute.xlu0 %2433
  %v2435 = vsel %vm366, %v2432, %v2434
  %v2436 = vsel %vm366, %v2430, %v2432
  %v2437 = vsel %vm366, %v2428, %v2430
  %v2438 = vsel %vm366, %v2434, %v2428
  %v2439 = vsel %vm1283, %v2437, 0.0
  %v2440 = vsel %vm1284, %v2436, 0.0
  %v2441 = vsel %vm1285, %v2435, 0.0
  %v2442 = vsel %vm1286, %v2438, 0.0
  %s2443 = scalar_lea.vmem %s0, 48
  %v2444 = vld [vmem:[%s2443] sm:$0xff]
  %s2445 = scalar_lea.vmem %s1, 48
  %v2446 = vld [vmem:[%s2445] sm:$0xff]
  %2448 = vset.pattern.permute.xlu0 0
  %2449 = vperm.xlu0 %2448, %v2446
  %v2450 = vpop.permute.xlu0 %2449
  %v2453 = vsel %vm598, %v2444, 0
  %2455 = vmatprep.subr.mxu0 %v2328
  %2456 = vmatpush1.msra.mxu0 %v2327
  %2457 = vmatprep.subr.mxu0 %v2344
  %2458 = vmatpush1.msra.mxu0 %v2343
  %2459 = vmatprep.subr.mxu0 %v2360
  %2460 = vmatpush1.msra.mxu0 %v2359
  %2461 = vmatprep.subr.mxu0 %v2376
  %2462 = vmatpush1.msra.mxu0 %v2375
  %2463 = vmatprep.subr.mxu0 %v2312
  %2464 = vmatpush1.msra.mxu0 %v2311
  %2465 = vmatprep.subr.mxu0 %v2392
  %2466 = vmatpush1.msra.mxu0 %v2391
  %2467 = vmatprep.subr.mxu0 %v2408
  %2468 = vmatpush1.msra.mxu0 %v2407
  %2469 = vmatprep.subr.mxu0 %v2424
  %2470 = vmatpush1.msra.mxu0 %v2423
  %2471 = vmatprep.subr.mxu0 %v2440
  %2472 = vmatpush1.msra.mxu0 %v2439
  %2473 = vmatprep.subr.mxu0 0.0
  %2474 = vmatpush1.msra.mxu0 0.0
  %2475 = vmatprep.subr.mxu0 0.0
  %2476 = vmatpush1.msra.mxu0 0.0
  %2477 = vmatprep.subr.mxu0 0.0
  %2478 = vmatpush1.msra.mxu0 0.0
  %2479 = vmatprep.subr.mxu0 0.0
  %2480 = vmatpush1.msra.mxu0 0.0
  %2481 = vmatprep.subr.mxu0 0.0
  %2482 = vmatpush1.msra.mxu0 0.0
  %2483 = vmatprep.subr.mxu0 0.0
  %2484 = vmatpush1.msra.mxu0 0.0
  %2485 = vmatprep.subr.mxu0 0.0
  %2486 = vmatpush1.msra.mxu0 0.0
  %2487 = vmatprep.subr.mxu0 0.0
  %2488 = vmatpush1.msra.mxu0 0.0
  %2489 = vmatprep.subr.mxu0 0.0
  %2490 = vmatpush1.msra.mxu0 0.0
  %2491 = vmatprep.subr.mxu0 0.0
  %2492 = vmatpush1.msra.mxu0 0.0
  %2493 = vmatprep.subr.mxu0 0.0
  %2494 = vmatpush1.msra.mxu0 0.0
  %2495 = vmatprep.subr.mxu0 0.0
  %2496 = vmatpush1.msra.mxu0 0.0
  %2497 = vmatprep.subr.mxu0 0.0
  %2498 = vmatpush1.msra.mxu0 0.0
  %2499 = vmatprep.subr.mxu0 0.0
  %2500 = vmatpush1.msra.mxu0 0.0
  %2501 = vmatprep.subr.mxu0 0.0
  %2502 = vmatpush1.msra.mxu0 0.0
  %2503 = vmatprep.subr.mxu0 0.0
  %2504 = vmatpush1.msra.mxu0 0.0
  %2505 = vmatprep.subr.mxu0 0.0
  %2506 = vmatpush1.msra.mxu0 0.0
  %2507 = vmatprep.subr.mxu0 0.0
  %2508 = vmatpush1.msra.mxu0 0.0
  %2509 = vmatprep.subr.mxu0 0.0
  %2510 = vmatpush1.msra.mxu0 0.0
  %2511 = vmatprep.subr.mxu0 0.0
  %2512 = vmatpush1.msra.mxu0 0.0
  %2513 = vmatprep.subr.mxu0 0.0
  %2514 = vmatpush1.msra.mxu0 0.0
  %2515 = vmatprep.subr.mxu0 0.0
  %2516 = vmatpush1.msra.mxu0 0.0
  %2517 = vmatprep.subr.mxu0 0.0
  %2518 = vmatpush1.msra.mxu0 0.0
  %2519 = vmatprep.mubr.f32.mxu0 0.0
  %2520 = vmatmul.mubr.f32.gmra.mrb[0].mxu0 %v2453
  %v2521 = vpop.f32.mrb[0].mxu0
  %v2522 = vadd.f32 %v2450, %v2521
  %v2523 = vpop.f32.mrb[0].mxu0
  %v2524 = vadd.f32 %v2450, %v2523
  %2525 = vdwg.mxu0
  %2526 = vmatprep.subr.mxu0 %v2330
  %2527 = vmatpush1.msra.mxu0 %v2329
  %2528 = vmatprep.subr.mxu0 %v2346
  %2529 = vmatpush1.msra.mxu0 %v2345
  %2530 = vmatprep.subr.mxu0 %v2362
  %2531 = vmatpush1.msra.mxu0 %v2361
  %2532 = vmatprep.subr.mxu0 %v2378
  %2533 = vmatpush1.msra.mxu0 %v2377
  %2534 = vmatprep.subr.mxu0 %v2314
  %2535 = vmatpush1.msra.mxu0 %v2313
  %2536 = vmatprep.subr.mxu0 %v2394
  %2537 = vmatpush1.msra.mxu0 %v2393
  %2538 = vmatprep.subr.mxu0 %v2410
  %2539 = vmatpush1.msra.mxu0 %v2409
  %2540 = vmatprep.subr.mxu0 %v2426
  %2541 = vmatpush1.msra.mxu0 %v2425
  %2542 = vmatprep.subr.mxu0 %v2442
  %2543 = vmatpush1.msra.mxu0 %v2441
  %2544 = vmatprep.subr.mxu0 0.0
  %2545 = vmatpush1.msra.mxu0 0.0
  %2546 = vmatprep.subr.mxu0 0.0
  %2547 = vmatpush1.msra.mxu0 0.0
  %2548 = vmatprep.subr.mxu0 0.0
  %2549 = vmatpush1.msra.mxu0 0.0
  %2550 = vmatprep.subr.mxu0 0.0
  %2551 = vmatpush1.msra.mxu0 0.0
  %2552 = vmatprep.subr.mxu0 0.0
  %2553 = vmatpush1.msra.mxu0 0.0
  %2554 = vmatprep.subr.mxu0 0.0
  %2555 = vmatpush1.msra.mxu0 0.0
  %2556 = vmatprep.subr.mxu0 0.0
  %2557 = vmatpush1.msra.mxu0 0.0
  %2558 = vmatprep.subr.mxu0 0.0
  %2559 = vmatpush1.msra.mxu0 0.0
  %2560 = vmatprep.subr.mxu0 0.0
  %2561 = vmatpush1.msra.mxu0 0.0
  %2562 = vmatprep.subr.mxu0 0.0
  %2563 = vmatpush1.msra.mxu0 0.0
  %2564 = vmatprep.subr.mxu0 0.0
  %2565 = vmatpush1.msra.mxu0 0.0
  %2566 = vmatprep.subr.mxu0 0.0
  %2567 = vmatpush1.msra.mxu0 0.0
  %2568 = vmatprep.subr.mxu0 0.0
  %2569 = vmatpush1.msra.mxu0 0.0
  %2570 = vmatprep.subr.mxu0 0.0
  %2571 = vmatpush1.msra.mxu0 0.0
  %2572 = vmatprep.subr.mxu0 0.0
  %2573 = vmatpush1.msra.mxu0 0.0
  %2574 = vmatprep.subr.mxu0 0.0
  %2575 = vmatpush1.msra.mxu0 0.0
  %2576 = vmatprep.subr.mxu0 0.0
  %2577 = vmatpush1.msra.mxu0 0.0
  %2578 = vmatprep.subr.mxu0 0.0
  %2579 = vmatpush1.msra.mxu0 0.0
  %2580 = vmatprep.subr.mxu0 0.0
  %2581 = vmatpush1.msra.mxu0 0.0
  %2582 = vmatprep.subr.mxu0 0.0
  %2583 = vmatpush1.msra.mxu0 0.0
  %2584 = vmatprep.subr.mxu0 0.0
  %2585 = vmatpush1.msra.mxu0 0.0
  %2586 = vmatprep.subr.mxu0 0.0
  %2587 = vmatpush1.msra.mxu0 0.0
  %2588 = vmatprep.subr.mxu0 0.0
  %2589 = vmatpush1.msra.mxu0 0.0
  %2590 = vmatprep.mubr.f32.mxu0 0.0
  %2591 = vmatmul.mubr.f32.gmra.mrb[0].mxu0 %v2453
  %v2592 = vpop.f32.mrb[0].mxu0
  %v2593 = vadd.f32 %v2450, %v2592
  %v2594 = vpop.f32.mrb[0].mxu0
  %v2595 = vadd.f32 %v2450, %v2594
  %2596 = vdwg.mxu0
  %v2597 = vmax.f32 %v2522, 0.0
  %v2598 = vmax.f32 %v2524, 0.0
  %v2599 = vmax.f32 %v2593, 0.0
  %v2600 = vmax.f32 %v2595, 0.0
  %2601 = vrot.lane.b32.xlu0 %v2597, 17
  %v2602 = vpop.permute.xlu0 %2601
  %2603 = vrot.lane.b32.xlu0 %v2598, 17
  %v2604 = vpop.permute.xlu0 %2603
  %2605 = vrot.lane.b32.xlu0 %v2599, 17
  %v2606 = vpop.permute.xlu0 %2605
  %2607 = vrot.lane.b32.xlu0 %v2600, 17
  %v2608 = vpop.permute.xlu0 %2607
  %v2609 = vsel %vm1084, %v2606, %v2608
  %v2610 = vsel %vm1084, %v2604, %v2606
  %v2611 = vsel %vm1084, %v2602, %v2604
  %v2612 = vsel %vm1084, %v2608, %v2602
  %v2613 = vsel %vm1113, %v2612, 0.0
  %v2614 = vsel %vm1114, %v2611, 0.0
  %v2615 = vsel %vm1115, %v2610, 0.0
  %v2616 = vsel %vm1116, %v2609, 0.0
  %2617 = vrot.lane.b32.xlu0 %v2597, 16
  %v2618 = vpop.permute.xlu0 %2617
  %2619 = vrot.lane.b32.xlu0 %v2598, 16
  %v2620 = vpop.permute.xlu0 %2619
  %2621 = vrot.lane.b32.xlu0 %v2599, 16
  %v2622 = vpop.permute.xlu0 %2621
  %2623 = vrot.lane.b32.xlu0 %v2600, 16
  %v2624 = vpop.permute.xlu0 %2623
  %v2625 = vsel %vm1067, %v2622, %v2624
  %v2626 = vsel %vm1067, %v2620, %v2622
  %v2627 = vsel %vm1067, %v2618, %v2620
  %v2628 = vsel %vm1067, %v2624, %v2618
  %v2629 = vsel %vm1137, %v2628, 0.0
  %v2630 = vsel %vm1138, %v2627, 0.0
  %v2631 = vsel %vm1139, %v2626, 0.0
  %v2632 = vsel %vm1140, %v2625, 0.0
  %2633 = vrot.lane.b32.xlu0 %v2597, 15
  %v2634 = vpop.permute.xlu0 %2633
  %2635 = vrot.lane.b32.xlu0 %v2598, 15
  %v2636 = vpop.permute.xlu0 %2635
  %2637 = vrot.lane.b32.xlu0 %v2599, 15
  %v2638 = vpop.permute.xlu0 %2637
  %2639 = vrot.lane.b32.xlu0 %v2600, 15
  %v2640 = vpop.permute.xlu0 %2639
  %v2641 = vsel %vm1153, %v2638, %v2640
  %v2642 = vsel %vm1153, %v2636, %v2638
  %v2643 = vsel %vm1153, %v2634, %v2636
  %v2644 = vsel %vm1153, %v2640, %v2634
  %v2645 = vsel %vm1162, %v2644, 0.0
  %v2646 = vsel %vm1163, %v2643, 0.0
  %v2647 = vsel %vm1164, %v2642, 0.0
  %v2648 = vsel %vm1165, %v2641, 0.0
  %2649 = vrot.lane.b32.xlu0 %v2597, 1
  %v2650 = vpop.permute.xlu0 %2649
  %2651 = vrot.lane.b32.xlu0 %v2598, 1
  %v2652 = vpop.permute.xlu0 %2651
  %2653 = vrot.lane.b32.xlu0 %v2599, 1
  %v2654 = vpop.permute.xlu0 %2653
  %2655 = vrot.lane.b32.xlu0 %v2600, 1
  %v2656 = vpop.permute.xlu0 %2655
  %v2657 = vsel %vm1050, %v2654, %v2656
  %v2658 = vsel %vm1050, %v2652, %v2654
  %v2659 = vsel %vm1050, %v2650, %v2652
  %v2660 = vsel %vm1050, %v2656, %v2650
  %v2661 = vsel %vm1186, %v2660, 0.0
  %v2662 = vsel %vm1187, %v2659, 0.0
  %v2663 = vsel %vm1188, %v2658, 0.0
  %v2664 = vsel %vm1189, %v2657, 0.0
  %2665 = vrot.lane.b32.xlu0 %v2597, 127
  %v2666 = vpop.permute.xlu0 %2665
  %2667 = vrot.lane.b32.xlu0 %v2598, 127
  %v2668 = vpop.permute.xlu0 %2667
  %2669 = vrot.lane.b32.xlu0 %v2599, 127
  %v2670 = vpop.permute.xlu0 %2669
  %2671 = vrot.lane.b32.xlu0 %v2600, 127
  %v2672 = vpop.permute.xlu0 %2671
  %v2673 = vsel %vm332, %v2670, %v2672
  %v2674 = vsel %vm332, %v2668, %v2670
  %v2675 = vsel %vm332, %v2666, %v2668
  %v2676 = vsel %vm332, %v2672, %v2666
  %v2677 = vsel %vm1210, %v2675, 0.0
  %v2678 = vsel %vm1211, %v2674, 0.0
  %v2679 = vsel %vm1212, %v2673, 0.0
  %v2680 = vsel %vm1213, %v2676, 0.0
  %2681 = vrot.lane.b32.xlu0 %v2597, 113
  %v2682 = vpop.permute.xlu0 %2681
  %2683 = vrot.lane.b32.xlu0 %v2598, 113
  %v2684 = vpop.permute.xlu0 %2683
  %2685 = vrot.lane.b32.xlu0 %v2599, 113
  %v2686 = vpop.permute.xlu0 %2685
  %2687 = vrot.lane.b32.xlu0 %v2600, 113
  %v2688 = vpop.permute.xlu0 %2687
  %v2689 = vsel %vm1226, %v2686, %v2688
  %v2690 = vsel %vm1226, %v2684, %v2686
  %v2691 = vsel %vm1226, %v2682, %v2684
  %v2692 = vsel %vm1226, %v2688, %v2682
  %v2693 = vsel %vm1235, %v2691, 0.0
  %v2694 = vsel %vm1236, %v2690, 0.0
  %v2695 = vsel %vm1237, %v2689, 0.0
  %v2696 = vsel %vm1238, %v2692, 0.0
  %2697 = vrot.lane.b32.xlu0 %v2597, 112
  %v2698 = vpop.permute.xlu0 %2697
  %2699 = vrot.lane.b32.xlu0 %v2598, 112
  %v2700 = vpop.permute.xlu0 %2699
  %2701 = vrot.lane.b32.xlu0 %v2599, 112
  %v2702 = vpop.permute.xlu0 %2701
  %2703 = vrot.lane.b32.xlu0 %v2600, 112
  %v2704 = vpop.permute.xlu0 %2703
  %v2705 = vsel %vm349, %v2702, %v2704
  %v2706 = vsel %vm349, %v2700, %v2702
  %v2707 = vsel %vm349, %v2698, %v2700
  %v2708 = vsel %vm349, %v2704, %v2698
  %v2709 = vsel %vm1259, %v2707, 0.0
  %v2710 = vsel %vm1260, %v2706, 0.0
  %v2711 = vsel %vm1261, %v2705, 0.0
  %v2712 = vsel %vm1262, %v2708, 0.0
  %2713 = vrot.lane.b32.xlu0 %v2597, 111
  %v2714 = vpop.permute.xlu0 %2713
  %2715 = vrot.lane.b32.xlu0 %v2598, 111
  %v2716 = vpop.permute.xlu0 %2715
  %2717 = vrot.lane.b32.xlu0 %v2599, 111
  %v2718 = vpop.permute.xlu0 %2717
  %2719 = vrot.lane.b32.xlu0 %v2600, 111
  %v2720 = vpop.permute.xlu0 %2719
  %v2721 = vsel %vm366, %v2718, %v2720
  %v2722 = vsel %vm366, %v2716, %v2718
  %v2723 = vsel %vm366, %v2714, %v2716
  %v2724 = vsel %vm366, %v2720, %v2714
  %v2725 = vsel %vm1283, %v2723, 0.0
  %v2726 = vsel %vm1284, %v2722, 0.0
  %v2727 = vsel %vm1285, %v2721, 0.0
  %v2728 = vsel %vm1286, %v2724, 0.0
  %s2729 = scalar_lea.vmem %s0, 56
  %v2730 = vld [vmem:[%s2729] sm:$0xff]
  %s2731 = scalar_lea.vmem %s1, 56
  %v2732 = vld [vmem:[%s2731] sm:$0xff]
  %2734 = vset.pattern.permute.xlu0 0
  %2735 = vperm.xlu0 %2734, %v2732
  %v2736 = vpop.permute.xlu0 %2735
  %v2739 = vsel %vm598, %v2730, 0
  %2741 = vmatprep.subr.mxu0 %v2614
  %2742 = vmatpush1.msra.mxu0 %v2613
  %2743 = vmatprep.subr.mxu0 %v2630
  %2744 = vmatpush1.msra.mxu0 %v2629
  %2745 = vmatprep.subr.mxu0 %v2646
  %2746 = vmatpush1.msra.mxu0 %v2645
  %2747 = vmatprep.subr.mxu0 %v2662
  %2748 = vmatpush1.msra.mxu0 %v2661
  %2749 = vmatprep.subr.mxu0 %v2598
  %2750 = vmatpush1.msra.mxu0 %v2597
  %2751 = vmatprep.subr.mxu0 %v2678
  %2752 = vmatpush1.msra.mxu0 %v2677
  %2753 = vmatprep.subr.mxu0 %v2694
  %2754 = vmatpush1.msra.mxu0 %v2693
  %2755 = vmatprep.subr.mxu0 %v2710
  %2756 = vmatpush1.msra.mxu0 %v2709
  %2757 = vmatprep.subr.mxu0 %v2726
  %2758 = vmatpush1.msra.mxu0 %v2725
  %2759 = vmatprep.subr.mxu0 0.0
  %2760 = vmatpush1.msra.mxu0 0.0
  %2761 = vmatprep.subr.mxu0 0.0
  %2762 = vmatpush1.msra.mxu0 0.0
  %2763 = vmatprep.subr.mxu0 0.0
  %2764 = vmatpush1.msra.mxu0 0.0
  %2765 = vmatprep.subr.mxu0 0.0
  %2766 = vmatpush1.msra.mxu0 0.0
  %2767 = vmatprep.subr.mxu0 0.0
  %2768 = vmatpush1.msra.mxu0 0.0
  %2769 = vmatprep.subr.mxu0 0.0
  %2770 = vmatpush1.msra.mxu0 0.0
  %2771 = vmatprep.subr.mxu0 0.0
  %2772 = vmatpush1.msra.mxu0 0.0
  %2773 = vmatprep.subr.mxu0 0.0
  %2774 = vmatpush1.msra.mxu0 0.0
  %2775 = vmatprep.subr.mxu0 0.0
  %2776 = vmatpush1.msra.mxu0 0.0
  %2777 = vmatprep.subr.mxu0 0.0
  %2778 = vmatpush1.msra.mxu0 0.0
  %2779 = vmatprep.subr.mxu0 0.0
  %2780 = vmatpush1.msra.mxu0 0.0
  %2781 = vmatprep.subr.mxu0 0.0
  %2782 = vmatpush1.msra.mxu0 0.0
  %2783 = vmatprep.subr.mxu0 0.0
  %2784 = vmatpush1.msra.mxu0 0.0
  %2785 = vmatprep.subr.mxu0 0.0
  %2786 = vmatpush1.msra.mxu0 0.0
  %2787 = vmatprep.subr.mxu0 0.0
  %2788 = vmatpush1.msra.mxu0 0.0
  %2789 = vmatprep.subr.mxu0 0.0
  %2790 = vmatpush1.msra.mxu0 0.0
  %2791 = vmatprep.subr.mxu0 0.0
  %2792 = vmatpush1.msra.mxu0 0.0
  %2793 = vmatprep.subr.mxu0 0.0
  %2794 = vmatpush1.msra.mxu0 0.0
  %2795 = vmatprep.subr.mxu0 0.0
  %2796 = vmatpush1.msra.mxu0 0.0
  %2797 = vmatprep.subr.mxu0 0.0
  %2798 = vmatpush1.msra.mxu0 0.0
  %2799 = vmatprep.subr.mxu0 0.0
  %2800 = vmatpush1.msra.mxu0 0.0
  %2801 = vmatprep.subr.mxu0 0.0
  %2802 = vmatpush1.msra.mxu0 0.0
  %2803 = vmatprep.subr.mxu0 0.0
  %2804 = vmatpush1.msra.mxu0 0.0
  %2805 = vmatprep.mubr.f32.mxu0 0.0
  %2806 = vmatmul.mubr.f32.gmra.mrb[0].mxu0 %v2739
  %v2807 = vpop.f32.mrb[0].mxu0
  %v2808 = vadd.f32 %v2736, %v2807
  %v2809 = vpop.f32.mrb[0].mxu0
  %v2810 = vadd.f32 %v2736, %v2809
  %2811 = vdwg.mxu0
  %2812 = vmatprep.subr.mxu0 %v2616
  %2813 = vmatpush1.msra.mxu0 %v2615
  %2814 = vmatprep.subr.mxu0 %v2632
  %2815 = vmatpush1.msra.mxu0 %v2631
  %2816 = vmatprep.subr.mxu0 %v2648
  %2817 = vmatpush1.msra.mxu0 %v2647
  %2818 = vmatprep.subr.mxu0 %v2664
  %2819 = vmatpush1.msra.mxu0 %v2663
  %2820 = vmatprep.subr.mxu0 %v2600
  %2821 = vmatpush1.msra.mxu0 %v2599
  %2822 = vmatprep.subr.mxu0 %v2680
  %2823 = vmatpush1.msra.mxu0 %v2679
  %2824 = vmatprep.subr.mxu0 %v2696
  %2825 = vmatpush1.msra.mxu0 %v2695
  %2826 = vmatprep.subr.mxu0 %v2712
  %2827 = vmatpush1.msra.mxu0 %v2711
  %2828 = vmatprep.subr.mxu0 %v2728
  %2829 = vmatpush1.msra.mxu0 %v2727
  %2830 = vmatprep.subr.mxu0 0.0
  %2831 = vmatpush1.msra.mxu0 0.0
  %2832 = vmatprep.subr.mxu0 0.0
  %2833 = vmatpush1.msra.mxu0 0.0
  %2834 = vmatprep.subr.mxu0 0.0
  %2835 = vmatpush1.msra.mxu0 0.0
  %2836 = vmatprep.subr.mxu0 0.0
  %2837 = vmatpush1.msra.mxu0 0.0
  %2838 = vmatprep.subr.mxu0 0.0
  %2839 = vmatpush1.msra.mxu0 0.0
  %2840 = vmatprep.subr.mxu0 0.0
  %2841 = vmatpush1.msra.mxu0 0.0
  %2842 = vmatprep.subr.mxu0 0.0
  %2843 = vmatpush1.msra.mxu0 0.0
  %2844 = vmatprep.subr.mxu0 0.0
  %2845 = vmatpush1.msra.mxu0 0.0
  %2846 = vmatprep.subr.mxu0 0.0
  %2847 = vmatpush1.msra.mxu0 0.0
  %2848 = vmatprep.subr.mxu0 0.0
  %2849 = vmatpush1.msra.mxu0 0.0
  %2850 = vmatprep.subr.mxu0 0.0
  %2851 = vmatpush1.msra.mxu0 0.0
  %2852 = vmatprep.subr.mxu0 0.0
  %2853 = vmatpush1.msra.mxu0 0.0
  %2854 = vmatprep.subr.mxu0 0.0
  %2855 = vmatpush1.msra.mxu0 0.0
  %2856 = vmatprep.subr.mxu0 0.0
  %2857 = vmatpush1.msra.mxu0 0.0
  %2858 = vmatprep.subr.mxu0 0.0
  %2859 = vmatpush1.msra.mxu0 0.0
  %2860 = vmatprep.subr.mxu0 0.0
  %2861 = vmatpush1.msra.mxu0 0.0
  %2862 = vmatprep.subr.mxu0 0.0
  %2863 = vmatpush1.msra.mxu0 0.0
  %2864 = vmatprep.subr.mxu0 0.0
  %2865 = vmatpush1.msra.mxu0 0.0
  %2866 = vmatprep.subr.mxu0 0.0
  %2867 = vmatpush1.msra.mxu0 0.0
  %2868 = vmatprep.subr.mxu0 0.0
  %2869 = vmatpush1.msra.mxu0 0.0
  %2870 = vmatprep.subr.mxu0 0.0
  %2871 = vmatpush1.msra.mxu0 0.0
  %2872 = vmatprep.subr.mxu0 0.0
  %2873 = vmatpush1.msra.mxu0 0.0
  %2874 = vmatprep.subr.mxu0 0.0
  %2875 = vmatpush1.msra.mxu0 0.0
  %2876 = vmatprep.mubr.f32.mxu0 0.0
  %2877 = vmatmul.mubr.f32.gmra.mrb[0].mxu0 %v2739
  %v2878 = vpop.f32.mrb[0].mxu0
  %v2879 = vadd.f32 %v2736, %v2878
  %v2880 = vpop.f32.mrb[0].mxu0
  %v2881 = vadd.f32 %v2736, %v2880
  %2882 = vdwg.mxu0
  %v2883 = vadd.f32 %v2808, %v2311
  %v2884 = vadd.f32 %v2810, %v2312
  %v2885 = vadd.f32 %v2879, %v2313
  %v2886 = vadd.f32 %v2881, %v2314
  %v2887 = vmax.f32 %v2883, 0.0
  %v2888 = vmax.f32 %v2884, 0.0
  %v2889 = vmax.f32 %v2885, 0.0
  %v2890 = vmax.f32 %v2886, 0.0
  %2891 = vrot.lane.b32.xlu0 %v2887, 17
  %v2892 = vpop.permute.xlu0 %2891
  %2893 = vrot.lane.b32.xlu0 %v2888, 17
  %v2894 = vpop.permute.xlu0 %2893
  %2895 = vrot.lane.b32.xlu0 %v2889, 17
  %v2896 = vpop.permute.xlu0 %2895
  %2897 = vrot.lane.b32.xlu0 %v2890, 17
  %v2898 = vpop.permute.xlu0 %2897
  %v2899 = vsel %vm1084, %v2896, %v2898
  %v2900 = vsel %vm1084, %v2894, %v2896
  %v2901 = vsel %vm1084, %v2892, %v2894
  %v2902 = vsel %vm1084, %v2898, %v2892
  %v2903 = vsel %vm1113, %v2902, 0.0
  %v2904 = vsel %vm1114, %v2901, 0.0
  %v2905 = vsel %vm1115, %v2900, 0.0
  %v2906 = vsel %vm1116, %v2899, 0.0
  %2907 = vrot.lane.b32.xlu0 %v2887, 16
  %v2908 = vpop.permute.xlu0 %2907
  %2909 = vrot.lane.b32.xlu0 %v2888, 16
  %v2910 = vpop.permute.xlu0 %2909
  %2911 = vrot.lane.b32.xlu0 %v2889, 16
  %v2912 = vpop.permute.xlu0 %2911
  %2913 = vrot.lane.b32.xlu0 %v2890, 16
  %v2914 = vpop.permute.xlu0 %2913
  %v2915 = vsel %vm1067, %v2912, %v2914
  %v2916 = vsel %vm1067, %v2910, %v2912
  %v2917 = vsel %vm1067, %v2908, %v2910
  %v2918 = vsel %vm1067, %v2914, %v2908
  %v2919 = vsel %vm1137, %v2918, 0.0
  %v2920 = vsel %vm1138, %v2917, 0.0
  %v2921 = vsel %vm1139, %v2916, 0.0
  %v2922 = vsel %vm1140, %v2915, 0.0
  %2923 = vrot.lane.b32.xlu0 %v2887, 15
  %v2924 = vpop.permute.xlu0 %2923
  %2925 = vrot.lane.b32.xlu0 %v2888, 15
  %v2926 = vpop.permute.xlu0 %2925
  %2927 = vrot.lane.b32.xlu0 %v2889, 15
  %v2928 = vpop.permute.xlu0 %2927
  %2929 = vrot.lane.b32.xlu0 %v2890, 15
  %v2930 = vpop.permute.xlu0 %2929
  %v2931 = vsel %vm1153, %v2928, %v2930
  %v2932 = vsel %vm1153, %v2926, %v2928
  %v2933 = vsel %vm1153, %v2924, %v2926
  %v2934 = vsel %vm1153, %v2930, %v2924
  %v2935 = vsel %vm1162, %v2934, 0.0
  %v2936 = vsel %vm1163, %v2933, 0.0
  %v2937 = vsel %vm1164, %v2932, 0.0
  %v2938 = vsel %vm1165, %v2931, 0.0
  %2939 = vrot.lane.b32.xlu0 %v2887, 1
  %v2940 = vpop.permute.xlu0 %2939
  %2941 = vrot.lane.b32.xlu0 %v2888, 1
  %v2942 = vpop.permute.xlu0 %2941
  %2943 = vrot.lane.b32.xlu0 %v2889, 1
  %v2944 = vpop.permute.xlu0 %2943
  %2945 = vrot.lane.b32.xlu0 %v2890, 1
  %v2946 = vpop.permute.xlu0 %2945
  %v2947 = vsel %vm1050, %v2944, %v2946
  %v2948 = vsel %vm1050, %v2942, %v2944
  %v2949 = vsel %vm1050, %v2940, %v2942
  %v2950 = vsel %vm1050, %v2946, %v2940
  %v2951 = vsel %vm1186, %v2950, 0.0
  %v2952 = vsel %vm1187, %v2949, 0.0
  %v2953 = vsel %vm1188, %v2948, 0.0
  %v2954 = vsel %vm1189, %v2947, 0.0
  %2955 = vrot.lane.b32.xlu0 %v2887, 127
  %v2956 = vpop.permute.xlu0 %2955
  %2957 = vrot.lane.b32.xlu0 %v2888, 127
  %v2958 = vpop.permute.xlu0 %2957
  %2959 = vrot.lane.b32.xlu0 %v2889, 127
  %v2960 = vpop.permute.xlu0 %2959
  %2961 = vrot.lane.b32.xlu0 %v2890, 127
  %v2962 = vpop.permute.xlu0 %2961
  %v2963 = vsel %vm332, %v2960, %v2962
  %v2964 = vsel %vm332, %v2958, %v2960
  %v2965 = vsel %vm332, %v2956, %v2958
  %v2966 = vsel %vm332, %v2962, %v2956
  %v2967 = vsel %vm1210, %v2965, 0.0
  %v2968 = vsel %vm1211, %v2964, 0.0
  %v2969 = vsel %vm1212, %v2963, 0.0
  %v2970 = vsel %vm1213, %v2966, 0.0
  %2971 = vrot.lane.b32.xlu0 %v2887, 113
  %v2972 = vpop.permute.xlu0 %2971
  %2973 = vrot.lane.b32.xlu0 %v2888, 113
  %v2974 = vpop.permute.xlu0 %2973
  %2975 = vrot.lane.b32.xlu0 %v2889, 113
  %v2976 = vpop.permute.xlu0 %2975
  %2977 = vrot.lane.b32.xlu0 %v2890, 113
  %v2978 = vpop.permute.xlu0 %2977
  %v2979 = vsel %vm1226, %v2976, %v2978
  %v2980 = vsel %vm1226, %v2974, %v2976
  %v2981 = vsel %vm1226, %v2972, %v2974
  %v2982 = vsel %vm1226, %v2978, %v2972
  %v2983 = vsel %vm1235, %v2981, 0.0
  %v2984 = vsel %vm1236, %v2980, 0.0
  %v2985 = vsel %vm1237, %v2979, 0.0
  %v2986 = vsel %vm1238, %v2982, 0.0
  %2987 = vrot.lane.b32.xlu0 %v2887, 112
  %v2988 = vpop.permute.xlu0 %2987
  %2989 = vrot.lane.b32.xlu0 %v2888, 112
  %v2990 = vpop.permute.xlu0 %2989
  %2991 = vrot.lane.b32.xlu0 %v2889, 112
  %v2992 = vpop.permute.xlu0 %2991
  %2993 = vrot.lane.b32.xlu0 %v2890, 112
  %v2994 = vpop.permute.xlu0 %2993
  %v2995 = vsel %vm349, %v2992, %v2994
  %v2996 = vsel %vm349, %v2990, %v2992
  %v2997 = vsel %vm349, %v2988, %v2990
  %v2998 = vsel %vm349, %v2994, %v2988
  %v2999 = vsel %vm1259, %v2997, 0.0
  %v3000 = vsel %vm1260, %v2996, 0.0
  %v3001 = vsel %vm1261, %v2995, 0.0
  %v3002 = vsel %vm1262, %v2998, 0.0
  %3003 = vrot.lane.b32.xlu0 %v2887, 111
  %v3004 = vpop.permute.xlu0 %3003
  %3005 = vrot.lane.b32.xlu0 %v2888, 111
  %v3006 = vpop.permute.xlu0 %3005
  %3007 = vrot.lane.b32.xlu0 %v2889, 111
  %v3008 = vpop.permute.xlu0 %3007
  %3009 = vrot.lane.b32.xlu0 %v2890, 111
  %v3010 = vpop.permute.xlu0 %3009
  %v3011 = vsel %vm366, %v3008, %v3010
  %v3012 = vsel %vm366, %v3006, %v3008
  %v3013 = vsel %vm366, %v3004, %v3006
  %v3014 = vsel %vm366, %v3010, %v3004
  %v3015 = vsel %vm1283, %v3013, 0.0
  %v3016 = vsel %vm1284, %v3012, 0.0
  %v3017 = vsel %vm1285, %v3011, 0.0
  %v3018 = vsel %vm1286, %v3014, 0.0
  %s3019 = scalar_lea.vmem %s0, 64
  %v3020 = vld [vmem:[%s3019] sm:$0xff]
  %s3021 = scalar_lea.vmem %s1, 64
  %v3022 = vld [vmem:[%s3021] sm:$0xff]
  %3024 = vset.pattern.permute.xlu0 0
  %3025 = vperm.xlu0 %3024, %v3022
  %v3026 = vpop.permute.xlu0 %3025
  %v3029 = vsel %vm598, %v3020, 0
  %3031 = vmatprep.subr.mxu0 %v2904
  %3032 = vmatpush1.msra.mxu0 %v2903
  %3033 = vmatprep.subr.mxu0 %v2920
  %3034 = vmatpush1.msra.mxu0 %v2919
  %3035 = vmatprep.subr.mxu0 %v2936
  %3036 = vmatpush1.msra.mxu0 %v2935
  %3037 = vmatprep.subr.mxu0 %v2952
  %3038 = vmatpush1.msra.mxu0 %v2951
  %3039 = vmatprep.subr.mxu0 %v2888
  %3040 = vmatpush1.msra.mxu0 %v2887
  %3041 = vmatprep.subr.mxu0 %v2968
  %3042 = vmatpush1.msra.mxu0 %v2967
  %3043 = vmatprep.subr.mxu0 %v2984
  %3044 = vmatpush1.msra.mxu0 %v2983
  %3045 = vmatprep.subr.mxu0 %v3000
  %3046 = vmatpush1.msra.mxu0 %v2999
  %3047 = vmatprep.subr.mxu0 %v3016
  %3048 = vmatpush1.msra.mxu0 %v3015
  %3049 = vmatprep.subr.mxu0 0.0
  %3050 = vmatpush1.msra.mxu0 0.0
  %3051 = vmatprep.subr.mxu0 0.0
  %3052 = vmatpush1.msra.mxu0 0.0
  %3053 = vmatprep.subr.mxu0 0.0
  %3054 = vmatpush1.msra.mxu0 0.0
  %3055 = vmatprep.subr.mxu0 0.0
  %3056 = vmatpush1.msra.mxu0 0.0
  %3057 = vmatprep.subr.mxu0 0.0
  %3058 = vmatpush1.msra.mxu0 0.0
  %3059 = vmatprep.subr.mxu0 0.0
  %3060 = vmatpush1.msra.mxu0 0.0
  %3061 = vmatprep.subr.mxu0 0.0
  %3062 = vmatpush1.msra.mxu0 0.0
  %3063 = vmatprep.subr.mxu0 0.0
  %3064 = vmatpush1.msra.mxu0 0.0
  %3065 = vmatprep.subr.mxu0 0.0
  %3066 = vmatpush1.msra.mxu0 0.0
  %3067 = vmatprep.subr.mxu0 0.0
  %3068 = vmatpush1.msra.mxu0 0.0
  %3069 = vmatprep.subr.mxu0 0.0
  %3070 = vmatpush1.msra.mxu0 0.0
  %3071 = vmatprep.subr.mxu0 0.0
  %3072 = vmatpush1.msra.mxu0 0.0
  %3073 = vmatprep.subr.mxu0 0.0
  %3074 = vmatpush1.msra.mxu0 0.0
  %3075 = vmatprep.subr.mxu0 0.0
  %3076 = vmatpush1.msra.mxu0 0.0
  %3077 = vmatprep.subr.mxu0 0.0
  %3078 = vmatpush1.msra.mxu0 0.0
  %3079 = vmatprep.subr.mxu0 0.0
  %3080 = vmatpush1.msra.mxu0 0.0
  %3081 = vmatprep.subr.mxu0 0.0
  %3082 = vmatpush1.msra.mxu0 0.0
  %3083 = vmatprep.subr.mxu0 0.0
  %3084 = vmatpush1.msra.mxu0 0.0
  %3085 = vmatprep.subr.mxu0 0.0
  %3086 = vmatpush1.msra.mxu0 0.0
  %3087 = vmatprep.subr.mxu0 0.0
  %3088 = vmatpush1.msra.mxu0 0.0
  %3089 = vmatprep.subr.mxu0 0.0
  %3090 = vmatpush1.msra.mxu0 0.0
  %3091 = vmatprep.subr.mxu0 0.0
  %3092 = vmatpush1.msra.mxu0 0.0
  %3093 = vmatprep.subr.mxu0 0.0
  %3094 = vmatpush1.msra.mxu0 0.0
  %3095 = vmatprep.mubr.f32.mxu0 0.0
  %3096 = vmatmul.mubr.f32.gmra.mrb[0].mxu0 %v3029
  %v3097 = vpop.f32.mrb[0].mxu0
  %v3098 = vadd.f32 %v3026, %v3097
  %v3099 = vpop.f32.mrb[0].mxu0
  %v3100 = vadd.f32 %v3026, %v3099
  %3101 = vdwg.mxu0
  %3102 = vmatprep.subr.mxu0 %v2906
  %3103 = vmatpush1.msra.mxu0 %v2905
  %3104 = vmatprep.subr.mxu0 %v2922
  %3105 = vmatpush1.msra.mxu0 %v2921
  %3106 = vmatprep.subr.mxu0 %v2938
  %3107 = vmatpush1.msra.mxu0 %v2937
  %3108 = vmatprep.subr.mxu0 %v2954
  %3109 = vmatpush1.msra.mxu0 %v2953
  %3110 = vmatprep.subr.mxu0 %v2890
  %3111 = vmatpush1.msra.mxu0 %v2889
  %3112 = vmatprep.subr.mxu0 %v2970
  %3113 = vmatpush1.msra.mxu0 %v2969
  %3114 = vmatprep.subr.mxu0 %v2986
  %3115 = vmatpush1.msra.mxu0 %v2985
  %3116 = vmatprep.subr.mxu0 %v3002
  %3117 = vmatpush1.msra.mxu0 %v3001
  %3118 = vmatprep.subr.mxu0 %v3018
  %3119 = vmatpush1.msra.mxu0 %v3017
  %3120 = vmatprep.subr.mxu0 0.0
  %3121 = vmatpush1.msra.mxu0 0.0
  %3122 = vmatprep.subr.mxu0 0.0
  %3123 = vmatpush1.msra.mxu0 0.0
  %3124 = vmatprep.subr.mxu0 0.0
  %3125 = vmatpush1.msra.mxu0 0.0
  %3126 = vmatprep.subr.mxu0 0.0
  %3127 = vmatpush1.msra.mxu0 0.0
  %3128 = vmatprep.subr.mxu0 0.0
  %3129 = vmatpush1.msra.mxu0 0.0
  %3130 = vmatprep.subr.mxu0 0.0
  %3131 = vmatpush1.msra.mxu0 0.0
  %3132 = vmatprep.subr.mxu0 0.0
  %3133 = vmatpush1.msra.mxu0 0.0
  %3134 = vmatprep.subr.mxu0 0.0
  %3135 = vmatpush1.msra.mxu0 0.0
  %3136 = vmatprep.subr.mxu0 0.0
  %3137 = vmatpush1.msra.mxu0 0.0
  %3138 = vmatprep.subr.mxu0 0.0
  %3139 = vmatpush1.msra.mxu0 0.0
  %3140 = vmatprep.subr.mxu0 0.0
  %3141 = vmatpush1.msra.mxu0 0.0
  %3142 = vmatprep.subr.mxu0 0.0
  %3143 = vmatpush1.msra.mxu0 0.0
  %3144 = vmatprep.subr.mxu0 0.0
  %3145 = vmatpush1.msra.mxu0 0.0
  %3146 = vmatprep.subr.mxu0 0.0
  %3147 = vmatpush1.msra.mxu0 0.0
  %3148 = vmatprep.subr.mxu0 0.0
  %3149 = vmatpush1.msra.mxu0 0.0
  %3150 = vmatprep.subr.mxu0 0.0
  %3151 = vmatpush1.msra.mxu0 0.0
  %3152 = vmatprep.subr.mxu0 0.0
  %3153 = vmatpush1.msra.mxu0 0.0
  %3154 = vmatprep.subr.mxu0 0.0
  %3155 = vmatpush1.msra.mxu0 0.0
  %3156 = vmatprep.subr.mxu0 0.0
  %3157 = vmatpush1.msra.mxu0 0.0
  %3158 = vmatprep.subr.mxu0 0.0
  %3159 = vmatpush1.msra.mxu0 0.0
  %3160 = vmatprep.subr.mxu0 0.0
  %3161 = vmatpush1.msra.mxu0 0.0
  %3162 = vmatprep.subr.mxu0 0.0
  %3163 = vmatpush1.msra.mxu0 0.0
  %3164 = vmatprep.subr.mxu0 0.0
  %3165 = vmatpush1.msra.mxu0 0.0
  %3166 = vmatprep.mubr.f32.mxu0 0.0
  %3167 = vmatmul.mubr.f32.gmra.mrb[0].mxu0 %v3029
  %v3168 = vpop.f32.mrb[0].mxu0
  %v3169 = vadd.f32 %v3026, %v3168
  %v3170 = vpop.f32.mrb[0].mxu0
  %v3171 = vadd.f32 %v3026, %v3170
  %3172 = vdwg.mxu0
  %v3173 = vmax.f32 %v3098, 0.0
  %v3174 = vmax.f32 %v3100, 0.0
  %v3175 = vmax.f32 %v3169, 0.0
  %v3176 = vmax.f32 %v3171, 0.0
  %3177 = vrot.lane.b32.xlu0 %v3173, 17
  %v3178 = vpop.permute.xlu0 %3177
  %3179 = vrot.lane.b32.xlu0 %v3174, 17
  %v3180 = vpop.permute.xlu0 %3179
  %3181 = vrot.lane.b32.xlu0 %v3175, 17
  %v3182 = vpop.permute.xlu0 %3181
  %3183 = vrot.lane.b32.xlu0 %v3176, 17
  %v3184 = vpop.permute.xlu0 %3183
  %v3185 = vsel %vm1084, %v3182, %v3184
  %v3186 = vsel %vm1084, %v3180, %v3182
  %v3187 = vsel %vm1084, %v3178, %v3180
  %v3188 = vsel %vm1084, %v3184, %v3178
  %v3189 = vsel %vm1113, %v3188, 0.0
  %v3190 = vsel %vm1114, %v3187, 0.0
  %v3191 = vsel %vm1115, %v3186, 0.0
  %v3192 = vsel %vm1116, %v3185, 0.0
  %3193 = vrot.lane.b32.xlu0 %v3173, 16
  %v3194 = vpop.permute.xlu0 %3193
  %3195 = vrot.lane.b32.xlu0 %v3174, 16
  %v3196 = vpop.permute.xlu0 %3195
  %3197 = vrot.lane.b32.xlu0 %v3175, 16
  %v3198 = vpop.permute.xlu0 %3197
  %3199 = vrot.lane.b32.xlu0 %v3176, 16
  %v3200 = vpop.permute.xlu0 %3199
  %v3201 = vsel %vm1067, %v3198, %v3200
  %v3202 = vsel %vm1067, %v3196, %v3198
  %v3203 = vsel %vm1067, %v3194, %v3196
  %v3204 = vsel %vm1067, %v3200, %v3194
  %v3205 = vsel %vm1137, %v3204, 0.0
  %v3206 = vsel %vm1138, %v3203, 0.0
  %v3207 = vsel %vm1139, %v3202, 0.0
  %v3208 = vsel %vm1140, %v3201, 0.0
  %3209 = vrot.lane.b32.xlu0 %v3173, 15
  %v3210 = vpop.permute.xlu0 %3209
  %3211 = vrot.lane.b32.xlu0 %v3174, 15
  %v3212 = vpop.permute.xlu0 %3211
  %3213 = vrot.lane.b32.xlu0 %v3175, 15
  %v3214 = vpop.permute.xlu0 %3213
  %3215 = vrot.lane.b32.xlu0 %v3176, 15
  %v3216 = vpop.permute.xlu0 %3215
  %v3217 = vsel %vm1153, %v3214, %v3216
  %v3218 = vsel %vm1153, %v3212, %v3214
  %v3219 = vsel %vm1153, %v3210, %v3212
  %v3220 = vsel %vm1153, %v3216, %v3210
  %v3221 = vsel %vm1162, %v3220, 0.0
  %v3222 = vsel %vm1163, %v3219, 0.0
  %v3223 = vsel %vm1164, %v3218, 0.0
  %v3224 = vsel %vm1165, %v3217, 0.0
  %3225 = vrot.lane.b32.xlu0 %v3173, 1
  %v3226 = vpop.permute.xlu0 %3225
  %3227 = vrot.lane.b32.xlu0 %v3174, 1
  %v3228 = vpop.permute.xlu0 %3227
  %3229 = vrot.lane.b32.xlu0 %v3175, 1
  %v3230 = vpop.permute.xlu0 %3229
  %3231 = vrot.lane.b32.xlu0 %v3176, 1
  %v3232 = vpop.permute.xlu0 %3231
  %v3233 = vsel %vm1050, %v3230, %v3232
  %v3234 = vsel %vm1050, %v3228, %v3230
  %v3235 = vsel %vm1050, %v3226, %v3228
  %v3236 = vsel %vm1050, %v3232, %v3226
  %v3237 = vsel %vm1186, %v3236, 0.0
  %v3238 = vsel %vm1187, %v3235, 0.0
  %v3239 = vsel %vm1188, %v3234, 0.0
  %v3240 = vsel %vm1189, %v3233, 0.0
  %3241 = vrot.lane.b32.xlu0 %v3173, 127
  %v3242 = vpop.permute.xlu0 %3241
  %3243 = vrot.lane.b32.xlu0 %v3174, 127
  %v3244 = vpop.permute.xlu0 %3243
  %3245 = vrot.lane.b32.xlu0 %v3175, 127
  %v3246 = vpop.permute.xlu0 %3245
  %3247 = vrot.lane.b32.xlu0 %v3176, 127
  %v3248 = vpop.permute.xlu0 %3247
  %v3249 = vsel %vm332, %v3246, %v3248
  %v3250 = vsel %vm332, %v3244, %v3246
  %v3251 = vsel %vm332, %v3242, %v3244
  %v3252 = vsel %vm332, %v3248, %v3242
  %v3253 = vsel %vm1210, %v3251, 0.0
  %v3254 = vsel %vm1211, %v3250, 0.0
  %v3255 = vsel %vm1212, %v3249, 0.0
  %v3256 = vsel %vm1213, %v3252, 0.0
  %3257 = vrot.lane.b32.xlu0 %v3173, 113
  %v3258 = vpop.permute.xlu0 %3257
  %3259 = vrot.lane.b32.xlu0 %v3174, 113
  %v3260 = vpop.permute.xlu0 %3259
  %3261 = vrot.lane.b32.xlu0 %v3175, 113
  %v3262 = vpop.permute.xlu0 %3261
  %3263 = vrot.lane.b32.xlu0 %v3176, 113
  %v3264 = vpop.permute.xlu0 %3263
  %v3265 = vsel %vm1226, %v3262, %v3264
  %v3266 = vsel %vm1226, %v3260, %v3262
  %v3267 = vsel %vm1226, %v3258, %v3260
  %v3268 = vsel %vm1226, %v3264, %v3258
  %v3269 = vsel %vm1235, %v3267, 0.0
  %v3270 = vsel %vm1236, %v3266, 0.0
  %v3271 = vsel %vm1237, %v3265, 0.0
  %v3272 = vsel %vm1238, %v3268, 0.0
  %3273 = vrot.lane.b32.xlu0 %v3173, 112
  %v3274 = vpop.permute.xlu0 %3273
  %3275 = vrot.lane.b32.xlu0 %v3174, 112
  %v3276 = vpop.permute.xlu0 %3275
  %3277 = vrot.lane.b32.xlu0 %v3175, 112
  %v3278 = vpop.permute.xlu0 %3277
  %3279 = vrot.lane.b32.xlu0 %v3176, 112
  %v3280 = vpop.permute.xlu0 %3279
  %v3281 = vsel %vm349, %v3278, %v3280
  %v3282 = vsel %vm349, %v3276, %v3278
  %v3283 = vsel %vm349, %v3274, %v3276
  %v3284 = vsel %vm349, %v3280, %v3274
  %v3285 = vsel %vm1259, %v3283, 0.0
  %v3286 = vsel %vm1260, %v3282, 0.0
  %v3287 = vsel %vm1261, %v3281, 0.0
  %v3288 = vsel %vm1262, %v3284, 0.0
  %3289 = vrot.lane.b32.xlu0 %v3173, 111
  %v3290 = vpop.permute.xlu0 %3289
  %3291 = vrot.lane.b32.xlu0 %v3174, 111
  %v3292 = vpop.permute.xlu0 %3291
  %3293 = vrot.lane.b32.xlu0 %v3175, 111
  %v3294 = vpop.permute.xlu0 %3293
  %3295 = vrot.lane.b32.xlu0 %v3176, 111
  %v3296 = vpop.permute.xlu0 %3295
  %v3297 = vsel %vm366, %v3294, %v3296
  %v3298 = vsel %vm366, %v3292, %v3294
  %v3299 = vsel %vm366, %v3290, %v3292
  %v3300 = vsel %vm366, %v3296, %v3290
  %v3301 = vsel %vm1283, %v3299, 0.0
  %v3302 = vsel %vm1284, %v3298, 0.0
  %v3303 = vsel %vm1285, %v3297, 0.0
  %v3304 = vsel %vm1286, %v3300, 0.0
  %s3305 = scalar_lea.vmem %s0, 72
  %v3306 = vld [vmem:[%s3305] sm:$0xff]
  %s3307 = scalar_lea.vmem %s1, 72
  %v3308 = vld [vmem:[%s3307] sm:$0xff]
  %3310 = vset.pattern.permute.xlu0 0
  %3311 = vperm.xlu0 %3310, %v3308
  %v3312 = vpop.permute.xlu0 %3311
  %v3315 = vsel %vm598, %v3306, 0
  %3317 = vmatprep.subr.mxu0 %v3190
  %3318 = vmatpush1.msra.mxu0 %v3189
  %3319 = vmatprep.subr.mxu0 %v3206
  %3320 = vmatpush1.msra.mxu0 %v3205
  %3321 = vmatprep.subr.mxu0 %v3222
  %3322 = vmatpush1.msra.mxu0 %v3221
  %3323 = vmatprep.subr.mxu0 %v3238
  %3324 = vmatpush1.msra.mxu0 %v3237
  %3325 = vmatprep.subr.mxu0 %v3174
  %3326 = vmatpush1.msra.mxu0 %v3173
  %3327 = vmatprep.subr.mxu0 %v3254
  %3328 = vmatpush1.msra.mxu0 %v3253
  %3329 = vmatprep.subr.mxu0 %v3270
  %3330 = vmatpush1.msra.mxu0 %v3269
  %3331 = vmatprep.subr.mxu0 %v3286
  %3332 = vmatpush1.msra.mxu0 %v3285
  %3333 = vmatprep.subr.mxu0 %v3302
  %3334 = vmatpush1.msra.mxu0 %v3301
  %3335 = vmatprep.subr.mxu0 0.0
  %3336 = vmatpush1.msra.mxu0 0.0
  %3337 = vmatprep.subr.mxu0 0.0
  %3338 = vmatpush1.msra.mxu0 0.0
  %3339 = vmatprep.subr.mxu0 0.0
  %3340 = vmatpush1.msra.mxu0 0.0
  %3341 = vmatprep.subr.mxu0 0.0
  %3342 = vmatpush1.msra.mxu0 0.0
  %3343 = vmatprep.subr.mxu0 0.0
  %3344 = vmatpush1.msra.mxu0 0.0
  %3345 = vmatprep.subr.mxu0 0.0
  %3346 = vmatpush1.msra.mxu0 0.0
  %3347 = vmatprep.subr.mxu0 0.0
  %3348 = vmatpush1.msra.mxu0 0.0
  %3349 = vmatprep.subr.mxu0 0.0
  %3350 = vmatpush1.msra.mxu0 0.0
  %3351 = vmatprep.subr.mxu0 0.0
  %3352 = vmatpush1.msra.mxu0 0.0
  %3353 = vmatprep.subr.mxu0 0.0
  %3354 = vmatpush1.msra.mxu0 0.0
  %3355 = vmatprep.subr.mxu0 0.0
  %3356 = vmatpush1.msra.mxu0 0.0
  %3357 = vmatprep.subr.mxu0 0.0
  %3358 = vmatpush1.msra.mxu0 0.0
  %3359 = vmatprep.subr.mxu0 0.0
  %3360 = vmatpush1.msra.mxu0 0.0
  %3361 = vmatprep.subr.mxu0 0.0
  %3362 = vmatpush1.msra.mxu0 0.0
  %3363 = vmatprep.subr.mxu0 0.0
  %3364 = vmatpush1.msra.mxu0 0.0
  %3365 = vmatprep.subr.mxu0 0.0
  %3366 = vmatpush1.msra.mxu0 0.0
  %3367 = vmatprep.subr.mxu0 0.0
  %3368 = vmatpush1.msra.mxu0 0.0
  %3369 = vmatprep.subr.mxu0 0.0
  %3370 = vmatpush1.msra.mxu0 0.0
  %3371 = vmatprep.subr.mxu0 0.0
  %3372 = vmatpush1.msra.mxu0 0.0
  %3373 = vmatprep.subr.mxu0 0.0
  %3374 = vmatpush1.msra.mxu0 0.0
  %3375 = vmatprep.subr.mxu0 0.0
  %3376 = vmatpush1.msra.mxu0 0.0
  %3377 = vmatprep.subr.mxu0 0.0
  %3378 = vmatpush1.msra.mxu0 0.0
  %3379 = vmatprep.subr.mxu0 0.0
  %3380 = vmatpush1.msra.mxu0 0.0
  %3381 = vmatprep.mubr.f32.mxu0 0.0
  %3382 = vmatmul.mubr.f32.gmra.mrb[0].mxu0 %v3315
  %v3383 = vpop.f32.mrb[0].mxu0
  %v3384 = vadd.f32 %v3312, %v3383
  %v3385 = vpop.f32.mrb[0].mxu0
  %v3386 = vadd.f32 %v3312, %v3385
  %3387 = vdwg.mxu0
  %3388 = vmatprep.subr.mxu0 %v3192
  %3389 = vmatpush1.msra.mxu0 %v3191
  %3390 = vmatprep.subr.mxu0 %v3208
  %3391 = vmatpush1.msra.mxu0 %v3207
  %3392 = vmatprep.subr.mxu0 %v3224
  %3393 = vmatpush1.msra.mxu0 %v3223
  %3394 = vmatprep.subr.mxu0 %v3240
  %3395 = vmatpush1.msra.mxu0 %v3239
  %3396 = vmatprep.subr.mxu0 %v3176
  %3397 = vmatpush1.msra.mxu0 %v3175
  %3398 = vmatprep.subr.mxu0 %v3256
  %3399 = vmatpush1.msra.mxu0 %v3255
  %3400 = vmatprep.subr.mxu0 %v3272
  %3401 = vmatpush1.msra.mxu0 %v3271
  %3402 = vmatprep.subr.mxu0 %v3288
  %3403 = vmatpush1.msra.mxu0 %v3287
  %3404 = vmatprep.subr.mxu0 %v3304
  %3405 = vmatpush1.msra.mxu0 %v3303
  %3406 = vmatprep.subr.mxu0 0.0
  %3407 = vmatpush1.msra.mxu0 0.0
  %3408 = vmatprep.subr.mxu0 0.0
  %3409 = vmatpush1.msra.mxu0 0.0
  %3410 = vmatprep.subr.mxu0 0.0
  %3411 = vmatpush1.msra.mxu0 0.0
  %3412 = vmatprep.subr.mxu0 0.0
  %3413 = vmatpush1.msra.mxu0 0.0
  %3414 = vmatprep.subr.mxu0 0.0
  %3415 = vmatpush1.msra.mxu0 0.0
  %3416 = vmatprep.subr.mxu0 0.0
  %3417 = vmatpush1.msra.mxu0 0.0
  %3418 = vmatprep.subr.mxu0 0.0
  %3419 = vmatpush1.msra.mxu0 0.0
  %3420 = vmatprep.subr.mxu0 0.0
  %3421 = vmatpush1.msra.mxu0 0.0
  %3422 = vmatprep.subr.mxu0 0.0
  %3423 = vmatpush1.msra.mxu0 0.0
  %3424 = vmatprep.subr.mxu0 0.0
  %3425 = vmatpush1.msra.mxu0 0.0
  %3426 = vmatprep.subr.mxu0 0.0
  %3427 = vmatpush1.msra.mxu0 0.0
  %3428 = vmatprep.subr.mxu0 0.0
  %3429 = vmatpush1.msra.mxu0 0.0
  %3430 = vmatprep.subr.mxu0 0.0
  %3431 = vmatpush1.msra.mxu0 0.0
  %3432 = vmatprep.subr.mxu0 0.0
  %3433 = vmatpush1.msra.mxu0 0.0
  %3434 = vmatprep.subr.mxu0 0.0
  %3435 = vmatpush1.msra.mxu0 0.0
  %3436 = vmatprep.subr.mxu0 0.0
  %3437 = vmatpush1.msra.mxu0 0.0
  %3438 = vmatprep.subr.mxu0 0.0
  %3439 = vmatpush1.msra.mxu0 0.0
  %3440 = vmatprep.subr.mxu0 0.0
  %3441 = vmatpush1.msra.mxu0 0.0
  %3442 = vmatprep.subr.mxu0 0.0
  %3443 = vmatpush1.msra.mxu0 0.0
  %3444 = vmatprep.subr.mxu0 0.0
  %3445 = vmatpush1.msra.mxu0 0.0
  %3446 = vmatprep.subr.mxu0 0.0
  %3447 = vmatpush1.msra.mxu0 0.0
  %3448 = vmatprep.subr.mxu0 0.0
  %3449 = vmatpush1.msra.mxu0 0.0
  %3450 = vmatprep.subr.mxu0 0.0
  %3451 = vmatpush1.msra.mxu0 0.0
  %3452 = vmatprep.mubr.f32.mxu0 0.0
  %3453 = vmatmul.mubr.f32.gmra.mrb[0].mxu0 %v3315
  %v3454 = vpop.f32.mrb[0].mxu0
  %v3455 = vadd.f32 %v3312, %v3454
  %v3456 = vpop.f32.mrb[0].mxu0
  %v3457 = vadd.f32 %v3312, %v3456
  %3458 = vdwg.mxu0
  %v3459 = vadd.f32 %v3384, %v2887
  %v3460 = vadd.f32 %v3386, %v2888
  %v3461 = vadd.f32 %v3455, %v2889
  %v3462 = vadd.f32 %v3457, %v2890
  %v3463 = vmax.f32 %v3459, 0.0
  %v3464 = vmax.f32 %v3460, 0.0
  %v3465 = vmax.f32 %v3461, 0.0
  %v3466 = vmax.f32 %v3462, 0.0
  %3467 = vrot.lane.b32.xlu0 %v3463, 17
  %v3468 = vpop.permute.xlu0 %3467
  %3469 = vrot.lane.b32.xlu0 %v3464, 17
  %v3470 = vpop.permute.xlu0 %3469
  %3471 = vrot.lane.b32.xlu0 %v3465, 17
  %v3472 = vpop.permute.xlu0 %3471
  %3473 = vrot.lane.b32.xlu0 %v3466, 17
  %v3474 = vpop.permute.xlu0 %3473
  %v3475 = vsel %vm1084, %v3472, %v3474
  %v3476 = vsel %vm1084, %v3470, %v3472
  %v3477 = vsel %vm1084, %v3468, %v3470
  %v3478 = vsel %vm1084, %v3474, %v3468
  %v3479 = vsel %vm1113, %v3478, 0.0
  %v3480 = vsel %vm1114, %v3477, 0.0
  %v3481 = vsel %vm1115, %v3476, 0.0
  %v3482 = vsel %vm1116, %v3475, 0.0
  %3483 = vrot.lane.b32.xlu0 %v3463, 16
  %v3484 = vpop.permute.xlu0 %3483
  %3485 = vrot.lane.b32.xlu0 %v3464, 16
  %v3486 = vpop.permute.xlu0 %3485
  %3487 = vrot.lane.b32.xlu0 %v3465, 16
  %v3488 = vpop.permute.xlu0 %3487
  %3489 = vrot.lane.b32.xlu0 %v3466, 16
  %v3490 = vpop.permute.xlu0 %3489
  %v3491 = vsel %vm1067, %v3488, %v3490
  %v3492 = vsel %vm1067, %v3486, %v3488
  %v3493 = vsel %vm1067, %v3484, %v3486
  %v3494 = vsel %vm1067, %v3490, %v3484
  %v3495 = vsel %vm1137, %v3494, 0.0
  %v3496 = vsel %vm1138, %v3493, 0.0
  %v3497 = vsel %vm1139, %v3492, 0.0
  %v3498 = vsel %vm1140, %v3491, 0.0
  %3499 = vrot.lane.b32.xlu0 %v3463, 15
  %v3500 = vpop.permute.xlu0 %3499
  %3501 = vrot.lane.b32.xlu0 %v3464, 15
  %v3502 = vpop.permute.xlu0 %3501
  %3503 = vrot.lane.b32.xlu0 %v3465, 15
  %v3504 = vpop.permute.xlu0 %3503
  %3505 = vrot.lane.b32.xlu0 %v3466, 15
  %v3506 = vpop.permute.xlu0 %3505
  %v3507 = vsel %vm1153, %v3504, %v3506
  %v3508 = vsel %vm1153, %v3502, %v3504
  %v3509 = vsel %vm1153, %v3500, %v3502
  %v3510 = vsel %vm1153, %v3506, %v3500
  %v3511 = vsel %vm1162, %v3510, 0.0
  %v3512 = vsel %vm1163, %v3509, 0.0
  %v3513 = vsel %vm1164, %v3508, 0.0
  %v3514 = vsel %vm1165, %v3507, 0.0
  %3515 = vrot.lane.b32.xlu0 %v3463, 1
  %v3516 = vpop.permute.xlu0 %3515
  %3517 = vrot.lane.b32.xlu0 %v3464, 1
  %v3518 = vpop.permute.xlu0 %3517
  %3519 = vrot.lane.b32.xlu0 %v3465, 1
  %v3520 = vpop.permute.xlu0 %3519
  %3521 = vrot.lane.b32.xlu0 %v3466, 1
  %v3522 = vpop.permute.xlu0 %3521
  %v3523 = vsel %vm1050, %v3520, %v3522
  %v3524 = vsel %vm1050, %v3518, %v3520
  %v3525 = vsel %vm1050, %v3516, %v3518
  %v3526 = vsel %vm1050, %v3522, %v3516
  %v3527 = vsel %vm1186, %v3526, 0.0
  %v3528 = vsel %vm1187, %v3525, 0.0
  %v3529 = vsel %vm1188, %v3524, 0.0
  %v3530 = vsel %vm1189, %v3523, 0.0
  %3531 = vrot.lane.b32.xlu0 %v3463, 127
  %v3532 = vpop.permute.xlu0 %3531
  %3533 = vrot.lane.b32.xlu0 %v3464, 127
  %v3534 = vpop.permute.xlu0 %3533
  %3535 = vrot.lane.b32.xlu0 %v3465, 127
  %v3536 = vpop.permute.xlu0 %3535
  %3537 = vrot.lane.b32.xlu0 %v3466, 127
  %v3538 = vpop.permute.xlu0 %3537
  %v3539 = vsel %vm332, %v3536, %v3538
  %v3540 = vsel %vm332, %v3534, %v3536
  %v3541 = vsel %vm332, %v3532, %v3534
  %v3542 = vsel %vm332, %v3538, %v3532
  %v3543 = vsel %vm1210, %v3541, 0.0
  %v3544 = vsel %vm1211, %v3540, 0.0
  %v3545 = vsel %vm1212, %v3539, 0.0
  %v3546 = vsel %vm1213, %v3542, 0.0
  %3547 = vrot.lane.b32.xlu0 %v3463, 113
  %v3548 = vpop.permute.xlu0 %3547
  %3549 = vrot.lane.b32.xlu0 %v3464, 113
  %v3550 = vpop.permute.xlu0 %3549
  %3551 = vrot.lane.b32.xlu0 %v3465, 113
  %v3552 = vpop.permute.xlu0 %3551
  %3553 = vrot.lane.b32.xlu0 %v3466, 113
  %v3554 = vpop.permute.xlu0 %3553
  %v3555 = vsel %vm1226, %v3552, %v3554
  %v3556 = vsel %vm1226, %v3550, %v3552
  %v3557 = vsel %vm1226, %v3548, %v3550
  %v3558 = vsel %vm1226, %v3554, %v3548
  %v3559 = vsel %vm1235, %v3557, 0.0
  %v3560 = vsel %vm1236, %v3556, 0.0
  %v3561 = vsel %vm1237, %v3555, 0.0
  %v3562 = vsel %vm1238, %v3558, 0.0
  %3563 = vrot.lane.b32.xlu0 %v3463, 112
  %v3564 = vpop.permute.xlu0 %3563
  %3565 = vrot.lane.b32.xlu0 %v3464, 112
  %v3566 = vpop.permute.xlu0 %3565
  %3567 = vrot.lane.b32.xlu0 %v3465, 112
  %v3568 = vpop.permute.xlu0 %3567
  %3569 = vrot.lane.b32.xlu0 %v3466, 112
  %v3570 = vpop.permute.xlu0 %3569
  %v3571 = vsel %vm349, %v3568, %v3570
  %v3572 = vsel %vm349, %v3566, %v3568
  %v3573 = vsel %vm349, %v3564, %v3566
  %v3574 = vsel %vm349, %v3570, %v3564
  %v3575 = vsel %vm1259, %v3573, 0.0
  %v3576 = vsel %vm1260, %v3572, 0.0
  %v3577 = vsel %vm1261, %v3571, 0.0
  %v3578 = vsel %vm1262, %v3574, 0.0
  %3579 = vrot.lane.b32.xlu0 %v3463, 111
  %v3580 = vpop.permute.xlu0 %3579
  %3581 = vrot.lane.b32.xlu0 %v3464, 111
  %v3582 = vpop.permute.xlu0 %3581
  %3583 = vrot.lane.b32.xlu0 %v3465, 111
  %v3584 = vpop.permute.xlu0 %3583
  %3585 = vrot.lane.b32.xlu0 %v3466, 111
  %v3586 = vpop.permute.xlu0 %3585
  %v3587 = vsel %vm366, %v3584, %v3586
  %v3588 = vsel %vm366, %v3582, %v3584
  %v3589 = vsel %vm366, %v3580, %v3582
  %v3590 = vsel %vm366, %v3586, %v3580
  %v3591 = vsel %vm1283, %v3589, 0.0
  %v3592 = vsel %vm1284, %v3588, 0.0
  %v3593 = vsel %vm1285, %v3587, 0.0
  %v3594 = vsel %vm1286, %v3590, 0.0
  %s3595 = scalar_lea.vmem %s0, 80
  %v3596 = vld [vmem:[%s3595] sm:$0xff]
  %s3597 = scalar_lea.vmem %s1, 80
  %v3598 = vld [vmem:[%s3597] sm:$0xff]
  %3600 = vset.pattern.permute.xlu0 0
  %3601 = vperm.xlu0 %3600, %v3598
  %v3602 = vpop.permute.xlu0 %3601
  %v3605 = vsel %vm598, %v3596, 0
  %3607 = vmatprep.subr.mxu0 %v3480
  %3608 = vmatpush1.msra.mxu0 %v3479
  %3609 = vmatprep.subr.mxu0 %v3496
  %3610 = vmatpush1.msra.mxu0 %v3495
  %3611 = vmatprep.subr.mxu0 %v3512
  %3612 = vmatpush1.msra.mxu0 %v3511
  %3613 = vmatprep.subr.mxu0 %v3528
  %3614 = vmatpush1.msra.mxu0 %v3527
  %3615 = vmatprep.subr.mxu0 %v3464
  %3616 = vmatpush1.msra.mxu0 %v3463
  %3617 = vmatprep.subr.mxu0 %v3544
  %3618 = vmatpush1.msra.mxu0 %v3543
  %3619 = vmatprep.subr.mxu0 %v3560
  %3620 = vmatpush1.msra.mxu0 %v3559
  %3621 = vmatprep.subr.mxu0 %v3576
  %3622 = vmatpush1.msra.mxu0 %v3575
  %3623 = vmatprep.subr.mxu0 %v3592
  %3624 = vmatpush1.msra.mxu0 %v3591
  %3625 = vmatprep.subr.mxu0 0.0
  %3626 = vmatpush1.msra.mxu0 0.0
  %3627 = vmatprep.subr.mxu0 0.0
  %3628 = vmatpush1.msra.mxu0 0.0
  %3629 = vmatprep.subr.mxu0 0.0
  %3630 = vmatpush1.msra.mxu0 0.0
  %3631 = vmatprep.subr.mxu0 0.0
  %3632 = vmatpush1.msra.mxu0 0.0
  %3633 = vmatprep.subr.mxu0 0.0
  %3634 = vmatpush1.msra.mxu0 0.0
  %3635 = vmatprep.subr.mxu0 0.0
  %3636 = vmatpush1.msra.mxu0 0.0
  %3637 = vmatprep.subr.mxu0 0.0
  %3638 = vmatpush1.msra.mxu0 0.0
  %3639 = vmatprep.subr.mxu0 0.0
  %3640 = vmatpush1.msra.mxu0 0.0
  %3641 = vmatprep.subr.mxu0 0.0
  %3642 = vmatpush1.msra.mxu0 0.0
  %3643 = vmatprep.subr.mxu0 0.0
  %3644 = vmatpush1.msra.mxu0 0.0
  %3645 = vmatprep.subr.mxu0 0.0
  %3646 = vmatpush1.msra.mxu0 0.0
  %3647 = vmatprep.subr.mxu0 0.0
  %3648 = vmatpush1.msra.mxu0 0.0
  %3649 = vmatprep.subr.mxu0 0.0
  %3650 = vmatpush1.msra.mxu0 0.0
  %3651 = vmatprep.subr.mxu0 0.0
  %3652 = vmatpush1.msra.mxu0 0.0
  %3653 = vmatprep.subr.mxu0 0.0
  %3654 = vmatpush1.msra.mxu0 0.0
  %3655 = vmatprep.subr.mxu0 0.0
  %3656 = vmatpush1.msra.mxu0 0.0
  %3657 = vmatprep.subr.mxu0 0.0
  %3658 = vmatpush1.msra.mxu0 0.0
  %3659 = vmatprep.subr.mxu0 0.0
  %3660 = vmatpush1.msra.mxu0 0.0
  %3661 = vmatprep.subr.mxu0 0.0
  %3662 = vmatpush1.msra.mxu0 0.0
  %3663 = vmatprep.subr.mxu0 0.0
  %3664 = vmatpush1.msra.mxu0 0.0
  %3665 = vmatprep.subr.mxu0 0.0
  %3666 = vmatpush1.msra.mxu0 0.0
  %3667 = vmatprep.subr.mxu0 0.0
  %3668 = vmatpush1.msra.mxu0 0.0
  %3669 = vmatprep.subr.mxu0 0.0
  %3670 = vmatpush1.msra.mxu0 0.0
  %3671 = vmatprep.mubr.f32.mxu0 0.0
  %3672 = vmatmul.mubr.f32.gmra.mrb[0].mxu0 %v3605
  %v3673 = vpop.f32.mrb[0].mxu0
  %v3674 = vadd.f32 %v3602, %v3673
  %v3675 = vpop.f32.mrb[0].mxu0
  %v3676 = vadd.f32 %v3602, %v3675
  %3677 = vdwg.mxu0
  %3678 = vmatprep.subr.mxu0 %v3482
  %3679 = vmatpush1.msra.mxu0 %v3481
  %3680 = vmatprep.subr.mxu0 %v3498
  %3681 = vmatpush1.msra.mxu0 %v3497
  %3682 = vmatprep.subr.mxu0 %v3514
  %3683 = vmatpush1.msra.mxu0 %v3513
  %3684 = vmatprep.subr.mxu0 %v3530
  %3685 = vmatpush1.msra.mxu0 %v3529
  %3686 = vmatprep.subr.mxu0 %v3466
  %3687 = vmatpush1.msra.mxu0 %v3465
  %3688 = vmatprep.subr.mxu0 %v3546
  %3689 = vmatpush1.msra.mxu0 %v3545
  %3690 = vmatprep.subr.mxu0 %v3562
  %3691 = vmatpush1.msra.mxu0 %v3561
  %3692 = vmatprep.subr.mxu0 %v3578
  %3693 = vmatpush1.msra.mxu0 %v3577
  %3694 = vmatprep.subr.mxu0 %v3594
  %3695 = vmatpush1.msra.mxu0 %v3593
  %3696 = vmatprep.subr.mxu0 0.0
  %3697 = vmatpush1.msra.mxu0 0.0
  %3698 = vmatprep.subr.mxu0 0.0
  %3699 = vmatpush1.msra.mxu0 0.0
  %3700 = vmatprep.subr.mxu0 0.0
  %3701 = vmatpush1.msra.mxu0 0.0
  %3702 = vmatprep.subr.mxu0 0.0
  %3703 = vmatpush1.msra.mxu0 0.0
  %3704 = vmatprep.subr.mxu0 0.0
  %3705 = vmatpush1.msra.mxu0 0.0
  %3706 = vmatprep.subr.mxu0 0.0
  %3707 = vmatpush1.msra.mxu0 0.0
  %3708 = vmatprep.subr.mxu0 0.0
  %3709 = vmatpush1.msra.mxu0 0.0
  %3710 = vmatprep.subr.mxu0 0.0
  %3711 = vmatpush1.msra.mxu0 0.0
  %3712 = vmatprep.subr.mxu0 0.0
  %3713 = vmatpush1.msra.mxu0 0.0
  %3714 = vmatprep.subr.mxu0 0.0
  %3715 = vmatpush1.msra.mxu0 0.0
  %3716 = vmatprep.subr.mxu0 0.0
  %3717 = vmatpush1.msra.mxu0 0.0
  %3718 = vmatprep.subr.mxu0 0.0
  %3719 = vmatpush1.msra.mxu0 0.0
  %3720 = vmatprep.subr.mxu0 0.0
  %3721 = vmatpush1.msra.mxu0 0.0
  %3722 = vmatprep.subr.mxu0 0.0
  %3723 = vmatpush1.msra.mxu0 0.0
  %3724 = vmatprep.subr.mxu0 0.0
  %3725 = vmatpush1.msra.mxu0 0.0
  %3726 = vmatprep.subr.mxu0 0.0
  %3727 = vmatpush1.msra.mxu0 0.0
  %3728 = vmatprep.subr.mxu0 0.0
  %3729 = vmatpush1.msra.mxu0 0.0
  %3730 = vmatprep.subr.mxu0 0.0
  %3731 = vmatpush1.msra.mxu0 0.0
  %3732 = vmatprep.subr.mxu0 0.0
  %3733 = vmatpush1.msra.mxu0 0.0
  %3734 = vmatprep.subr.mxu0 0.0
  %3735 = vmatpush1.msra.mxu0 0.0
  %3736 = vmatprep.subr.mxu0 0.0
  %3737 = vmatpush1.msra.mxu0 0.0
  %3738 = vmatprep.subr.mxu0 0.0
  %3739 = vmatpush1.msra.mxu0 0.0
  %3740 = vmatprep.subr.mxu0 0.0
  %3741 = vmatpush1.msra.mxu0 0.0
  %3742 = vmatprep.mubr.f32.mxu0 0.0
  %3743 = vmatmul.mubr.f32.gmra.mrb[0].mxu0 %v3605
  %v3744 = vpop.f32.mrb[0].mxu0
  %v3745 = vadd.f32 %v3602, %v3744
  %v3746 = vpop.f32.mrb[0].mxu0
  %v3747 = vadd.f32 %v3602, %v3746
  %3748 = vdwg.mxu0
  %v3749 = vmax.f32 %v3674, 0.0
  %v3750 = vmax.f32 %v3676, 0.0
  %v3751 = vmax.f32 %v3745, 0.0
  %v3752 = vmax.f32 %v3747, 0.0
  %3753 = vrot.lane.b32.xlu0 %v3749, 17
  %v3754 = vpop.permute.xlu0 %3753
  %3755 = vrot.lane.b32.xlu0 %v3750, 17
  %v3756 = vpop.permute.xlu0 %3755
  %3757 = vrot.lane.b32.xlu0 %v3751, 17
  %v3758 = vpop.permute.xlu0 %3757
  %3759 = vrot.lane.b32.xlu0 %v3752, 17
  %v3760 = vpop.permute.xlu0 %3759
  %v3761 = vsel %vm1084, %v3758, %v3760
  %v3762 = vsel %vm1084, %v3756, %v3758
  %v3763 = vsel %vm1084, %v3754, %v3756
  %v3764 = vsel %vm1084, %v3760, %v3754
  %v3765 = vsel %vm1113, %v3764, 0.0
  %v3766 = vsel %vm1114, %v3763, 0.0
  %v3767 = vsel %vm1115, %v3762, 0.0
  %v3768 = vsel %vm1116, %v3761, 0.0
  %3769 = vrot.lane.b32.xlu0 %v3749, 16
  %v3770 = vpop.permute.xlu0 %3769
  %3771 = vrot.lane.b32.xlu0 %v3750, 16
  %v3772 = vpop.permute.xlu0 %3771
  %3773 = vrot.lane.b32.xlu0 %v3751, 16
  %v3774 = vpop.permute.xlu0 %3773
  %3775 = vrot.lane.b32.xlu0 %v3752, 16
  %v3776 = vpop.permute.xlu0 %3775
  %v3777 = vsel %vm1067, %v3774, %v3776
  %v3778 = vsel %vm1067, %v3772, %v3774
  %v3779 = vsel %vm1067, %v3770, %v3772
  %v3780 = vsel %vm1067, %v3776, %v3770
  %v3781 = vsel %vm1137, %v3780, 0.0
  %v3782 = vsel %vm1138, %v3779, 0.0
  %v3783 = vsel %vm1139, %v3778, 0.0
  %v3784 = vsel %vm1140, %v3777, 0.0
  %3785 = vrot.lane.b32.xlu0 %v3749, 15
  %v3786 = vpop.permute.xlu0 %3785
  %3787 = vrot.lane.b32.xlu0 %v3750, 15
  %v3788 = vpop.permute.xlu0 %3787
  %3789 = vrot.lane.b32.xlu0 %v3751, 15
  %v3790 = vpop.permute.xlu0 %3789
  %3791 = vrot.lane.b32.xlu0 %v3752, 15
  %v3792 = vpop.permute.xlu0 %3791
  %v3793 = vsel %vm1153, %v3790, %v3792
  %v3794 = vsel %vm1153, %v3788, %v3790
  %v3795 = vsel %vm1153, %v3786, %v3788
  %v3796 = vsel %vm1153, %v3792, %v3786
  %v3797 = vsel %vm1162, %v3796, 0.0
  %v3798 = vsel %vm1163, %v3795, 0.0
  %v3799 = vsel %vm1164, %v3794, 0.0
  %v3800 = vsel %vm1165, %v3793, 0.0
  %3801 = vrot.lane.b32.xlu0 %v3749, 1
  %v3802 = vpop.permute.xlu0 %3801
  %3803 = vrot.lane.b32.xlu0 %v3750, 1
  %v3804 = vpop.permute.xlu0 %3803
  %3805 = vrot.lane.b32.xlu0 %v3751, 1
  %v3806 = vpop.permute.xlu0 %3805
  %3807 = vrot.lane.b32.xlu0 %v3752, 1
  %v3808 = vpop.permute.xlu0 %3807
  %v3809 = vsel %vm1050, %v3806, %v3808
  %v3810 = vsel %vm1050, %v3804, %v3806
  %v3811 = vsel %vm1050, %v3802, %v3804
  %v3812 = vsel %vm1050, %v3808, %v3802
  %v3813 = vsel %vm1186, %v3812, 0.0
  %v3814 = vsel %vm1187, %v3811, 0.0
  %v3815 = vsel %vm1188, %v3810, 0.0
  %v3816 = vsel %vm1189, %v3809, 0.0
  %3817 = vrot.lane.b32.xlu0 %v3749, 127
  %v3818 = vpop.permute.xlu0 %3817
  %3819 = vrot.lane.b32.xlu0 %v3750, 127
  %v3820 = vpop.permute.xlu0 %3819
  %3821 = vrot.lane.b32.xlu0 %v3751, 127
  %v3822 = vpop.permute.xlu0 %3821
  %3823 = vrot.lane.b32.xlu0 %v3752, 127
  %v3824 = vpop.permute.xlu0 %3823
  %v3825 = vsel %vm332, %v3822, %v3824
  %v3826 = vsel %vm332, %v3820, %v3822
  %v3827 = vsel %vm332, %v3818, %v3820
  %v3828 = vsel %vm332, %v3824, %v3818
  %v3829 = vsel %vm1210, %v3827, 0.0
  %v3830 = vsel %vm1211, %v3826, 0.0
  %v3831 = vsel %vm1212, %v3825, 0.0
  %v3832 = vsel %vm1213, %v3828, 0.0
  %3833 = vrot.lane.b32.xlu0 %v3749, 113
  %v3834 = vpop.permute.xlu0 %3833
  %3835 = vrot.lane.b32.xlu0 %v3750, 113
  %v3836 = vpop.permute.xlu0 %3835
  %3837 = vrot.lane.b32.xlu0 %v3751, 113
  %v3838 = vpop.permute.xlu0 %3837
  %3839 = vrot.lane.b32.xlu0 %v3752, 113
  %v3840 = vpop.permute.xlu0 %3839
  %v3841 = vsel %vm1226, %v3838, %v3840
  %v3842 = vsel %vm1226, %v3836, %v3838
  %v3843 = vsel %vm1226, %v3834, %v3836
  %v3844 = vsel %vm1226, %v3840, %v3834
  %v3845 = vsel %vm1235, %v3843, 0.0
  %v3846 = vsel %vm1236, %v3842, 0.0
  %v3847 = vsel %vm1237, %v3841, 0.0
  %v3848 = vsel %vm1238, %v3844, 0.0
  %3849 = vrot.lane.b32.xlu0 %v3749, 112
  %v3850 = vpop.permute.xlu0 %3849
  %3851 = vrot.lane.b32.xlu0 %v3750, 112
  %v3852 = vpop.permute.xlu0 %3851
  %3853 = vrot.lane.b32.xlu0 %v3751, 112
  %v3854 = vpop.permute.xlu0 %3853
  %3855 = vrot.lane.b32.xlu0 %v3752, 112
  %v3856 = vpop.permute.xlu0 %3855
  %v3857 = vsel %vm349, %v3854, %v3856
  %v3858 = vsel %vm349, %v3852, %v3854
  %v3859 = vsel %vm349, %v3850, %v3852
  %v3860 = vsel %vm349, %v3856, %v3850
  %v3861 = vsel %vm1259, %v3859, 0.0
  %v3862 = vsel %vm1260, %v3858, 0.0
  %v3863 = vsel %vm1261, %v3857, 0.0
  %v3864 = vsel %vm1262, %v3860, 0.0
  %3865 = vrot.lane.b32.xlu0 %v3749, 111
  %v3866 = vpop.permute.xlu0 %3865
  %3867 = vrot.lane.b32.xlu0 %v3750, 111
  %v3868 = vpop.permute.xlu0 %3867
  %3869 = vrot.lane.b32.xlu0 %v3751, 111
  %v3870 = vpop.permute.xlu0 %3869
  %3871 = vrot.lane.b32.xlu0 %v3752, 111
  %v3872 = vpop.permute.xlu0 %3871
  %v3873 = vsel %vm366, %v3870, %v3872
  %v3874 = vsel %vm366, %v3868, %v3870
  %v3875 = vsel %vm366, %v3866, %v3868
  %v3876 = vsel %vm366, %v3872, %v3866
  %v3877 = vsel %vm1283, %v3875, 0.0
  %v3878 = vsel %vm1284, %v3874, 0.0
  %v3879 = vsel %vm1285, %v3873, 0.0
  %v3880 = vsel %vm1286, %v3876, 0.0
  %s3881 = scalar_lea.vmem %s0, 88
  %v3882 = vld [vmem:[%s3881] sm:$0xff]
  %s3883 = scalar_lea.vmem %s1, 88
  %v3884 = vld [vmem:[%s3883] sm:$0xff]
  %3886 = vset.pattern.permute.xlu0 0
  %3887 = vperm.xlu0 %3886, %v3884
  %v3888 = vpop.permute.xlu0 %3887
  %v3891 = vsel %vm598, %v3882, 0
  %3893 = vmatprep.subr.mxu0 %v3766
  %3894 = vmatpush1.msra.mxu0 %v3765
  %3895 = vmatprep.subr.mxu0 %v3782
  %3896 = vmatpush1.msra.mxu0 %v3781
  %3897 = vmatprep.subr.mxu0 %v3798
  %3898 = vmatpush1.msra.mxu0 %v3797
  %3899 = vmatprep.subr.mxu0 %v3814
  %3900 = vmatpush1.msra.mxu0 %v3813
  %3901 = vmatprep.subr.mxu0 %v3750
  %3902 = vmatpush1.msra.mxu0 %v3749
  %3903 = vmatprep.subr.mxu0 %v3830
  %3904 = vmatpush1.msra.mxu0 %v3829
  %3905 = vmatprep.subr.mxu0 %v3846
  %3906 = vmatpush1.msra.mxu0 %v3845
  %3907 = vmatprep.subr.mxu0 %v3862
  %3908 = vmatpush1.msra.mxu0 %v3861
  %3909 = vmatprep.subr.mxu0 %v3878
  %3910 = vmatpush1.msra.mxu0 %v3877
  %3911 = vmatprep.subr.mxu0 0.0
  %3912 = vmatpush1.msra.mxu0 0.0
  %3913 = vmatprep.subr.mxu0 0.0
  %3914 = vmatpush1.msra.mxu0 0.0
  %3915 = vmatprep.subr.mxu0 0.0
  %3916 = vmatpush1.msra.mxu0 0.0
  %3917 = vmatprep.subr.mxu0 0.0
  %3918 = vmatpush1.msra.mxu0 0.0
  %3919 = vmatprep.subr.mxu0 0.0
  %3920 = vmatpush1.msra.mxu0 0.0
  %3921 = vmatprep.subr.mxu0 0.0
  %3922 = vmatpush1.msra.mxu0 0.0
  %3923 = vmatprep.subr.mxu0 0.0
  %3924 = vmatpush1.msra.mxu0 0.0
  %3925 = vmatprep.subr.mxu0 0.0
  %3926 = vmatpush1.msra.mxu0 0.0
  %3927 = vmatprep.subr.mxu0 0.0
  %3928 = vmatpush1.msra.mxu0 0.0
  %3929 = vmatprep.subr.mxu0 0.0
  %3930 = vmatpush1.msra.mxu0 0.0
  %3931 = vmatprep.subr.mxu0 0.0
  %3932 = vmatpush1.msra.mxu0 0.0
  %3933 = vmatprep.subr.mxu0 0.0
  %3934 = vmatpush1.msra.mxu0 0.0
  %3935 = vmatprep.subr.mxu0 0.0
  %3936 = vmatpush1.msra.mxu0 0.0
  %3937 = vmatprep.subr.mxu0 0.0
  %3938 = vmatpush1.msra.mxu0 0.0
  %3939 = vmatprep.subr.mxu0 0.0
  %3940 = vmatpush1.msra.mxu0 0.0
  %3941 = vmatprep.subr.mxu0 0.0
  %3942 = vmatpush1.msra.mxu0 0.0
  %3943 = vmatprep.subr.mxu0 0.0
  %3944 = vmatpush1.msra.mxu0 0.0
  %3945 = vmatprep.subr.mxu0 0.0
  %3946 = vmatpush1.msra.mxu0 0.0
  %3947 = vmatprep.subr.mxu0 0.0
  %3948 = vmatpush1.msra.mxu0 0.0
  %3949 = vmatprep.subr.mxu0 0.0
  %3950 = vmatpush1.msra.mxu0 0.0
  %3951 = vmatprep.subr.mxu0 0.0
  %3952 = vmatpush1.msra.mxu0 0.0
  %3953 = vmatprep.subr.mxu0 0.0
  %3954 = vmatpush1.msra.mxu0 0.0
  %3955 = vmatprep.subr.mxu0 0.0
  %3956 = vmatpush1.msra.mxu0 0.0
  %3957 = vmatprep.mubr.f32.mxu0 0.0
  %3958 = vmatmul.mubr.f32.gmra.mrb[0].mxu0 %v3891
  %v3959 = vpop.f32.mrb[0].mxu0
  %v3960 = vadd.f32 %v3888, %v3959
  %v3961 = vpop.f32.mrb[0].mxu0
  %v3962 = vadd.f32 %v3888, %v3961
  %3963 = vdwg.mxu0
  %3964 = vmatprep.subr.mxu0 %v3768
  %3965 = vmatpush1.msra.mxu0 %v3767
  %3966 = vmatprep.subr.mxu0 %v3784
  %3967 = vmatpush1.msra.mxu0 %v3783
  %3968 = vmatprep.subr.mxu0 %v3800
  %3969 = vmatpush1.msra.mxu0 %v3799
  %3970 = vmatprep.subr.mxu0 %v3816
  %3971 = vmatpush1.msra.mxu0 %v3815
  %3972 = vmatprep.subr.mxu0 %v3752
  %3973 = vmatpush1.msra.mxu0 %v3751
  %3974 = vmatprep.subr.mxu0 %v3832
  %3975 = vmatpush1.msra.mxu0 %v3831
  %3976 = vmatprep.subr.mxu0 %v3848
  %3977 = vmatpush1.msra.mxu0 %v3847
  %3978 = vmatprep.subr.mxu0 %v3864
  %3979 = vmatpush1.msra.mxu0 %v3863
  %3980 = vmatprep.subr.mxu0 %v3880
  %3981 = vmatpush1.msra.mxu0 %v3879
  %3982 = vmatprep.subr.mxu0 0.0
  %3983 = vmatpush1.msra.mxu0 0.0
  %3984 = vmatprep.subr.mxu0 0.0
  %3985 = vmatpush1.msra.mxu0 0.0
  %3986 = vmatprep.subr.mxu0 0.0
  %3987 = vmatpush1.msra.mxu0 0.0
  %3988 = vmatprep.subr.mxu0 0.0
  %3989 = vmatpush1.msra.mxu0 0.0
  %3990 = vmatprep.subr.mxu0 0.0
  %3991 = vmatpush1.msra.mxu0 0.0
  %3992 = vmatprep.subr.mxu0 0.0
  %3993 = vmatpush1.msra.mxu0 0.0
  %3994 = vmatprep.subr.mxu0 0.0
  %3995 = vmatpush1.msra.mxu0 0.0
  %3996 = vmatprep.subr.mxu0 0.0
  %3997 = vmatpush1.msra.mxu0 0.0
  %3998 = vmatprep.subr.mxu0 0.0
  %3999 = vmatpush1.msra.mxu0 0.0
  %4000 = vmatprep.subr.mxu0 0.0
  %4001 = vmatpush1.msra.mxu0 0.0
  %4002 = vmatprep.subr.mxu0 0.0
  %4003 = vmatpush1.msra.mxu0 0.0
  %4004 = vmatprep.subr.mxu0 0.0
  %4005 = vmatpush1.msra.mxu0 0.0
  %4006 = vmatprep.subr.mxu0 0.0
  %4007 = vmatpush1.msra.mxu0 0.0
  %4008 = vmatprep.subr.mxu0 0.0
  %4009 = vmatpush1.msra.mxu0 0.0
  %4010 = vmatprep.subr.mxu0 0.0
  %4011 = vmatpush1.msra.mxu0 0.0
  %4012 = vmatprep.subr.mxu0 0.0
  %4013 = vmatpush1.msra.mxu0 0.0
  %4014 = vmatprep.subr.mxu0 0.0
  %4015 = vmatpush1.msra.mxu0 0.0
  %4016 = vmatprep.subr.mxu0 0.0
  %4017 = vmatpush1.msra.mxu0 0.0
  %4018 = vmatprep.subr.mxu0 0.0
  %4019 = vmatpush1.msra.mxu0 0.0
  %4020 = vmatprep.subr.mxu0 0.0
  %4021 = vmatpush1.msra.mxu0 0.0
  %4022 = vmatprep.subr.mxu0 0.0
  %4023 = vmatpush1.msra.mxu0 0.0
  %4024 = vmatprep.subr.mxu0 0.0
  %4025 = vmatpush1.msra.mxu0 0.0
  %4026 = vmatprep.subr.mxu0 0.0
  %4027 = vmatpush1.msra.mxu0 0.0
  %4028 = vmatprep.mubr.f32.mxu0 0.0
  %4029 = vmatmul.mubr.f32.gmra.mrb[0].mxu0 %v3891
  %v4030 = vpop.f32.mrb[0].mxu0
  %v4031 = vadd.f32 %v3888, %v4030
  %v4032 = vpop.f32.mrb[0].mxu0
  %v4033 = vadd.f32 %v3888, %v4032
  %4034 = vdwg.mxu0
  %v4035 = vadd.f32 %v3960, %v3463
  %v4036 = vadd.f32 %v3962, %v3464
  %v4037 = vadd.f32 %v4031, %v3465
  %v4038 = vadd.f32 %v4033, %v3466
  %v4039 = vmax.f32 %v4035, 0.0
  %v4040 = vmax.f32 %v4036, 0.0
  %v4041 = vmax.f32 %v4037, 0.0
  %v4042 = vmax.f32 %v4038, 0.0
  %4043 = vst [vmem:[%s4] sm:$0xff] %v1735
  %4044 = vst [vmem:[%s4 + $0x8] sm:$0xff] %v1736
  %4045 = vst [vmem:[%s4 + $0x10] sm:$0xff] %v1737
  %4046 = vst [vmem:[%s4 + $0x18] sm:$0xff] %v1738
  %v4047 = vadd.f32 %v1735, %v1736
  %4048 = vadd.xlane.f32.xlu0 %v4047
  %v4049 = vpop.xlane.xlu0 %4048
  %v4050 = vmul.f32 %v4049, 0.00390625
  %v4051 = vsub.f32 0.0, %v4050
  %v4052 = vmul.f32 %v4051, 1.442695
  %v4053 = vpow.pop %v4052
  %v4054 = vadd.f32 %v4053, 1.0
  %v4055 = vrcp.pop %v4054
  %v4056 = vmul.f32 1.0, %v4055
  %v4057 = vadd.f32 %v4056, 1.0
  %v4058 = vmul.f32 %v4039, %v4057
  %v4059 = vmul.f32 %v4040, %v4057
  %4060 = vst [vmem:[%s5] sm:$0xff] %v4058
  %4061 = vst [vmem:[%s5 + $0x8] sm:$0xff] %v4059
  %v4062 = vadd.f32 %v1737, %v1738
  %4063 = vadd.xlane.f32.xlu0 %v4062
  %v4064 = vpop.xlane.xlu0 %4063
  %v4065 = vmul.f32 %v4064, 0.00390625
  %v4066 = vsub.f32 0.0, %v4065
  %v4067 = vmul.f32 %v4066, 1.442695
  %v4068 = vpow.pop %v4067
  %v4069 = vadd.f32 %v4068, 1.0
  %v4070 = vrcp.pop %v4069
  %v4071 = vmul.f32 1.0, %v4070
  %v4072 = vadd.f32 %v4071, 1.0
  %v4073 = vmul.f32 %v4041, %v4072
  %v4074 = vmul.f32 %v4042, %v4072
  %4075 = vst [vmem:[%s5 + $0x10] sm:$0xff] %v4073
  %4076 = vst [vmem:[%s5 + $0x18] sm:$0xff] %v4074
  // Predicated region
  $region18: #{matching_module.1} parent=0 // pred_check
    _
  $region19: #{matching_module.1} parent=0 // pred_check_branch
    %4078 = sbr.rel (0) target = $region21
  $region20: #{matching_module.1} parent=0 // pred_region
    _
  $region21: #{matching_module.1} parent=0 // pred_fallthru
    _
  // Predicated region
  $region22: #{matching_module.1} parent=0 // pred_check
    _
  $region23: #{matching_module.1} parent=0 // pred_check_branch
    %4080 = sbr.rel (0) target = $region25
  $region24: #{matching_module.1} parent=0 // pred_region
    _
  $region25: #{matching_module.1} parent=0 // pred_fallthru
    _
  // Predicated region
  $region26: #{matching_module.1} parent=0 // pred_check
    _
  $region27: #{matching_module.1} parent=0 // pred_check_branch
    %4082 = sbr.rel (0) target = $region29
  $region28: #{matching_module.1} parent=0 // pred_region
    _
  $region29: #{matching_module.1} parent=0 // pred_fallthru
    _
  // Predicated region
  $region30: #{matching_module.1} parent=0 // pred_check
    _
  $region31: #{matching_module.1} parent=0 // pred_check_branch
    %4084 = sbr.rel (0) target = $region33
  $region32: #{matching_module.1} parent=0 // pred_region
    _
  $region33: #{matching_module.1} parent=0 // pred_fallthru
    _

</llo_original>
